<compile_context>
chip_gen: v6e
topology: v6e:2x2x1
jax: 0.10.0
libtpu: 0.0.40
codegen_flags: <defaults>
</compile_context>

<pallas_src>
import math

import jax
import jax.numpy as jnp
from jax.experimental import pallas as pl
from jax.experimental.pallas import tpu as pltpu  # noqa: F401  (TPU backend)

# ---------------- model hyper-params (small, deterministic) ----------------
B = 2            # batch
S = 8            # seq_len
D = 32           # d_model
H = 4            # num_heads
DK = D // H      # head dim
DFF = 64         # feed-forward hidden
NUM_LAYERS = 2
LN_EPS = 1e-5    # torch nn.LayerNorm default

BHS = B * H * S          # 64 stacked (batch, head, seq) rows
NEG_MASK = -1e9          # additive bias for user-masked positions (matches ref)
NEG_BLOCK = -2e9         # additive bias for cross-(batch,head) blocks


# ---------------------------- Pallas kernel ---------------------------------
def encoder_stack_kernel(
    x_ref, bias_ref, head_mask_ref, qkv_mask_ref, sel_ref, tile_eye_ref,
    wqkv_ref, bqkv_ref, wo_ref, bo_ref,
    g1_ref, be1_ref, w1_ref, b1_ref, w2_ref, b2_ref, g2_ref, be2_ref,
    out_ref, attn_ref,
):
    """Whole encoder stack in one invocation; layers statically unrolled."""
    f32 = jnp.float32
    act = x_ref[...]                      # (B*S, D) activations carried across layers
    bias = bias_ref[...]                  # (BHS, BHS) block-diag additive mask
    head_mask = head_mask_ref[...]        # (BHS, D)   1.0 on each row's own head block
    qkv_mask = qkv_mask_ref[...]          # (BHS, 3D)  head_mask tiled for q|k|v
    tile_eye = tile_eye_ref[...]          # (DK, D)    [I_DK | I_DK | I_DK | I_DK]

    for l in range(NUM_LAYERS):
        # ---- fused Q|K|V projection (1/sqrt(dk) folded into Q columns) ------
        qkv = jnp.dot(act, wqkv_ref[l], preferred_element_type=f32) + bqkv_ref[l]   # (B*S, 3D)

        # ---- head stacking without transposes/reshapes ----------------------
        # Replicate each batch's 8-row block H times (sublane-tile aligned),
        # mask each row to its own head's feature block, then contract against
        # tiny constant selection matrices on the MXU.  Rows come out ordered
        # (batch, head, seq).
        reps = []
        for b in range(B):
            blk = qkv[b * S:(b + 1) * S, :]
            reps.extend([blk] * H)
        qkv_rep = jnp.concatenate(reps, axis=0) * qkv_mask                 # (BHS, 3D)
        q_s = jnp.dot(qkv_rep, sel_ref[0], preferred_element_type=f32)     # (BHS, DK)
        k_s = jnp.dot(qkv_rep, sel_ref[1], preferred_element_type=f32)     # (BHS, DK)
        v_s = jnp.dot(qkv_rep, sel_ref[2], preferred_element_type=f32)     # (BHS, DK)

        # ---- block-diagonal attention: all (batch, head) pairs at once ------
        scores = jax.lax.dot_general(
            q_s, k_s, (((1,), (1,)), ((), ())),
            preferred_element_type=f32) + bias                              # (BHS, BHS)
        scores = scores - jnp.max(scores, axis=-1, keepdims=True)
        e = jnp.exp(scores)                # cross-block entries underflow to exactly 0
        p = e / jnp.sum(e, axis=-1, keepdims=True)     # exact softmax (stored probs)
        attn_ref[l] = p                                # lane-dense (64x64) store
        ctx = jnp.dot(p, v_s, preferred_element_type=f32)                   # (BHS, DK)

        # ---- un-stack heads back to the (B*S, D) feature layout -------------
        ctx_wide = jnp.dot(ctx, tile_eye, preferred_element_type=f32) * head_mask   # (BHS, D)
        batch_rows = []
        for b in range(B):
            acc = ctx_wide[(b * H) * S:(b * H + 1) * S, :]
            for hh in range(1, H):
                acc = acc + ctx_wide[(b * H + hh) * S:(b * H + hh + 1) * S, :]
            batch_rows.append(acc)
        ctx_slab = jnp.concatenate(batch_rows, axis=0)                      # (B*S, D)

        # ---- output projection + residual + LayerNorm ------------------------
        y = act + jnp.dot(ctx_slab, wo_ref[l], preferred_element_type=f32) + bo_ref[l]
        mu = jnp.mean(y, axis=-1, keepdims=True)
        var = jnp.mean((y - mu) ** 2, axis=-1, keepdims=True)
        y = (y - mu) * jax.lax.rsqrt(var + LN_EPS) * g1_ref[l] + be1_ref[l]

        # ---- position-wise feed-forward + residual + LayerNorm ----------------
        hid = jnp.dot(y, w1_ref[l], preferred_element_type=f32) + b1_ref[l]
        hid = jnp.maximum(hid, 0.0)                                         # ReLU
        z = y + jnp.dot(hid, w2_ref[l], preferred_element_type=f32) + b2_ref[l]
        mu2 = jnp.mean(z, axis=-1, keepdims=True)
        var2 = jnp.mean((z - mu2) ** 2, axis=-1, keepdims=True)
        act = (z - mu2) * jax.lax.rsqrt(var2 + LN_EPS) * g2_ref[l] + be2_ref[l]

    out_ref[...] = act


# ------------------------- constant / weight packing -------------------------
def _build_constants(mask):
    """Layer-invariant operands for the head-stacked block-diagonal attention."""
    mask_bias = jnp.where(mask[:, 0] > 0, 0.0, NEG_MASK).astype(jnp.float32)    # (B, S, S)
    r = jnp.arange(BHS)
    grp = r // S                      # group g = b*H + h
    b_r = r // (H * S)
    s_r = r % S
    same_group = grp[:, None] == grp[None, :]
    in_block = mask_bias[b_r[:, None], s_r[:, None], s_r[None, :]]              # (BHS, BHS)
    bias = jnp.where(same_group, in_block, NEG_BLOCK).astype(jnp.float32)

    h_r = (r // S) % H
    col_head = jnp.arange(D) // DK
    head_mask = (h_r[:, None] == col_head[None, :]).astype(jnp.float32)         # (BHS, D)
    qkv_mask = jnp.tile(head_mask, (1, 3))                                      # (BHS, 3D)

    sel_one = jnp.tile(jnp.eye(DK, dtype=jnp.float32), (H, 1))                  # (D, DK)
    sel = jnp.zeros((3, 3 * D, DK), jnp.float32)
    for j in range(3):
        sel = sel.at[j, j * D:(j + 1) * D, :].set(sel_one)                      # (3, 3D, DK)
    tile_eye = jnp.tile(jnp.eye(DK, dtype=jnp.float32), (1, H))                 # (DK, D)
    return bias, head_mask, qkv_mask, sel, tile_eye


def pack_layer_params(layer_params):
    """Stack per-layer params on a leading L axis; fuse QKV; fold in 1/sqrt(dk)."""
    scale = 1.0 / math.sqrt(DK)
    wqkv = jnp.stack([jnp.concatenate([p["wq"] * scale, p["wk"], p["wv"]], axis=1)
                      for p in layer_params])                                   # (L, D, 3D)
    bqkv = jnp.stack([jnp.concatenate([p["bq"] * scale, p["bk"], p["bv"]])
                      for p in layer_params])[:, None, :]                       # (L, 1, 3D)

    def mat(name):   # (L, a, b)
        return jnp.stack([p[name] for p in layer_params])

    def vec(name):   # (L, 1, a)
        return jnp.stack([p[name] for p in layer_params])[:, None, :]

    return [
        wqkv, bqkv,
        mat("wo"), vec("bo"),
        vec("g1"), vec("be1"),
        mat("w1"), vec("b1"),
        mat("w2"), vec("b2"),
        vec("g2"), vec("be2"),
    ]


# ------------------------------ wrapper --------------------------------------
def encoder_forward(x, mask, layer_params):
    """Full Encoder in a single grid-less pallas_call.

    x: (B, S, D) f32, mask: (B, 1, S, S).
    Returns (out (B,S,D), [attn (B,H,S,S) per layer]).
    """
    b, s, d = x.shape
    x2 = x.reshape(b * s, d).astype(jnp.float32)
    bias, head_mask, qkv_mask, sel, tile_eye = _build_constants(mask)
    packed = pack_layer_params(layer_params)

    out2, attn_full = pl.pallas_call(
        encoder_stack_kernel,
        out_shape=(
            jax.ShapeDtypeStruct((b * s, d), jnp.float32),
            jax.ShapeDtypeStruct((NUM_LAYERS, BHS, BHS), jnp.float32),
        ),
    )(x2, bias, head_mask, qkv_mask, sel, tile_eye, *packed)

    out = out2.reshape(b, s, d)
    # Extract the per-(batch, head) diagonal blocks of the stacked attention
    # matrix (free layout plumbing outside the kernel).
    a = attn_full.reshape(NUM_LAYERS, B * H, S, B * H, S)
    idx = jnp.arange(B * H)
    diag = a[:, idx, :, idx, :]                              # (B*H, L, S, S)
    attn = jnp.moveaxis(diag, 0, 1).reshape(NUM_LAYERS, B, H, S, S)
    return out, [attn[i] for i in range(NUM_LAYERS)]


# --------------------------- parameter init ---------------------------------
def init_layer_params(key):
    ks = jax.random.split(key, 8)
    sd = 0.02
    return {
        "wq": jax.random.normal(ks[0], (D, D), jnp.float32) * sd,
        "bq": jnp.zeros((D,), jnp.float32),
        "wk": jax.random.normal(ks[1], (D, D), jnp.float32) * sd,
        "bk": jnp.zeros((D,), jnp.float32),
        "wv": jax.random.normal(ks[2], (D, D), jnp.float32) * sd,
        "bv": jnp.zeros((D,), jnp.float32),
        "wo": jax.random.normal(ks[3], (D, D), jnp.float32) * sd,
        "bo": jnp.zeros((D,), jnp.float32),
        "g1": jnp.ones((D,), jnp.float32),
        "be1": jnp.zeros((D,), jnp.float32),
        "w1": jax.random.normal(ks[4], (D, DFF), jnp.float32) * sd,
        "b1": jnp.zeros((DFF,), jnp.float32),
        "w2": jax.random.normal(ks[5], (DFF, D), jnp.float32) * sd,
        "b2": jnp.zeros((D,), jnp.float32),
        "g2": jnp.ones((D,), jnp.float32),
        "be2": jnp.zeros((D,), jnp.float32),
    }


# ------------------------- pure-JAX reference -------------------------------
def _ref_layer(x, mask, p):
    def ln(y, g, b):
        mu = y.mean(-1, keepdims=True)
        var = ((y - mu) ** 2).mean(-1, keepdims=True)
        return (y - mu) / jnp.sqrt(var + LN_EPS) * g + b

    q = x @ p["wq"] + p["bq"]
    k = x @ p["wk"] + p["bk"]
    v = x @ p["wv"] + p["bv"]
    qh = q.reshape(B, S, H, DK).transpose(0, 2, 1, 3)
    kh = k.reshape(B, S, H, DK).transpose(0, 2, 1, 3)
    vh = v.reshape(B, S, H, DK).transpose(0, 2, 1, 3)
    scores = jnp.einsum("bhqd,bhkd->bhqk", qh, kh) / math.sqrt(DK)
    scores = jnp.where(mask > 0, scores, -1e9)
    attn = jax.nn.softmax(scores, axis=-1)
    ctx = jnp.einsum("bhqk,bhkd->bhqd", attn, vh).transpose(0, 2, 1, 3).reshape(B, S, D)
    y = ln(x + ctx @ p["wo"] + p["bo"], p["g1"], p["be1"])
    ff = jnp.maximum(y @ p["w1"] + p["b1"], 0.0) @ p["w2"] + p["b2"]
    z = ln(y + ff, p["g2"], p["be2"])
    return z, attn


# --------------------------------- main --------------------------------------
if __name__ == "__main__":
    key = jax.random.PRNGKey(0)
    kx, *kl = jax.random.split(key, NUM_LAYERS + 1)

    x = jax.random.normal(kx, (B, S, D), jnp.float32)
    mask = jnp.ones((B, 1, S, S), jnp.float32)   # no masking (mask of ones)
    layer_params = [init_layer_params(k) for k in kl]

    out, attns = encoder_forward(x, mask, layer_params)
    out = jax.block_until_ready(out)
    attns = [jax.block_until_ready(a) for a in attns]

    # sanity check vs pure-JAX reference
    xr = x
    for i, p in enumerate(layer_params):
        xr, ar = _ref_layer(xr, mask, p)
        assert jnp.allclose(attns[i], ar, atol=1e-3, rtol=1e-3), f"attn mismatch at layer {i}"
    assert jnp.allclose(out, xr, atol=1e-3, rtol=1e-3), "output mismatch"

    print("KERNEL_OK")
</pallas_src>

<mosaic_0001>
module attributes {stable_mosaic.version = 11 : i64} {
  func.func @encoder_stack_kernel(%arg0: memref<16x32xf32, #tpu.memory_space<vmem>>, %arg1: memref<64x64xf32, #tpu.memory_space<vmem>>, %arg2: memref<64x32xf32, #tpu.memory_space<vmem>>, %arg3: memref<64x96xf32, #tpu.memory_space<vmem>>, %arg4: memref<3x96x8xf32, #tpu.memory_space<vmem>>, %arg5: memref<8x32xf32, #tpu.memory_space<vmem>>, %arg6: memref<2x32x96xf32, #tpu.memory_space<vmem>>, %arg7: memref<2x1x96xf32, #tpu.memory_space<vmem>>, %arg8: memref<2x32x32xf32, #tpu.memory_space<vmem>>, %arg9: memref<2x1x32xf32, #tpu.memory_space<vmem>>, %arg10: memref<2x1x32xf32, #tpu.memory_space<vmem>>, %arg11: memref<2x1x32xf32, #tpu.memory_space<vmem>>, %arg12: memref<2x32x64xf32, #tpu.memory_space<vmem>>, %arg13: memref<2x1x64xf32, #tpu.memory_space<vmem>>, %arg14: memref<2x64x32xf32, #tpu.memory_space<vmem>>, %arg15: memref<2x1x32xf32, #tpu.memory_space<vmem>>, %arg16: memref<2x1x32xf32, #tpu.memory_space<vmem>>, %arg17: memref<2x1x32xf32, #tpu.memory_space<vmem>>, %arg18: memref<16x32xf32, #tpu.memory_space<vmem>>, %arg19: memref<2x64x64xf32, #tpu.memory_space<vmem>>) attributes {dimension_semantics = [], scalar_prefetch = 0 : i64, scratch_operands = 0 : i64, tpu.core_type = #tpu.core_type<tc>} {
    %c0 = arith.constant 0 : index
    %c0_0 = arith.constant 0 : index
    %0 = vector.load %arg0[%c0, %c0_0] : memref<16x32xf32, #tpu.memory_space<vmem>>, vector<16x32xf32>
    %c0_1 = arith.constant 0 : index
    %c0_2 = arith.constant 0 : index
    %1 = vector.load %arg1[%c0_1, %c0_2] : memref<64x64xf32, #tpu.memory_space<vmem>>, vector<64x64xf32>
    %c0_3 = arith.constant 0 : index
    %c0_4 = arith.constant 0 : index
    %2 = vector.load %arg2[%c0_3, %c0_4] : memref<64x32xf32, #tpu.memory_space<vmem>>, vector<64x32xf32>
    %c0_5 = arith.constant 0 : index
    %c0_6 = arith.constant 0 : index
    %3 = vector.load %arg3[%c0_5, %c0_6] : memref<64x96xf32, #tpu.memory_space<vmem>>, vector<64x96xf32>
    %c0_7 = arith.constant 0 : index
    %c0_8 = arith.constant 0 : index
    %4 = vector.load %arg5[%c0_7, %c0_8] : memref<8x32xf32, #tpu.memory_space<vmem>>, vector<8x32xf32>
    %c0_9 = arith.constant 0 : index
    %c0_10 = arith.constant 0 : index
    %c0_11 = arith.constant 0 : index
    %5 = vector.load %arg6[%c0_9, %c0_10, %c0_11] : memref<2x32x96xf32, #tpu.memory_space<vmem>>, vector<1x32x96xf32>
    %6 = vector.shape_cast %5 : vector<1x32x96xf32> to vector<32x96xf32>
    %cst = arith.constant dense<0.000000e+00> : vector<16x96xf32>
    %7 = tpu.matmul %0, %6, %cst {dimension_numbers = #tpu.dot_dimension_numbers<[1], [0], [0], [1], [0, 0, 1, 1], [], []>} : vector<16x32xf32>, vector<32x96xf32>, vector<16x96xf32> -> vector<16x96xf32>
    %c0_12 = arith.constant 0 : index
    %c0_13 = arith.constant 0 : index
    %c0_14 = arith.constant 0 : index
    %8 = vector.load %arg7[%c0_12, %c0_13, %c0_14] : memref<2x1x96xf32, #tpu.memory_space<vmem>>, vector<1x1x96xf32>
    %9 = vector.shape_cast %8 : vector<1x1x96xf32> to vector<1x96xf32>
    %10 = vector.broadcast %9 : vector<1x96xf32> to vector<16x96xf32>
    %11 = arith.addf %7, %10 : vector<16x96xf32>
    %12 = vector.extract_strided_slice %11 {offsets = [0, 0], sizes = [8, 96], strides = [1, 1]} : vector<16x96xf32> to vector<8x96xf32>
    %13 = vector.extract_strided_slice %11 {offsets = [8, 0], sizes = [8, 96], strides = [1, 1]} : vector<16x96xf32> to vector<8x96xf32>
    %14 = tpu.concatenate %12, %12, %12, %12, %13, %13, %13, %13 in 0 : vector<8x96xf32>, vector<8x96xf32>, vector<8x96xf32>, vector<8x96xf32>, vector<8x96xf32>, vector<8x96xf32>, vector<8x96xf32>, vector<8x96xf32> -> vector<64x96xf32>
    %15 = arith.mulf %14, %3 : vector<64x96xf32>
    %c0_15 = arith.constant 0 : index
    %c0_16 = arith.constant 0 : index
    %c0_17 = arith.constant 0 : index
    %16 = vector.load %arg4[%c0_15, %c0_16, %c0_17] : memref<3x96x8xf32, #tpu.memory_space<vmem>>, vector<1x96x8xf32>
    %17 = vector.shape_cast %16 : vector<1x96x8xf32> to vector<96x8xf32>
    %cst_18 = arith.constant dense<0.000000e+00> : vector<64x8xf32>
    %18 = tpu.matmul %15, %17, %cst_18 {dimension_numbers = #tpu.dot_dimension_numbers<[1], [0], [0], [1], [0, 0, 1, 1], [], []>} : vector<64x96xf32>, vector<96x8xf32>, vector<64x8xf32> -> vector<64x8xf32>
    %c1 = arith.constant 1 : index
    %c0_19 = arith.constant 0 : index
    %c0_20 = arith.constant 0 : index
    %19 = vector.load %arg4[%c1, %c0_19, %c0_20] : memref<3x96x8xf32, #tpu.memory_space<vmem>>, vector<1x96x8xf32>
    %20 = vector.shape_cast %19 : vector<1x96x8xf32> to vector<96x8xf32>
    %cst_21 = arith.constant dense<0.000000e+00> : vector<64x8xf32>
    %21 = tpu.matmul %15, %20, %cst_21 {dimension_numbers = #tpu.dot_dimension_numbers<[1], [0], [0], [1], [0, 0, 1, 1], [], []>} : vector<64x96xf32>, vector<96x8xf32>, vector<64x8xf32> -> vector<64x8xf32>
    %c2 = arith.constant 2 : index
    %c0_22 = arith.constant 0 : index
    %c0_23 = arith.constant 0 : index
    %22 = vector.load %arg4[%c2, %c0_22, %c0_23] : memref<3x96x8xf32, #tpu.memory_space<vmem>>, vector<1x96x8xf32>
    %23 = vector.shape_cast %22 : vector<1x96x8xf32> to vector<96x8xf32>
    %cst_24 = arith.constant dense<0.000000e+00> : vector<64x8xf32>
    %24 = tpu.matmul %15, %23, %cst_24 {dimension_numbers = #tpu.dot_dimension_numbers<[1], [0], [0], [1], [0, 0, 1, 1], [], []>} : vector<64x96xf32>, vector<96x8xf32>, vector<64x8xf32> -> vector<64x8xf32>
    %cst_25 = arith.constant dense<0.000000e+00> : vector<64x64xf32>
    %25 = tpu.matmul %18, %21, %cst_25 {dimension_numbers = #tpu.dot_dimension_numbers<[1], [1], [0], [0], [0, 0, 1, 0], [], []>} : vector<64x8xf32>, vector<64x8xf32>, vector<64x64xf32> -> vector<64x64xf32>
    %26 = arith.addf %25, %1 : vector<64x64xf32>
    %cst_26 = arith.constant dense<0xFF800000> : vector<64xf32>
    %27 = vector.multi_reduction <maximumf>, %26, %cst_26 [1] : vector<64x64xf32> to vector<64xf32>
    %28 = vector.shape_cast %27 : vector<64xf32> to vector<64x1xf32>
    %29 = vector.broadcast %28 : vector<64x1xf32> to vector<64x64xf32>
    %30 = arith.subf %26, %29 : vector<64x64xf32>
    %31 = math.exp %30 : vector<64x64xf32>
    %cst_27 = arith.constant dense<0.000000e+00> : vector<64xf32>
    %32 = vector.multi_reduction <add>, %31, %cst_27 [1] : vector<64x64xf32> to vector<64xf32>
    %33 = vector.shape_cast %32 : vector<64xf32> to vector<64x1xf32>
    %34 = vector.broadcast %33 : vector<64x1xf32> to vector<64x64xf32>
    %35 = arith.divf %31, %34 : vector<64x64xf32>
    %c0_28 = arith.constant 0 : index
    %c0_29 = arith.constant 0 : index
    %c0_30 = arith.constant 0 : index
    %36 = vector.load %arg19[%c0_28, %c0_29, %c0_30] : memref<2x64x64xf32, #tpu.memory_space<vmem>>, vector<1x64x64xf32>
    %37 = vector.shape_cast %36 : vector<1x64x64xf32> to vector<64x64xf32>
    %38 = vector.shape_cast %35 : vector<64x64xf32> to vector<1x64x64xf32>
    tpu.vector_store %arg19[%c0_28, %c0_29, %c0_30], %38 {strides = array<i32>} : memref<2x64x64xf32, #tpu.memory_space<vmem>>, vector<1x64x64xf32>,
    %cst_31 = arith.constant dense<0.000000e+00> : vector<64x8xf32>
    %39 = tpu.matmul %35, %24, %cst_31 {dimension_numbers = #tpu.dot_dimension_numbers<[1], [0], [0], [1], [0, 0, 1, 1], [], []>} : vector<64x64xf32>, vector<64x8xf32>, vector<64x8xf32> -> vector<64x8xf32>
    %cst_32 = arith.constant dense<0.000000e+00> : vector<64x32xf32>
    %40 = tpu.matmul %39, %4, %cst_32 {dimension_numbers = #tpu.dot_dimension_numbers<[1], [0], [0], [1], [0, 0, 1, 1], [], []>} : vector<64x8xf32>, vector<8x32xf32>, vector<64x32xf32> -> vector<64x32xf32>
    %41 = arith.mulf %40, %2 : vector<64x32xf32>
    %42 = vector.extract_strided_slice %41 {offsets = [0, 0], sizes = [8, 32], strides = [1, 1]} : vector<64x32xf32> to vector<8x32xf32>
    %43 = vector.extract_strided_slice %41 {offsets = [8, 0], sizes = [8, 32], strides = [1, 1]} : vector<64x32xf32> to vector<8x32xf32>
    %44 = arith.addf %42, %43 : vector<8x32xf32>
    %45 = vector.extract_strided_slice %41 {offsets = [16, 0], sizes = [8, 32], strides = [1, 1]} : vector<64x32xf32> to vector<8x32xf32>
    %46 = arith.addf %44, %45 : vector<8x32xf32>
    %47 = vector.extract_strided_slice %41 {offsets = [24, 0], sizes = [8, 32], strides = [1, 1]} : vector<64x32xf32> to vector<8x32xf32>
    %48 = arith.addf %46, %47 : vector<8x32xf32>
    %49 = vector.extract_strided_slice %41 {offsets = [32, 0], sizes = [8, 32], strides = [1, 1]} : vector<64x32xf32> to vector<8x32xf32>
    %50 = vector.extract_strided_slice %41 {offsets = [40, 0], sizes = [8, 32], strides = [1, 1]} : vector<64x32xf32> to vector<8x32xf32>
    %51 = arith.addf %49, %50 : vector<8x32xf32>
    %52 = vector.extract_strided_slice %41 {offsets = [48, 0], sizes = [8, 32], strides = [1, 1]} : vector<64x32xf32> to vector<8x32xf32>
    %53 = arith.addf %51, %52 : vector<8x32xf32>
    %54 = vector.extract_strided_slice %41 {offsets = [56, 0], sizes = [8, 32], strides = [1, 1]} : vector<64x32xf32> to vector<8x32xf32>
    %55 = arith.addf %53, %54 : vector<8x32xf32>
    %56 = tpu.concatenate %48, %55 in 0 : vector<8x32xf32>, vector<8x32xf32> -> vector<16x32xf32>
    %c0_33 = arith.constant 0 : index
    %c0_34 = arith.constant 0 : index
    %c0_35 = arith.constant 0 : index
    %57 = vector.load %arg8[%c0_33, %c0_34, %c0_35] : memref<2x32x32xf32, #tpu.memory_space<vmem>>, vector<1x32x32xf32>
    %58 = vector.shape_cast %57 : vector<1x32x32xf32> to vector<32x32xf32>
    %cst_36 = arith.constant dense<0.000000e+00> : vector<16x32xf32>
    %59 = tpu.matmul %56, %58, %cst_36 {dimension_numbers = #tpu.dot_dimension_numbers<[1], [0], [0], [1], [0, 0, 1, 1], [], []>} : vector<16x32xf32>, vector<32x32xf32>, vector<16x32xf32> -> vector<16x32xf32>
    %60 = arith.addf %0, %59 : vector<16x32xf32>
    %c0_37 = arith.constant 0 : index
    %c0_38 = arith.constant 0 : index
    %c0_39 = arith.constant 0 : index
    %61 = vector.load %arg9[%c0_37, %c0_38, %c0_39] : memref<2x1x32xf32, #tpu.memory_space<vmem>>, vector<1x1x32xf32>
    %62 = vector.shape_cast %61 : vector<1x1x32xf32> to vector<1x32xf32>
    %63 = vector.broadcast %62 : vector<1x32xf32> to vector<16x32xf32>
    %64 = arith.addf %60, %63 : vector<16x32xf32>
    %cst_40 = arith.constant dense<0.000000e+00> : vector<16xf32>
    %65 = vector.multi_reduction <add>, %64, %cst_40 [1] : vector<16x32xf32> to vector<16xf32>
    %66 = vector.shape_cast %65 : vector<16xf32> to vector<16x1xf32>
    %cst_41 = arith.constant 3.200000e+01 : f32
    %67 = vector.broadcast %cst_41 : f32 to vector<16x1xf32>
    %68 = arith.divf %66, %67 : vector<16x1xf32>
    %69 = vector.broadcast %68 : vector<16x1xf32> to vector<16x32xf32>
    %70 = arith.subf %64, %69 : vector<16x32xf32>
    %71 = arith.mulf %70, %70 : vector<16x32xf32>
    %cst_42 = arith.constant dense<0.000000e+00> : vector<16xf32>
    %72 = vector.multi_reduction <add>, %71, %cst_42 [1] : vector<16x32xf32> to vector<16xf32>
    %73 = vector.shape_cast %72 : vector<16xf32> to vector<16x1xf32>
    %cst_43 = arith.constant 3.200000e+01 : f32
    %74 = vector.broadcast %cst_43 : f32 to vector<16x1xf32>
    %75 = arith.divf %73, %74 : vector<16x1xf32>
    %76 = vector.broadcast %68 : vector<16x1xf32> to vector<16x32xf32>
    %77 = arith.subf %64, %76 : vector<16x32xf32>
    %cst_44 = arith.constant 9.99999974E-6 : f32
    %78 = vector.broadcast %cst_44 : f32 to vector<16x1xf32>
    %79 = arith.addf %75, %78 : vector<16x1xf32>
    %80 = math.rsqrt %79 : vector<16x1xf32>
    %81 = vector.broadcast %80 : vector<16x1xf32> to vector<16x32xf32>
    %82 = arith.mulf %77, %81 : vector<16x32xf32>
    %c0_45 = arith.constant 0 : index
    %c0_46 = arith.constant 0 : index
    %c0_47 = arith.constant 0 : index
    %83 = vector.load %arg10[%c0_45, %c0_46, %c0_47] : memref<2x1x32xf32, #tpu.memory_space<vmem>>, vector<1x1x32xf32>
    %84 = vector.shape_cast %83 : vector<1x1x32xf32> to vector<1x32xf32>
    %85 = vector.broadcast %84 : vector<1x32xf32> to vector<16x32xf32>
    %86 = arith.mulf %82, %85 : vector<16x32xf32>
    %c0_48 = arith.constant 0 : index
    %c0_49 = arith.constant 0 : index
    %c0_50 = arith.constant 0 : index
    %87 = vector.load %arg11[%c0_48, %c0_49, %c0_50] : memref<2x1x32xf32, #tpu.memory_space<vmem>>, vector<1x1x32xf32>
    %88 = vector.shape_cast %87 : vector<1x1x32xf32> to vector<1x32xf32>
    %89 = vector.broadcast %88 : vector<1x32xf32> to vector<16x32xf32>
    %90 = arith.addf %86, %89 : vector<16x32xf32>
    %c0_51 = arith.constant 0 : index
    %c0_52 = arith.constant 0 : index
    %c0_53 = arith.constant 0 : index
    %91 = vector.load %arg12[%c0_51, %c0_52, %c0_53] : memref<2x32x64xf32, #tpu.memory_space<vmem>>, vector<1x32x64xf32>
    %92 = vector.shape_cast %91 : vector<1x32x64xf32> to vector<32x64xf32>
    %cst_54 = arith.constant dense<0.000000e+00> : vector<16x64xf32>
    %93 = tpu.matmul %90, %92, %cst_54 {dimension_numbers = #tpu.dot_dimension_numbers<[1], [0], [0], [1], [0, 0, 1, 1], [], []>} : vector<16x32xf32>, vector<32x64xf32>, vector<16x64xf32> -> vector<16x64xf32>
    %c0_55 = arith.constant 0 : index
    %c0_56 = arith.constant 0 : index
    %c0_57 = arith.constant 0 : index
    %94 = vector.load %arg13[%c0_55, %c0_56, %c0_57] : memref<2x1x64xf32, #tpu.memory_space<vmem>>, vector<1x1x64xf32>
    %95 = vector.shape_cast %94 : vector<1x1x64xf32> to vector<1x64xf32>
    %96 = vector.broadcast %95 : vector<1x64xf32> to vector<16x64xf32>
    %97 = arith.addf %93, %96 : vector<16x64xf32>
    %cst_58 = arith.constant 0.000000e+00 : f32
    %98 = vector.broadcast %cst_58 : f32 to vector<16x64xf32>
    %99 = arith.maximumf %97, %98 : vector<16x64xf32>
    %c0_59 = arith.constant 0 : index
    %c0_60 = arith.constant 0 : index
    %c0_61 = arith.constant 0 : index
    %100 = vector.load %arg14[%c0_59, %c0_60, %c0_61] : memref<2x64x32xf32, #tpu.memory_space<vmem>>, vector<1x64x32xf32>
    %101 = vector.shape_cast %100 : vector<1x64x32xf32> to vector<64x32xf32>
    %cst_62 = arith.constant dense<0.000000e+00> : vector<16x32xf32>
    %102 = tpu.matmul %99, %101, %cst_62 {dimension_numbers = #tpu.dot_dimension_numbers<[1], [0], [0], [1], [0, 0, 1, 1], [], []>} : vector<16x64xf32>, vector<64x32xf32>, vector<16x32xf32> -> vector<16x32xf32>
    %103 = arith.addf %90, %102 : vector<16x32xf32>
    %c0_63 = arith.constant 0 : index
    %c0_64 = arith.constant 0 : index
    %c0_65 = arith.constant 0 : index
    %104 = vector.load %arg15[%c0_63, %c0_64, %c0_65] : memref<2x1x32xf32, #tpu.memory_space<vmem>>, vector<1x1x32xf32>
    %105 = vector.shape_cast %104 : vector<1x1x32xf32> to vector<1x32xf32>
    %106 = vector.broadcast %105 : vector<1x32xf32> to vector<16x32xf32>
    %107 = arith.addf %103, %106 : vector<16x32xf32>
    %cst_66 = arith.constant dense<0.000000e+00> : vector<16xf32>
    %108 = vector.multi_reduction <add>, %107, %cst_66 [1] : vector<16x32xf32> to vector<16xf32>
    %109 = vector.shape_cast %108 : vector<16xf32> to vector<16x1xf32>
    %cst_67 = arith.constant 3.200000e+01 : f32
    %110 = vector.broadcast %cst_67 : f32 to vector<16x1xf32>
    %111 = arith.divf %109, %110 : vector<16x1xf32>
    %112 = vector.broadcast %111 : vector<16x1xf32> to vector<16x32xf32>
    %113 = arith.subf %107, %112 : vector<16x32xf32>
    %114 = arith.mulf %113, %113 : vector<16x32xf32>
    %cst_68 = arith.constant dense<0.000000e+00> : vector<16xf32>
    %115 = vector.multi_reduction <add>, %114, %cst_68 [1] : vector<16x32xf32> to vector<16xf32>
    %116 = vector.shape_cast %115 : vector<16xf32> to vector<16x1xf32>
    %cst_69 = arith.constant 3.200000e+01 : f32
    %117 = vector.broadcast %cst_69 : f32 to vector<16x1xf32>
    %118 = arith.divf %116, %117 : vector<16x1xf32>
    %119 = vector.broadcast %111 : vector<16x1xf32> to vector<16x32xf32>
    %120 = arith.subf %107, %119 : vector<16x32xf32>
    %cst_70 = arith.constant 9.99999974E-6 : f32
    %121 = vector.broadcast %cst_70 : f32 to vector<16x1xf32>
    %122 = arith.addf %118, %121 : vector<16x1xf32>
    %123 = math.rsqrt %122 : vector<16x1xf32>
    %124 = vector.broadcast %123 : vector<16x1xf32> to vector<16x32xf32>
    %125 = arith.mulf %120, %124 : vector<16x32xf32>
    %c0_71 = arith.constant 0 : index
    %c0_72 = arith.constant 0 : index
    %c0_73 = arith.constant 0 : index
    %126 = vector.load %arg16[%c0_71, %c0_72, %c0_73] : memref<2x1x32xf32, #tpu.memory_space<vmem>>, vector<1x1x32xf32>
    %127 = vector.shape_cast %126 : vector<1x1x32xf32> to vector<1x32xf32>
    %128 = vector.broadcast %127 : vector<1x32xf32> to vector<16x32xf32>
    %129 = arith.mulf %125, %128 : vector<16x32xf32>
    %c0_74 = arith.constant 0 : index
    %c0_75 = arith.constant 0 : index
    %c0_76 = arith.constant 0 : index
    %130 = vector.load %arg17[%c0_74, %c0_75, %c0_76] : memref<2x1x32xf32, #tpu.memory_space<vmem>>, vector<1x1x32xf32>
    %131 = vector.shape_cast %130 : vector<1x1x32xf32> to vector<1x32xf32>
    %132 = vector.broadcast %131 : vector<1x32xf32> to vector<16x32xf32>
    %133 = arith.addf %129, %132 : vector<16x32xf32>
    %c1_77 = arith.constant 1 : index
    %c0_78 = arith.constant 0 : index
    %c0_79 = arith.constant 0 : index
    %134 = vector.load %arg6[%c1_77, %c0_78, %c0_79] : memref<2x32x96xf32, #tpu.memory_space<vmem>>, vector<1x32x96xf32>
    %135 = vector.shape_cast %134 : vector<1x32x96xf32> to vector<32x96xf32>
    %cst_80 = arith.constant dense<0.000000e+00> : vector<16x96xf32>
    %136 = tpu.matmul %133, %135, %cst_80 {dimension_numbers = #tpu.dot_dimension_numbers<[1], [0], [0], [1], [0, 0, 1, 1], [], []>} : vector<16x32xf32>, vector<32x96xf32>, vector<16x96xf32> -> vector<16x96xf32>
    %c1_81 = arith.constant 1 : index
    %c0_82 = arith.constant 0 : index
    %c0_83 = arith.constant 0 : index
    %137 = vector.load %arg7[%c1_81, %c0_82, %c0_83] : memref<2x1x96xf32, #tpu.memory_space<vmem>>, vector<1x1x96xf32>
    %138 = vector.shape_cast %137 : vector<1x1x96xf32> to vector<1x96xf32>
    %139 = vector.broadcast %138 : vector<1x96xf32> to vector<16x96xf32>
    %140 = arith.addf %136, %139 : vector<16x96xf32>
    %141 = vector.extract_strided_slice %140 {offsets = [0, 0], sizes = [8, 96], strides = [1, 1]} : vector<16x96xf32> to vector<8x96xf32>
    %142 = vector.extract_strided_slice %140 {offsets = [8, 0], sizes = [8, 96], strides = [1, 1]} : vector<16x96xf32> to vector<8x96xf32>
    %143 = tpu.concatenate %141, %141, %141, %141, %142, %142, %142, %142 in 0 : vector<8x96xf32>, vector<8x96xf32>, vector<8x96xf32>, vector<8x96xf32>, vector<8x96xf32>, vector<8x96xf32>, vector<8x96xf32>, vector<8x96xf32> -> vector<64x96xf32>
    %144 = arith.mulf %143, %3 : vector<64x96xf32>
    %c0_84 = arith.constant 0 : index
    %c0_85 = arith.constant 0 : index
    %c0_86 = arith.constant 0 : index
    %145 = vector.load %arg4[%c0_84, %c0_85, %c0_86] : memref<3x96x8xf32, #tpu.memory_space<vmem>>, vector<1x96x8xf32>
    %146 = vector.shape_cast %145 : vector<1x96x8xf32> to vector<96x8xf32>
    %cst_87 = arith.constant dense<0.000000e+00> : vector<64x8xf32>
    %147 = tpu.matmul %144, %146, %cst_87 {dimension_numbers = #tpu.dot_dimension_numbers<[1], [0], [0], [1], [0, 0, 1, 1], [], []>} : vector<64x96xf32>, vector<96x8xf32>, vector<64x8xf32> -> vector<64x8xf32>
    %c1_88 = arith.constant 1 : index
    %c0_89 = arith.constant 0 : index
    %c0_90 = arith.constant 0 : index
    %148 = vector.load %arg4[%c1_88, %c0_89, %c0_90] : memref<3x96x8xf32, #tpu.memory_space<vmem>>, vector<1x96x8xf32>
    %149 = vector.shape_cast %148 : vector<1x96x8xf32> to vector<96x8xf32>
    %cst_91 = arith.constant dense<0.000000e+00> : vector<64x8xf32>
    %150 = tpu.matmul %144, %149, %cst_91 {dimension_numbers = #tpu.dot_dimension_numbers<[1], [0], [0], [1], [0, 0, 1, 1], [], []>} : vector<64x96xf32>, vector<96x8xf32>, vector<64x8xf32> -> vector<64x8xf32>
    %c2_92 = arith.constant 2 : index
    %c0_93 = arith.constant 0 : index
    %c0_94 = arith.constant 0 : index
    %151 = vector.load %arg4[%c2_92, %c0_93, %c0_94] : memref<3x96x8xf32, #tpu.memory_space<vmem>>, vector<1x96x8xf32>
    %152 = vector.shape_cast %151 : vector<1x96x8xf32> to vector<96x8xf32>
    %cst_95 = arith.constant dense<0.000000e+00> : vector<64x8xf32>
    %153 = tpu.matmul %144, %152, %cst_95 {dimension_numbers = #tpu.dot_dimension_numbers<[1], [0], [0], [1], [0, 0, 1, 1], [], []>} : vector<64x96xf32>, vector<96x8xf32>, vector<64x8xf32> -> vector<64x8xf32>
    %cst_96 = arith.constant dense<0.000000e+00> : vector<64x64xf32>
    %154 = tpu.matmul %147, %150, %cst_96 {dimension_numbers = #tpu.dot_dimension_numbers<[1], [1], [0], [0], [0, 0, 1, 0], [], []>} : vector<64x8xf32>, vector<64x8xf32>, vector<64x64xf32> -> vector<64x64xf32>
    %155 = arith.addf %154, %1 : vector<64x64xf32>
    %cst_97 = arith.constant dense<0xFF800000> : vector<64xf32>
    %156 = vector.multi_reduction <maximumf>, %155, %cst_97 [1] : vector<64x64xf32> to vector<64xf32>
    %157 = vector.shape_cast %156 : vector<64xf32> to vector<64x1xf32>
    %158 = vector.broadcast %157 : vector<64x1xf32> to vector<64x64xf32>
    %159 = arith.subf %155, %158 : vector<64x64xf32>
    %160 = math.exp %159 : vector<64x64xf32>
    %cst_98 = arith.constant dense<0.000000e+00> : vector<64xf32>
    %161 = vector.multi_reduction <add>, %160, %cst_98 [1] : vector<64x64xf32> to vector<64xf32>
    %162 = vector.shape_cast %161 : vector<64xf32> to vector<64x1xf32>
    %163 = vector.broadcast %162 : vector<64x1xf32> to vector<64x64xf32>
    %164 = arith.divf %160, %163 : vector<64x64xf32>
    %c1_99 = arith.constant 1 : index
    %c0_100 = arith.constant 0 : index
    %c0_101 = arith.constant 0 : index
    %165 = vector.load %arg19[%c1_99, %c0_100, %c0_101] : memref<2x64x64xf32, #tpu.memory_space<vmem>>, vector<1x64x64xf32>
    %166 = vector.shape_cast %165 : vector<1x64x64xf32> to vector<64x64xf32>
    %167 = vector.shape_cast %164 : vector<64x64xf32> to vector<1x64x64xf32>
    tpu.vector_store %arg19[%c1_99, %c0_100, %c0_101], %167 {strides = array<i32>} : memref<2x64x64xf32, #tpu.memory_space<vmem>>, vector<1x64x64xf32>,
    %cst_102 = arith.constant dense<0.000000e+00> : vector<64x8xf32>
    %168 = tpu.matmul %164, %153, %cst_102 {dimension_numbers = #tpu.dot_dimension_numbers<[1], [0], [0], [1], [0, 0, 1, 1], [], []>} : vector<64x64xf32>, vector<64x8xf32>, vector<64x8xf32> -> vector<64x8xf32>
    %cst_103 = arith.constant dense<0.000000e+00> : vector<64x32xf32>
    %169 = tpu.matmul %168, %4, %cst_103 {dimension_numbers = #tpu.dot_dimension_numbers<[1], [0], [0], [1], [0, 0, 1, 1], [], []>} : vector<64x8xf32>, vector<8x32xf32>, vector<64x32xf32> -> vector<64x32xf32>
    %170 = arith.mulf %169, %2 : vector<64x32xf32>
    %171 = vector.extract_strided_slice %170 {offsets = [0, 0], sizes = [8, 32], strides = [1, 1]} : vector<64x32xf32> to vector<8x32xf32>
    %172 = vector.extract_strided_slice %170 {offsets = [8, 0], sizes = [8, 32], strides = [1, 1]} : vector<64x32xf32> to vector<8x32xf32>
    %173 = arith.addf %171, %172 : vector<8x32xf32>
    %174 = vector.extract_strided_slice %170 {offsets = [16, 0], sizes = [8, 32], strides = [1, 1]} : vector<64x32xf32> to vector<8x32xf32>
    %175 = arith.addf %173, %174 : vector<8x32xf32>
    %176 = vector.extract_strided_slice %170 {offsets = [24, 0], sizes = [8, 32], strides = [1, 1]} : vector<64x32xf32> to vector<8x32xf32>
    %177 = arith.addf %175, %176 : vector<8x32xf32>
    %178 = vector.extract_strided_slice %170 {offsets = [32, 0], sizes = [8, 32], strides = [1, 1]} : vector<64x32xf32> to vector<8x32xf32>
    %179 = vector.extract_strided_slice %170 {offsets = [40, 0], sizes = [8, 32], strides = [1, 1]} : vector<64x32xf32> to vector<8x32xf32>
    %180 = arith.addf %178, %179 : vector<8x32xf32>
    %181 = vector.extract_strided_slice %170 {offsets = [48, 0], sizes = [8, 32], strides = [1, 1]} : vector<64x32xf32> to vector<8x32xf32>
    %182 = arith.addf %180, %181 : vector<8x32xf32>
    %183 = vector.extract_strided_slice %170 {offsets = [56, 0], sizes = [8, 32], strides = [1, 1]} : vector<64x32xf32> to vector<8x32xf32>
    %184 = arith.addf %182, %183 : vector<8x32xf32>
    %185 = tpu.concatenate %177, %184 in 0 : vector<8x32xf32>, vector<8x32xf32> -> vector<16x32xf32>
    %c1_104 = arith.constant 1 : index
    %c0_105 = arith.constant 0 : index
    %c0_106 = arith.constant 0 : index
    %186 = vector.load %arg8[%c1_104, %c0_105, %c0_106] : memref<2x32x32xf32, #tpu.memory_space<vmem>>, vector<1x32x32xf32>
    %187 = vector.shape_cast %186 : vector<1x32x32xf32> to vector<32x32xf32>
    %cst_107 = arith.constant dense<0.000000e+00> : vector<16x32xf32>
    %188 = tpu.matmul %185, %187, %cst_107 {dimension_numbers = #tpu.dot_dimension_numbers<[1], [0], [0], [1], [0, 0, 1, 1], [], []>} : vector<16x32xf32>, vector<32x32xf32>, vector<16x32xf32> -> vector<16x32xf32>
    %189 = arith.addf %133, %188 : vector<16x32xf32>
    %c1_108 = arith.constant 1 : index
    %c0_109 = arith.constant 0 : index
    %c0_110 = arith.constant 0 : index
    %190 = vector.load %arg9[%c1_108, %c0_109, %c0_110] : memref<2x1x32xf32, #tpu.memory_space<vmem>>, vector<1x1x32xf32>
    %191 = vector.shape_cast %190 : vector<1x1x32xf32> to vector<1x32xf32>
    %192 = vector.broadcast %191 : vector<1x32xf32> to vector<16x32xf32>
    %193 = arith.addf %189, %192 : vector<16x32xf32>
    %cst_111 = arith.constant dense<0.000000e+00> : vector<16xf32>
    %194 = vector.multi_reduction <add>, %193, %cst_111 [1] : vector<16x32xf32> to vector<16xf32>
    %195 = vector.shape_cast %194 : vector<16xf32> to vector<16x1xf32>
    %cst_112 = arith.constant 3.200000e+01 : f32
    %196 = vector.broadcast %cst_112 : f32 to vector<16x1xf32>
    %197 = arith.divf %195, %196 : vector<16x1xf32>
    %198 = vector.broadcast %197 : vector<16x1xf32> to vector<16x32xf32>
    %199 = arith.subf %193, %198 : vector<16x32xf32>
    %200 = arith.mulf %199, %199 : vector<16x32xf32>
    %cst_113 = arith.constant dense<0.000000e+00> : vector<16xf32>
    %201 = vector.multi_reduction <add>, %200, %cst_113 [1] : vector<16x32xf32> to vector<16xf32>
    %202 = vector.shape_cast %201 : vector<16xf32> to vector<16x1xf32>
    %cst_114 = arith.constant 3.200000e+01 : f32
    %203 = vector.broadcast %cst_114 : f32 to vector<16x1xf32>
    %204 = arith.divf %202, %203 : vector<16x1xf32>
    %205 = vector.broadcast %197 : vector<16x1xf32> to vector<16x32xf32>
    %206 = arith.subf %193, %205 : vector<16x32xf32>
    %cst_115 = arith.constant 9.99999974E-6 : f32
    %207 = vector.broadcast %cst_115 : f32 to vector<16x1xf32>
    %208 = arith.addf %204, %207 : vector<16x1xf32>
    %209 = math.rsqrt %208 : vector<16x1xf32>
    %210 = vector.broadcast %209 : vector<16x1xf32> to vector<16x32xf32>
    %211 = arith.mulf %206, %210 : vector<16x32xf32>
    %c1_116 = arith.constant 1 : index
    %c0_117 = arith.constant 0 : index
    %c0_118 = arith.constant 0 : index
    %212 = vector.load %arg10[%c1_116, %c0_117, %c0_118] : memref<2x1x32xf32, #tpu.memory_space<vmem>>, vector<1x1x32xf32>
    %213 = vector.shape_cast %212 : vector<1x1x32xf32> to vector<1x32xf32>
    %214 = vector.broadcast %213 : vector<1x32xf32> to vector<16x32xf32>
    %215 = arith.mulf %211, %214 : vector<16x32xf32>
    %c1_119 = arith.constant 1 : index
    %c0_120 = arith.constant 0 : index
    %c0_121 = arith.constant 0 : index
    %216 = vector.load %arg11[%c1_119, %c0_120, %c0_121] : memref<2x1x32xf32, #tpu.memory_space<vmem>>, vector<1x1x32xf32>
    %217 = vector.shape_cast %216 : vector<1x1x32xf32> to vector<1x32xf32>
    %218 = vector.broadcast %217 : vector<1x32xf32> to vector<16x32xf32>
    %219 = arith.addf %215, %218 : vector<16x32xf32>
    %c1_122 = arith.constant 1 : index
    %c0_123 = arith.constant 0 : index
    %c0_124 = arith.constant 0 : index
    %220 = vector.load %arg12[%c1_122, %c0_123, %c0_124] : memref<2x32x64xf32, #tpu.memory_space<vmem>>, vector<1x32x64xf32>
    %221 = vector.shape_cast %220 : vector<1x32x64xf32> to vector<32x64xf32>
    %cst_125 = arith.constant dense<0.000000e+00> : vector<16x64xf32>
    %222 = tpu.matmul %219, %221, %cst_125 {dimension_numbers = #tpu.dot_dimension_numbers<[1], [0], [0], [1], [0, 0, 1, 1], [], []>} : vector<16x32xf32>, vector<32x64xf32>, vector<16x64xf32> -> vector<16x64xf32>
    %c1_126 = arith.constant 1 : index
    %c0_127 = arith.constant 0 : index
    %c0_128 = arith.constant 0 : index
    %223 = vector.load %arg13[%c1_126, %c0_127, %c0_128] : memref<2x1x64xf32, #tpu.memory_space<vmem>>, vector<1x1x64xf32>
    %224 = vector.shape_cast %223 : vector<1x1x64xf32> to vector<1x64xf32>
    %225 = vector.broadcast %224 : vector<1x64xf32> to vector<16x64xf32>
    %226 = arith.addf %222, %225 : vector<16x64xf32>
    %cst_129 = arith.constant 0.000000e+00 : f32
    %227 = vector.broadcast %cst_129 : f32 to vector<16x64xf32>
    %228 = arith.maximumf %226, %227 : vector<16x64xf32>
    %c1_130 = arith.constant 1 : index
    %c0_131 = arith.constant 0 : index
    %c0_132 = arith.constant 0 : index
    %229 = vector.load %arg14[%c1_130, %c0_131, %c0_132] : memref<2x64x32xf32, #tpu.memory_space<vmem>>, vector<1x64x32xf32>
    %230 = vector.shape_cast %229 : vector<1x64x32xf32> to vector<64x32xf32>
    %cst_133 = arith.constant dense<0.000000e+00> : vector<16x32xf32>
    %231 = tpu.matmul %228, %230, %cst_133 {dimension_numbers = #tpu.dot_dimension_numbers<[1], [0], [0], [1], [0, 0, 1, 1], [], []>} : vector<16x64xf32>, vector<64x32xf32>, vector<16x32xf32> -> vector<16x32xf32>
    %232 = arith.addf %219, %231 : vector<16x32xf32>
    %c1_134 = arith.constant 1 : index
    %c0_135 = arith.constant 0 : index
    %c0_136 = arith.constant 0 : index
    %233 = vector.load %arg15[%c1_134, %c0_135, %c0_136] : memref<2x1x32xf32, #tpu.memory_space<vmem>>, vector<1x1x32xf32>
    %234 = vector.shape_cast %233 : vector<1x1x32xf32> to vector<1x32xf32>
    %235 = vector.broadcast %234 : vector<1x32xf32> to vector<16x32xf32>
    %236 = arith.addf %232, %235 : vector<16x32xf32>
    %cst_137 = arith.constant dense<0.000000e+00> : vector<16xf32>
    %237 = vector.multi_reduction <add>, %236, %cst_137 [1] : vector<16x32xf32> to vector<16xf32>
    %238 = vector.shape_cast %237 : vector<16xf32> to vector<16x1xf32>
    %cst_138 = arith.constant 3.200000e+01 : f32
    %239 = vector.broadcast %cst_138 : f32 to vector<16x1xf32>
    %240 = arith.divf %238, %239 : vector<16x1xf32>
    %241 = vector.broadcast %240 : vector<16x1xf32> to vector<16x32xf32>
    %242 = arith.subf %236, %241 : vector<16x32xf32>
    %243 = arith.mulf %242, %242 : vector<16x32xf32>
    %cst_139 = arith.constant dense<0.000000e+00> : vector<16xf32>
    %244 = vector.multi_reduction <add>, %243, %cst_139 [1] : vector<16x32xf32> to vector<16xf32>
    %245 = vector.shape_cast %244 : vector<16xf32> to vector<16x1xf32>
    %cst_140 = arith.constant 3.200000e+01 : f32
    %246 = vector.broadcast %cst_140 : f32 to vector<16x1xf32>
    %247 = arith.divf %245, %246 : vector<16x1xf32>
    %248 = vector.broadcast %240 : vector<16x1xf32> to vector<16x32xf32>
    %249 = arith.subf %236, %248 : vector<16x32xf32>
    %cst_141 = arith.constant 9.99999974E-6 : f32
    %250 = vector.broadcast %cst_141 : f32 to vector<16x1xf32>
    %251 = arith.addf %247, %250 : vector<16x1xf32>
    %252 = math.rsqrt %251 : vector<16x1xf32>
    %253 = vector.broadcast %252 : vector<16x1xf32> to vector<16x32xf32>
    %254 = arith.mulf %249, %253 : vector<16x32xf32>
    %c1_142 = arith.constant 1 : index
    %c0_143 = arith.constant 0 : index
    %c0_144 = arith.constant 0 : index
    %255 = vector.load %arg16[%c1_142, %c0_143, %c0_144] : memref<2x1x32xf32, #tpu.memory_space<vmem>>, vector<1x1x32xf32>
    %256 = vector.shape_cast %255 : vector<1x1x32xf32> to vector<1x32xf32>
    %257 = vector.broadcast %256 : vector<1x32xf32> to vector<16x32xf32>
    %258 = arith.mulf %254, %257 : vector<16x32xf32>
    %c1_145 = arith.constant 1 : index
    %c0_146 = arith.constant 0 : index
    %c0_147 = arith.constant 0 : index
    %259 = vector.load %arg17[%c1_145, %c0_146, %c0_147] : memref<2x1x32xf32, #tpu.memory_space<vmem>>, vector<1x1x32xf32>
    %260 = vector.shape_cast %259 : vector<1x1x32xf32> to vector<1x32xf32>
    %261 = vector.broadcast %260 : vector<1x32xf32> to vector<16x32xf32>
    %262 = arith.addf %258, %261 : vector<16x32xf32>
    %c0_148 = arith.constant 0 : index
    %c0_149 = arith.constant 0 : index
    %263 = vector.load %arg18[%c0_148, %c0_149] : memref<16x32xf32, #tpu.memory_space<vmem>>, vector<16x32xf32>
    tpu.vector_store %arg18[%c0_148, %c0_149], %262 {strides = array<i32>} : memref<16x32xf32, #tpu.memory_space<vmem>>, vector<16x32xf32>,
    return
  }
}

</mosaic_0001>

<llo_original>
// kernel: tpu_custom_call.1
$region0: #{tpu_custom_call.1}
  #allocation0 [shape = 'u32[]', space=smem, size = 0x4, offset = 0x4, fixed_abs, tag = 'smem constant byte address 0x4 - core index']
  #allocation1 [shape = 'u32[144,128]{1,0:T(1,128)}', space=vmem, size = 0x12000, scoped, tag = 'internal scratch']
  %s0 = inlined_call_operand.vmem [shape: f32[16,32], index: 0, kind: input, shape index: {}]
  %s1 = inlined_call_operand.vmem [shape: f32[64,64], index: 1, kind: input, shape index: {}]
  %s2 = inlined_call_operand.vmem [shape: f32[64,32], index: 2, kind: input, shape index: {}]
  %s3 = inlined_call_operand.vmem [shape: f32[64,96], index: 3, kind: input, shape index: {}]
  %s4 = inlined_call_operand.vmem [shape: f32[3,96,8], index: 4, kind: input, shape index: {}]
  %s5 = inlined_call_operand.vmem [shape: f32[8,32], index: 5, kind: input, shape index: {}]
  %s6 = inlined_call_operand.vmem [shape: f32[2,32,96], index: 6, kind: input, shape index: {}]
  %s7 = inlined_call_operand.vmem [shape: f32[2,1,96], index: 7, kind: input, shape index: {}]
  %s8 = inlined_call_operand.vmem [shape: f32[2,32,32], index: 8, kind: input, shape index: {}]
  %s9 = inlined_call_operand.vmem [shape: f32[2,1,32], index: 9, kind: input, shape index: {}]
  %s10 = inlined_call_operand.vmem [shape: f32[2,1,32], index: 10, kind: input, shape index: {}]
  %s11 = inlined_call_operand.vmem [shape: f32[2,1,32], index: 11, kind: input, shape index: {}]
  %s12 = inlined_call_operand.vmem [shape: f32[2,32,64], index: 12, kind: input, shape index: {}]
  %s13 = inlined_call_operand.vmem [shape: f32[2,1,64], index: 13, kind: input, shape index: {}]
  %s14 = inlined_call_operand.vmem [shape: f32[2,64,32], index: 14, kind: input, shape index: {}]
  %s15 = inlined_call_operand.vmem [shape: f32[2,1,32], index: 15, kind: input, shape index: {}]
  %s16 = inlined_call_operand.vmem [shape: f32[2,1,32], index: 16, kind: input, shape index: {}]
  %s17 = inlined_call_operand.vmem [shape: f32[2,1,32], index: 17, kind: input, shape index: {}]
  %s18 = inlined_call_operand.hbm [shape: f32[16,32], index: 18, kind: output, shape index: {0}]
  %s19 = inlined_call_operand.hbm [shape: f32[2,64,64], index: 19, kind: output, shape index: {1}]
  %20 = xla_tuple %s18, %s19
  %s21 = sld [smem:[#allocation0]]
  $region90: #{tpu_custom_call.1} parent=0
    _
  %s23 = ssub.s32 1, %s21
  %s24 = scalar_select 0, %s23, %s21
  $region1: #{tpu_custom_call.1} parent=0
    #allocation2 [shape = 'u8[8192]{0}', space=vmem, size = 0x2000, scoped, tag = 'output window, operand 0, single buffered']
    #allocation3 [shape = 's32[1]{0}', space=sflag, size = 0x4, scoped, tag = 'scoped memory for tpu_custom_call.1']
    #allocation4 [shape = 'u8[65536]{0}', space=vmem, size = 0x10000, scoped, tag = 'output window, operand 1, single buffered']
    #allocation5 [shape = 's32[1]{0}', space=sflag, size = 0x4, scoped, tag = 'scoped memory for tpu_custom_call.1']
    %25 = vsyncpa [#allocation3], 0
    %26 = vsyncpa [#allocation5], 0
    // Predicated region
    $region2: #{tpu_custom_call.1} parent=1 // pred_check
      _
    $region3: #{tpu_custom_call.1} parent=1 // pred_check_branch
      %28 = sbr.rel (0) target = $region5
    $region4: #{tpu_custom_call.1} parent=1 // pred_region
      _
    $region5: #{tpu_custom_call.1} parent=1 // pred_fallthru
      _
    // Predicated region
    $region6: #{tpu_custom_call.1} parent=1 // pred_check
      _
    $region7: #{tpu_custom_call.1} parent=1 // pred_check_branch
      %30 = sbr.rel (0) target = $region9
    $region8: #{tpu_custom_call.1} parent=1 // pred_region
      _
    $region9: #{tpu_custom_call.1} parent=1 // pred_fallthru
      _
    // Predicated region
    $region10: #{tpu_custom_call.1} parent=1 // pred_check
      _
    $region11: #{tpu_custom_call.1} parent=1 // pred_check_branch
      %32 = sbr.rel (0) target = $region13
    $region12: #{tpu_custom_call.1} parent=1 // pred_region
      _
    $region13: #{tpu_custom_call.1} parent=1 // pred_fallthru
      _
    // Predicated region
    $region14: #{tpu_custom_call.1} parent=1 // pred_check
      _
    $region15: #{tpu_custom_call.1} parent=1 // pred_check_branch
      %34 = sbr.rel (0) target = $region17
    $region16: #{tpu_custom_call.1} parent=1 // pred_region
      _
    $region17: #{tpu_custom_call.1} parent=1 // pred_fallthru
      _
    // Predicated region
    $region18: #{tpu_custom_call.1} parent=1 // pred_check
      _
    $region19: #{tpu_custom_call.1} parent=1 // pred_check_branch
      %36 = sbr.rel (0) target = $region21
    $region20: #{tpu_custom_call.1} parent=1 // pred_region
      _
    $region21: #{tpu_custom_call.1} parent=1 // pred_fallthru
      _
    // Predicated region
    $region22: #{tpu_custom_call.1} parent=1 // pred_check
      _
    $region23: #{tpu_custom_call.1} parent=1 // pred_check_branch
      %38 = sbr.rel (0) target = $region25
    $region24: #{tpu_custom_call.1} parent=1 // pred_region
      _
    $region25: #{tpu_custom_call.1} parent=1 // pred_fallthru
      _
    // Predicated region
    $region26: #{tpu_custom_call.1} parent=1 // pred_check
      _
    $region27: #{tpu_custom_call.1} parent=1 // pred_check_branch
      %40 = sbr.rel (0) target = $region29
    $region28: #{tpu_custom_call.1} parent=1 // pred_region
      _
    $region29: #{tpu_custom_call.1} parent=1 // pred_fallthru
      _
    // Predicated region
    $region30: #{tpu_custom_call.1} parent=1 // pred_check
      _
    $region31: #{tpu_custom_call.1} parent=1 // pred_check_branch
      %42 = sbr.rel (0) target = $region33
    $region32: #{tpu_custom_call.1} parent=1 // pred_region
      _
    $region33: #{tpu_custom_call.1} parent=1 // pred_fallthru
      _
    // Predicated region
    $region34: #{tpu_custom_call.1} parent=1 // pred_check
      _
    $region35: #{tpu_custom_call.1} parent=1 // pred_check_branch
      %44 = sbr.rel (0) target = $region37
    $region36: #{tpu_custom_call.1} parent=1 // pred_region
      _
    $region37: #{tpu_custom_call.1} parent=1 // pred_fallthru
      _
    // Predicated region
    $region38: #{tpu_custom_call.1} parent=1 // pred_check
      _
    $region39: #{tpu_custom_call.1} parent=1 // pred_check_branch
      %46 = sbr.rel (0) target = $region41
    $region40: #{tpu_custom_call.1} parent=1 // pred_region
      _
    $region41: #{tpu_custom_call.1} parent=1 // pred_fallthru
      _
    // Predicated region
    $region42: #{tpu_custom_call.1} parent=1 // pred_check
      _
    $region43: #{tpu_custom_call.1} parent=1 // pred_check_branch
      %48 = sbr.rel (0) target = $region45
    $region44: #{tpu_custom_call.1} parent=1 // pred_region
      _
    $region45: #{tpu_custom_call.1} parent=1 // pred_fallthru
      _
    // Predicated region
    $region46: #{tpu_custom_call.1} parent=1 // pred_check
      _
    $region47: #{tpu_custom_call.1} parent=1 // pred_check_branch
      %50 = sbr.rel (0) target = $region49
    $region48: #{tpu_custom_call.1} parent=1 // pred_region
      _
    $region49: #{tpu_custom_call.1} parent=1 // pred_fallthru
      _
    // Predicated region
    $region50: #{tpu_custom_call.1} parent=1 // pred_check
      _
    $region51: #{tpu_custom_call.1} parent=1 // pred_check_branch
      %52 = sbr.rel (0) target = $region53
    $region52: #{tpu_custom_call.1} parent=1 // pred_region
      _
    $region53: #{tpu_custom_call.1} parent=1 // pred_fallthru
      _
    // Predicated region
    $region54: #{tpu_custom_call.1} parent=1 // pred_check
      _
    $region55: #{tpu_custom_call.1} parent=1 // pred_check_branch
      %54 = sbr.rel (0) target = $region57
    $region56: #{tpu_custom_call.1} parent=1 // pred_region
      _
    $region57: #{tpu_custom_call.1} parent=1 // pred_fallthru
      _
    // Predicated region
    $region58: #{tpu_custom_call.1} parent=1 // pred_check
      _
    $region59: #{tpu_custom_call.1} parent=1 // pred_check_branch
      %56 = sbr.rel (0) target = $region61
    $region60: #{tpu_custom_call.1} parent=1 // pred_region
      _
    $region61: #{tpu_custom_call.1} parent=1 // pred_fallthru
      _
    // Predicated region
    $region62: #{tpu_custom_call.1} parent=1 // pred_check
      _
    $region63: #{tpu_custom_call.1} parent=1 // pred_check_branch
      %58 = sbr.rel (0) target = $region65
    $region64: #{tpu_custom_call.1} parent=1 // pred_region
      _
    $region65: #{tpu_custom_call.1} parent=1 // pred_fallthru
      _
    // Predicated region
    $region66: #{tpu_custom_call.1} parent=1 // pred_check
      _
    $region67: #{tpu_custom_call.1} parent=1 // pred_check_branch
      %60 = sbr.rel (0) target = $region69
    $region68: #{tpu_custom_call.1} parent=1 // pred_region
      _
    $region69: #{tpu_custom_call.1} parent=1 // pred_fallthru
      _
    // Predicated region
    $region70: #{tpu_custom_call.1} parent=1 // pred_check
      _
    $region71: #{tpu_custom_call.1} parent=1 // pred_check_branch
      %62 = sbr.rel (0) target = $region73
    $region72: #{tpu_custom_call.1} parent=1 // pred_region
      _
    $region73: #{tpu_custom_call.1} parent=1 // pred_fallthru
      _
    %v63 = vld [vmem:[%s0] sm:$0xff]
    %v64 = vld [vmem:[%s0 + $0x8] sm:$0xff]
    %v65 = vld [vmem:[%s1] sm:$0xff]
    %v66 = vld [vmem:[%s1 + $0x8] sm:$0xff]
    %v67 = vld [vmem:[%s1 + $0x10] sm:$0xff]
    %v68 = vld [vmem:[%s1 + $0x18] sm:$0xff]
    %v69 = vld [vmem:[%s1 + $0x20] sm:$0xff]
    %v70 = vld [vmem:[%s1 + $0x28] sm:$0xff]
    %v71 = vld [vmem:[%s1 + $0x30] sm:$0xff]
    %v72 = vld [vmem:[%s1 + $0x38] sm:$0xff]
    %v73 = vld [vmem:[%s2] sm:$0xff]
    %v74 = vld [vmem:[%s2 + $0x8] sm:$0xff]
    %v75 = vld [vmem:[%s2 + $0x10] sm:$0xff]
    %v76 = vld [vmem:[%s2 + $0x18] sm:$0xff]
    %v77 = vld [vmem:[%s2 + $0x20] sm:$0xff]
    %v78 = vld [vmem:[%s2 + $0x28] sm:$0xff]
    %v79 = vld [vmem:[%s2 + $0x30] sm:$0xff]
    %v80 = vld [vmem:[%s2 + $0x38] sm:$0xff]
    %v81 = vld [vmem:[%s3] sm:$0xff]
    %v82 = vld [vmem:[%s3 + $0x8] sm:$0xff]
    %v83 = vld [vmem:[%s3 + $0x10] sm:$0xff]
    %v84 = vld [vmem:[%s3 + $0x18] sm:$0xff]
    %v85 = vld [vmem:[%s3 + $0x20] sm:$0xff]
    %v86 = vld [vmem:[%s3 + $0x28] sm:$0xff]
    %v87 = vld [vmem:[%s3 + $0x30] sm:$0xff]
    %v88 = vld [vmem:[%s3 + $0x38] sm:$0xff]
    %v89 = vld [vmem:[%s5] sm:$0xff]
    %v90 = vld [vmem:[%s6] sm:$0xff]
    %v91 = vld [vmem:[%s6 + $0x8] sm:$0xff]
    %v92 = vld [vmem:[%s6 + $0x10] sm:$0xff]
    %v93 = vld [vmem:[%s6 + $0x18] sm:$0xff]
    %v94 = vld [vmem:[%s7] sm:$0x1]
    %v96 = vlaneseq
    %v97 = vshrl.u32 %v96, 7
    %v98 = vsub.s32 0, %v97
    %v99 = vrot.slane %v94, %v98
    %vm101 = vcmask 261120
    %v103 = vsel %vm101, %v63, 0
    %v106 = vsel %vm101, %v64, 0
    %108 = vmatprep.subr.mxu0 0.0
    %109 = vmatpush1.msra.mxu0 0.0
    %110 = vmatprep.subr.mxu0 0.0
    %111 = vmatpush1.msra.mxu0 0.0
    %112 = vmatprep.subr.mxu0 0.0
    %113 = vmatpush1.msra.mxu0 0.0
    %114 = vmatprep.subr.mxu0 0.0
    %115 = vmatpush1.msra.mxu0 0.0
    %116 = vmatprep.subr.mxu0 0.0
    %117 = vmatpush1.msra.mxu0 0.0
    %118 = vmatprep.subr.mxu0 0.0
    %119 = vmatpush1.msra.mxu0 0.0
    %120 = vmatprep.subr.mxu0 0.0
    %121 = vmatpush1.msra.mxu0 0.0
    %122 = vmatprep.subr.mxu0 0.0
    %123 = vmatpush1.msra.mxu0 0.0
    %124 = vmatprep.subr.mxu0 0.0
    %125 = vmatpush1.msra.mxu0 0.0
    %126 = vmatprep.subr.mxu0 0.0
    %127 = vmatpush1.msra.mxu0 0.0
    %128 = vmatprep.subr.mxu0 0.0
    %129 = vmatpush1.msra.mxu0 0.0
    %130 = vmatprep.subr.mxu0 0.0
    %131 = vmatpush1.msra.mxu0 0.0
    %132 = vmatprep.subr.mxu0 0.0
    %133 = vmatpush1.msra.mxu0 %v93
    %134 = vmatprep.subr.mxu0 0.0
    %135 = vmatpush1.msra.mxu0 %v92
    %136 = vmatprep.subr.mxu0 0.0
    %137 = vmatpush1.msra.mxu0 %v91
    %138 = vmatprep.subr.mxu0 0.0
    %139 = vmatpush1.msra.mxu0 %v90
    %140 = vmatprep.subr.mxu0 0.0
    %141 = vmatpush2.msra.mxu0 0.0
    %142 = vmatprep.subr.mxu0 0.0
    %143 = vmatpush2.msra.mxu0 0.0
    %144 = vmatprep.subr.mxu0 0.0
    %145 = vmatpush2.msra.mxu0 0.0
    %146 = vmatprep.subr.mxu0 0.0
    %147 = vmatpush2.msra.mxu0 0.0
    %148 = vmatprep.subr.mxu0 0.0
    %149 = vmatpush2.msra.mxu0 0.0
    %150 = vmatprep.subr.mxu0 0.0
    %151 = vmatpush2.msra.mxu0 0.0
    %152 = vmatprep.subr.mxu0 0.0
    %153 = vmatpush2.msra.mxu0 0.0
    %154 = vmatprep.subr.mxu0 0.0
    %155 = vmatpush2.msra.mxu0 0.0
    %156 = vmatprep.subr.mxu0 0.0
    %157 = vmatpush2.msra.mxu0 0.0
    %158 = vmatprep.subr.mxu0 0.0
    %159 = vmatpush2.msra.mxu0 0.0
    %160 = vmatprep.subr.mxu0 0.0
    %161 = vmatpush2.msra.mxu0 0.0
    %162 = vmatprep.subr.mxu0 0.0
    %163 = vmatpush2.msra.mxu0 0.0
    %164 = vmatprep.subr.mxu0 0.0
    %165 = vmatpush2.msra.mxu0 0.0
    %166 = vmatprep.subr.mxu0 0.0
    %167 = vmatpush2.msra.mxu0 0.0
    %168 = vmatprep.subr.mxu0 0.0
    %169 = vmatpush2.msra.mxu0 0.0
    %170 = vmatprep.subr.mxu0 0.0
    %171 = vmatpush2.msra.mxu0 0.0
    %172 = vmatprep.mubr.f32.mxu0 0.0
    %173 = vmatmul.mubr.f32.gmra.mxu0 %v103
    %v174 = vpop.f32.mrf.mxu0
    %v175 = vadd.f32 %v99, %v174
    %v176 = vpop.f32.mrf.mxu0
    %177 = vmatprep.mubr.f32.mxu0 0.0
    %178 = vmatmul.mubr.f32.gmra.mxu0 %v106
    %v179 = vpop.f32.mrf.mxu0
    %v180 = vadd.f32 %v99, %v179
    %v181 = vpop.f32.mrf.mxu0
    %182 = vdwg.mxu0
    %v183 = vmul.f32 %v175, %v81
    %v184 = vmul.f32 %v175, %v82
    %v185 = vmul.f32 %v175, %v83
    %v186 = vmul.f32 %v175, %v84
    %v187 = vmul.f32 %v180, %v85
    %v188 = vmul.f32 %v180, %v86
    %v189 = vmul.f32 %v180, %v87
    %v190 = vmul.f32 %v180, %v88
    %v191 = vld [vmem:[%s4] sm:$0xff]
    %v192 = vld [vmem:[%s4 + $0x8] sm:$0xff]
    %v193 = vld [vmem:[%s4 + $0x10] sm:$0xff]
    %v194 = vld [vmem:[%s4 + $0x18] sm:$0xff]
    %v195 = vld [vmem:[%s4 + $0x20] sm:$0xff]
    %v196 = vld [vmem:[%s4 + $0x28] sm:$0xff]
    %v197 = vld [vmem:[%s4 + $0x30] sm:$0xff]
    %v198 = vld [vmem:[%s4 + $0x38] sm:$0xff]
    %v199 = vld [vmem:[%s4 + $0x40] sm:$0xff]
    %v200 = vld [vmem:[%s4 + $0x48] sm:$0xff]
    %v201 = vld [vmem:[%s4 + $0x50] sm:$0xff]
    %v202 = vld [vmem:[%s4 + $0x58] sm:$0xff]
    %vm203 = vcmask 785408
    %v205 = vsel %vm203, %v183, 0
    %v208 = vsel %vm203, %v184, 0
    %v211 = vsel %vm203, %v185, 0
    %v214 = vsel %vm203, %v186, 0
    %v217 = vsel %vm203, %v187, 0
    %v220 = vsel %vm203, %v188, 0
    %v223 = vsel %vm203, %v189, 0
    %v226 = vsel %vm203, %v190, 0
    %228 = vmatprep.subr.mxu0 0.0
    %229 = vmatpush1.msra.mxu0 0.0
    %230 = vmatprep.subr.mxu0 0.0
    %231 = vmatpush1.msra.mxu0 0.0
    %232 = vmatprep.subr.mxu0 0.0
    %233 = vmatpush1.msra.mxu0 0.0
    %234 = vmatprep.subr.mxu0 0.0
    %235 = vmatpush1.msra.mxu0 0.0
    %236 = vmatprep.subr.mxu0 0.0
    %237 = vmatpush1.msra.mxu0 %v202
    %238 = vmatprep.subr.mxu0 0.0
    %239 = vmatpush1.msra.mxu0 %v201
    %240 = vmatprep.subr.mxu0 0.0
    %241 = vmatpush1.msra.mxu0 %v200
    %242 = vmatprep.subr.mxu0 0.0
    %243 = vmatpush1.msra.mxu0 %v199
    %244 = vmatprep.subr.mxu0 0.0
    %245 = vmatpush1.msra.mxu0 %v198
    %246 = vmatprep.subr.mxu0 0.0
    %247 = vmatpush1.msra.mxu0 %v197
    %248 = vmatprep.subr.mxu0 0.0
    %249 = vmatpush1.msra.mxu0 %v196
    %250 = vmatprep.subr.mxu0 0.0
    %251 = vmatpush1.msra.mxu0 %v195
    %252 = vmatprep.subr.mxu0 0.0
    %253 = vmatpush1.msra.mxu0 %v194
    %254 = vmatprep.subr.mxu0 0.0
    %255 = vmatpush1.msra.mxu0 %v193
    %256 = vmatprep.subr.mxu0 0.0
    %257 = vmatpush1.msra.mxu0 %v192
    %258 = vmatprep.subr.mxu0 0.0
    %259 = vmatpush1.msra.mxu0 %v191
    %260 = vmatprep.subr.mxu0 0.0
    %261 = vmatpush2.msra.mxu0 0.0
    %262 = vmatprep.subr.mxu0 0.0
    %263 = vmatpush2.msra.mxu0 0.0
    %264 = vmatprep.subr.mxu0 0.0
    %265 = vmatpush2.msra.mxu0 0.0
    %266 = vmatprep.subr.mxu0 0.0
    %267 = vmatpush2.msra.mxu0 0.0
    %268 = vmatprep.subr.mxu0 0.0
    %269 = vmatpush2.msra.mxu0 0.0
    %270 = vmatprep.subr.mxu0 0.0
    %271 = vmatpush2.msra.mxu0 0.0
    %272 = vmatprep.subr.mxu0 0.0
    %273 = vmatpush2.msra.mxu0 0.0
    %274 = vmatprep.subr.mxu0 0.0
    %275 = vmatpush2.msra.mxu0 0.0
    %276 = vmatprep.subr.mxu0 0.0
    %277 = vmatpush2.msra.mxu0 0.0
    %278 = vmatprep.subr.mxu0 0.0
    %279 = vmatpush2.msra.mxu0 0.0
    %280 = vmatprep.subr.mxu0 0.0
    %281 = vmatpush2.msra.mxu0 0.0
    %282 = vmatprep.subr.mxu0 0.0
    %283 = vmatpush2.msra.mxu0 0.0
    %284 = vmatprep.subr.mxu0 0.0
    %285 = vmatpush2.msra.mxu0 0.0
    %286 = vmatprep.subr.mxu0 0.0
    %287 = vmatpush2.msra.mxu0 0.0
    %288 = vmatprep.subr.mxu0 0.0
    %289 = vmatpush2.msra.mxu0 0.0
    %290 = vmatprep.subr.mxu0 0.0
    %291 = vmatpush2.msra.mxu0 0.0
    %292 = vmatprep.mubr.f32.mxu0 0.0
    %293 = vmatmul.mubr.f32.gmra.mxu0 %v205
    %v294 = vpop.f32.mrf.mxu0
    %v295 = vadd.f32 0.0, %v294
    %v296 = vpop.f32.mrf.mxu0
    %297 = vmatprep.mubr.f32.mxu0 0.0
    %298 = vmatmul.mubr.f32.gmra.mxu0 %v208
    %v299 = vpop.f32.mrf.mxu0
    %v300 = vadd.f32 0.0, %v299
    %v301 = vpop.f32.mrf.mxu0
    %302 = vmatprep.mubr.f32.mxu0 0.0
    %303 = vmatmul.mubr.f32.gmra.mxu0 %v211
    %v304 = vpop.f32.mrf.mxu0
    %v305 = vadd.f32 0.0, %v304
    %v306 = vpop.f32.mrf.mxu0
    %307 = vmatprep.mubr.f32.mxu0 0.0
    %308 = vmatmul.mubr.f32.gmra.mxu0 %v214
    %v309 = vpop.f32.mrf.mxu0
    %v310 = vadd.f32 0.0, %v309
    %v311 = vpop.f32.mrf.mxu0
    %312 = vmatprep.mubr.f32.mxu0 0.0
    %313 = vmatmul.mubr.f32.gmra.mxu0 %v217
    %v314 = vpop.f32.mrf.mxu0
    %v315 = vadd.f32 0.0, %v314
    %v316 = vpop.f32.mrf.mxu0
    %317 = vmatprep.mubr.f32.mxu0 0.0
    %318 = vmatmul.mubr.f32.gmra.mxu0 %v220
    %v319 = vpop.f32.mrf.mxu0
    %v320 = vadd.f32 0.0, %v319
    %v321 = vpop.f32.mrf.mxu0
    %322 = vmatprep.mubr.f32.mxu0 0.0
    %323 = vmatmul.mubr.f32.gmra.mxu0 %v223
    %v324 = vpop.f32.mrf.mxu0
    %v325 = vadd.f32 0.0, %v324
    %v326 = vpop.f32.mrf.mxu0
    %327 = vmatprep.mubr.f32.mxu0 0.0
    %328 = vmatmul.mubr.f32.gmra.mxu0 %v226
    %v329 = vpop.f32.mrf.mxu0
    %v330 = vadd.f32 0.0, %v329
    %v331 = vpop.f32.mrf.mxu0
    %332 = vdwg.mxu0
    %s333 = scalar_lea.vmem %s4, 96
    %v334 = vld [vmem:[%s333] sm:$0xff]
    %v335 = vld [vmem:[%s333 + $0x8] sm:$0xff]
    %v336 = vld [vmem:[%s333 + $0x10] sm:$0xff]
    %v337 = vld [vmem:[%s333 + $0x18] sm:$0xff]
    %v338 = vld [vmem:[%s333 + $0x20] sm:$0xff]
    %v339 = vld [vmem:[%s333 + $0x28] sm:$0xff]
    %v340 = vld [vmem:[%s333 + $0x30] sm:$0xff]
    %v341 = vld [vmem:[%s333 + $0x38] sm:$0xff]
    %v342 = vld [vmem:[%s333 + $0x40] sm:$0xff]
    %v343 = vld [vmem:[%s333 + $0x48] sm:$0xff]
    %v344 = vld [vmem:[%s333 + $0x50] sm:$0xff]
    %v345 = vld [vmem:[%s333 + $0x58] sm:$0xff]
    %346 = vmatprep.subr.mxu0 0.0
    %347 = vmatpush1.msra.mxu0 0.0
    %348 = vmatprep.subr.mxu0 0.0
    %349 = vmatpush1.msra.mxu0 0.0
    %350 = vmatprep.subr.mxu0 0.0
    %351 = vmatpush1.msra.mxu0 0.0
    %352 = vmatprep.subr.mxu0 0.0
    %353 = vmatpush1.msra.mxu0 0.0
    %354 = vmatprep.subr.mxu0 0.0
    %355 = vmatpush1.msra.mxu0 %v345
    %356 = vmatprep.subr.mxu0 0.0
    %357 = vmatpush1.msra.mxu0 %v344
    %358 = vmatprep.subr.mxu0 0.0
    %359 = vmatpush1.msra.mxu0 %v343
    %360 = vmatprep.subr.mxu0 0.0
    %361 = vmatpush1.msra.mxu0 %v342
    %362 = vmatprep.subr.mxu0 0.0
    %363 = vmatpush1.msra.mxu0 %v341
    %364 = vmatprep.subr.mxu0 0.0
    %365 = vmatpush1.msra.mxu0 %v340
    %366 = vmatprep.subr.mxu0 0.0
    %367 = vmatpush1.msra.mxu0 %v339
    %368 = vmatprep.subr.mxu0 0.0
    %369 = vmatpush1.msra.mxu0 %v338
    %370 = vmatprep.subr.mxu0 0.0
    %371 = vmatpush1.msra.mxu0 %v337
    %372 = vmatprep.subr.mxu0 0.0
    %373 = vmatpush1.msra.mxu0 %v336
    %374 = vmatprep.subr.mxu0 0.0
    %375 = vmatpush1.msra.mxu0 %v335
    %376 = vmatprep.subr.mxu0 0.0
    %377 = vmatpush1.msra.mxu0 %v334
    %378 = vmatprep.subr.mxu0 0.0
    %379 = vmatpush2.msra.mxu0 0.0
    %380 = vmatprep.subr.mxu0 0.0
    %381 = vmatpush2.msra.mxu0 0.0
    %382 = vmatprep.subr.mxu0 0.0
    %383 = vmatpush2.msra.mxu0 0.0
    %384 = vmatprep.subr.mxu0 0.0
    %385 = vmatpush2.msra.mxu0 0.0
    %386 = vmatprep.subr.mxu0 0.0
    %387 = vmatpush2.msra.mxu0 0.0
    %388 = vmatprep.subr.mxu0 0.0
    %389 = vmatpush2.msra.mxu0 0.0
    %390 = vmatprep.subr.mxu0 0.0
    %391 = vmatpush2.msra.mxu0 0.0
    %392 = vmatprep.subr.mxu0 0.0
    %393 = vmatpush2.msra.mxu0 0.0
    %394 = vmatprep.subr.mxu0 0.0
    %395 = vmatpush2.msra.mxu0 0.0
    %396 = vmatprep.subr.mxu0 0.0
    %397 = vmatpush2.msra.mxu0 0.0
    %398 = vmatprep.subr.mxu0 0.0
    %399 = vmatpush2.msra.mxu0 0.0
    %400 = vmatprep.subr.mxu0 0.0
    %401 = vmatpush2.msra.mxu0 0.0
    %402 = vmatprep.subr.mxu0 0.0
    %403 = vmatpush2.msra.mxu0 0.0
    %404 = vmatprep.subr.mxu0 0.0
    %405 = vmatpush2.msra.mxu0 0.0
    %406 = vmatprep.subr.mxu0 0.0
    %407 = vmatpush2.msra.mxu0 0.0
    %408 = vmatprep.subr.mxu0 0.0
    %409 = vmatpush2.msra.mxu0 0.0
    %410 = vmatprep.mubr.f32.mxu0 0.0
    %411 = vmatmul.mubr.f32.gmra.mxu0 %v205
    %v412 = vpop.f32.mrf.mxu0
    %v413 = vadd.f32 0.0, %v412
    %v414 = vpop.f32.mrf.mxu0
    %415 = vmatprep.mubr.f32.mxu0 0.0
    %416 = vmatmul.mubr.f32.gmra.mxu0 %v208
    %v417 = vpop.f32.mrf.mxu0
    %v418 = vadd.f32 0.0, %v417
    %v419 = vpop.f32.mrf.mxu0
    %420 = vmatprep.mubr.f32.mxu0 0.0
    %421 = vmatmul.mubr.f32.gmra.mxu0 %v211
    %v422 = vpop.f32.mrf.mxu0
    %v423 = vadd.f32 0.0, %v422
    %v424 = vpop.f32.mrf.mxu0
    %425 = vmatprep.mubr.f32.mxu0 0.0
    %426 = vmatmul.mubr.f32.gmra.mxu0 %v214
    %v427 = vpop.f32.mrf.mxu0
    %v428 = vadd.f32 0.0, %v427
    %v429 = vpop.f32.mrf.mxu0
    %430 = vmatprep.mubr.f32.mxu0 0.0
    %431 = vmatmul.mubr.f32.gmra.mxu0 %v217
    %v432 = vpop.f32.mrf.mxu0
    %v433 = vadd.f32 0.0, %v432
    %v434 = vpop.f32.mrf.mxu0
    %435 = vmatprep.mubr.f32.mxu0 0.0
    %436 = vmatmul.mubr.f32.gmra.mxu0 %v220
    %v437 = vpop.f32.mrf.mxu0
    %v438 = vadd.f32 0.0, %v437
    %v439 = vpop.f32.mrf.mxu0
    %440 = vmatprep.mubr.f32.mxu0 0.0
    %441 = vmatmul.mubr.f32.gmra.mxu0 %v223
    %v442 = vpop.f32.mrf.mxu0
    %v443 = vadd.f32 0.0, %v442
    %v444 = vpop.f32.mrf.mxu0
    %445 = vmatprep.mubr.f32.mxu0 0.0
    %446 = vmatmul.mubr.f32.gmra.mxu0 %v226
    %v447 = vpop.f32.mrf.mxu0
    %v448 = vadd.f32 0.0, %v447
    %v449 = vpop.f32.mrf.mxu0
    %450 = vdwg.mxu0
    %s451 = scalar_lea.vmem %s4, 192
    %v452 = vld [vmem:[%s451] sm:$0xff]
    %v453 = vld [vmem:[%s451 + $0x8] sm:$0xff]
    %v454 = vld [vmem:[%s451 + $0x10] sm:$0xff]
    %v455 = vld [vmem:[%s451 + $0x18] sm:$0xff]
    %v456 = vld [vmem:[%s451 + $0x20] sm:$0xff]
    %v457 = vld [vmem:[%s451 + $0x28] sm:$0xff]
    %v458 = vld [vmem:[%s451 + $0x30] sm:$0xff]
    %v459 = vld [vmem:[%s451 + $0x38] sm:$0xff]
    %v460 = vld [vmem:[%s451 + $0x40] sm:$0xff]
    %v461 = vld [vmem:[%s451 + $0x48] sm:$0xff]
    %v462 = vld [vmem:[%s451 + $0x50] sm:$0xff]
    %v463 = vld [vmem:[%s451 + $0x58] sm:$0xff]
    %464 = vmatprep.subr.mxu0 0.0
    %465 = vmatpush1.msra.mxu0 0.0
    %466 = vmatprep.subr.mxu0 0.0
    %467 = vmatpush1.msra.mxu0 0.0
    %468 = vmatprep.subr.mxu0 0.0
    %469 = vmatpush1.msra.mxu0 0.0
    %470 = vmatprep.subr.mxu0 0.0
    %471 = vmatpush1.msra.mxu0 0.0
    %472 = vmatprep.subr.mxu0 0.0
    %473 = vmatpush1.msra.mxu0 %v463
    %474 = vmatprep.subr.mxu0 0.0
    %475 = vmatpush1.msra.mxu0 %v462
    %476 = vmatprep.subr.mxu0 0.0
    %477 = vmatpush1.msra.mxu0 %v461
    %478 = vmatprep.subr.mxu0 0.0
    %479 = vmatpush1.msra.mxu0 %v460
    %480 = vmatprep.subr.mxu0 0.0
    %481 = vmatpush1.msra.mxu0 %v459
    %482 = vmatprep.subr.mxu0 0.0
    %483 = vmatpush1.msra.mxu0 %v458
    %484 = vmatprep.subr.mxu0 0.0
    %485 = vmatpush1.msra.mxu0 %v457
    %486 = vmatprep.subr.mxu0 0.0
    %487 = vmatpush1.msra.mxu0 %v456
    %488 = vmatprep.subr.mxu0 0.0
    %489 = vmatpush1.msra.mxu0 %v455
    %490 = vmatprep.subr.mxu0 0.0
    %491 = vmatpush1.msra.mxu0 %v454
    %492 = vmatprep.subr.mxu0 0.0
    %493 = vmatpush1.msra.mxu0 %v453
    %494 = vmatprep.subr.mxu0 0.0
    %495 = vmatpush1.msra.mxu0 %v452
    %496 = vmatprep.subr.mxu0 0.0
    %497 = vmatpush2.msra.mxu0 0.0
    %498 = vmatprep.subr.mxu0 0.0
    %499 = vmatpush2.msra.mxu0 0.0
    %500 = vmatprep.subr.mxu0 0.0
    %501 = vmatpush2.msra.mxu0 0.0
    %502 = vmatprep.subr.mxu0 0.0
    %503 = vmatpush2.msra.mxu0 0.0
    %504 = vmatprep.subr.mxu0 0.0
    %505 = vmatpush2.msra.mxu0 0.0
    %506 = vmatprep.subr.mxu0 0.0
    %507 = vmatpush2.msra.mxu0 0.0
    %508 = vmatprep.subr.mxu0 0.0
    %509 = vmatpush2.msra.mxu0 0.0
    %510 = vmatprep.subr.mxu0 0.0
    %511 = vmatpush2.msra.mxu0 0.0
    %512 = vmatprep.subr.mxu0 0.0
    %513 = vmatpush2.msra.mxu0 0.0
    %514 = vmatprep.subr.mxu0 0.0
    %515 = vmatpush2.msra.mxu0 0.0
    %516 = vmatprep.subr.mxu0 0.0
    %517 = vmatpush2.msra.mxu0 0.0
    %518 = vmatprep.subr.mxu0 0.0
    %519 = vmatpush2.msra.mxu0 0.0
    %520 = vmatprep.subr.mxu0 0.0
    %521 = vmatpush2.msra.mxu0 0.0
    %522 = vmatprep.subr.mxu0 0.0
    %523 = vmatpush2.msra.mxu0 0.0
    %524 = vmatprep.subr.mxu0 0.0
    %525 = vmatpush2.msra.mxu0 0.0
    %526 = vmatprep.subr.mxu0 0.0
    %527 = vmatpush2.msra.mxu0 0.0
    %528 = vmatprep.mubr.f32.mxu0 0.0
    %529 = vmatmul.mubr.f32.gmra.mxu0 %v205
    %v530 = vpop.f32.mrf.mxu0
    %v531 = vadd.f32 0.0, %v530
    %v532 = vpop.f32.mrf.mxu0
    %533 = vmatprep.mubr.f32.mxu0 0.0
    %534 = vmatmul.mubr.f32.gmra.mxu0 %v208
    %v535 = vpop.f32.mrf.mxu0
    %v536 = vadd.f32 0.0, %v535
    %v537 = vpop.f32.mrf.mxu0
    %538 = vmatprep.mubr.f32.mxu0 0.0
    %539 = vmatmul.mubr.f32.gmra.mxu0 %v211
    %v540 = vpop.f32.mrf.mxu0
    %v541 = vadd.f32 0.0, %v540
    %v542 = vpop.f32.mrf.mxu0
    %543 = vmatprep.mubr.f32.mxu0 0.0
    %544 = vmatmul.mubr.f32.gmra.mxu0 %v214
    %v545 = vpop.f32.mrf.mxu0
    %v546 = vadd.f32 0.0, %v545
    %v547 = vpop.f32.mrf.mxu0
    %548 = vmatprep.mubr.f32.mxu0 0.0
    %549 = vmatmul.mubr.f32.gmra.mxu0 %v217
    %v550 = vpop.f32.mrf.mxu0
    %v551 = vadd.f32 0.0, %v550
    %v552 = vpop.f32.mrf.mxu0
    %553 = vmatprep.mubr.f32.mxu0 0.0
    %554 = vmatmul.mubr.f32.gmra.mxu0 %v220
    %v555 = vpop.f32.mrf.mxu0
    %v556 = vadd.f32 0.0, %v555
    %v557 = vpop.f32.mrf.mxu0
    %558 = vmatprep.mubr.f32.mxu0 0.0
    %559 = vmatmul.mubr.f32.gmra.mxu0 %v223
    %v560 = vpop.f32.mrf.mxu0
    %v561 = vadd.f32 0.0, %v560
    %v562 = vpop.f32.mrf.mxu0
    %563 = vmatprep.mubr.f32.mxu0 0.0
    %564 = vmatmul.mubr.f32.gmra.mxu0 %v226
    %v565 = vpop.f32.mrf.mxu0
    %v566 = vadd.f32 0.0, %v565
    %v567 = vpop.f32.mrf.mxu0
    %568 = vdwg.mxu0
    %vm569 = vcmask 64512
    %v571 = vsel %vm569, %v295, 0
    %v574 = vsel %vm569, %v300, 0
    %v577 = vsel %vm569, %v305, 0
    %v580 = vsel %vm569, %v310, 0
    %v583 = vsel %vm569, %v315, 0
    %v586 = vsel %vm569, %v320, 0
    %v589 = vsel %vm569, %v325, 0
    %v592 = vsel %vm569, %v330, 0
    %v595 = vsel %vm569, %v413, 0
    %v598 = vsel %vm569, %v418, 0
    %v601 = vsel %vm569, %v423, 0
    %v604 = vsel %vm569, %v428, 0
    %v607 = vsel %vm569, %v433, 0
    %v610 = vsel %vm569, %v438, 0
    %v613 = vsel %vm569, %v443, 0
    %v616 = vsel %vm569, %v448, 0
    %618 = vmatprep.subr.mxu0 0.0
    %619 = vmatpush1.xpose.msra.mxu0 0.0
    %620 = vmatprep.subr.mxu0 0.0
    %621 = vmatpush1.xpose.msra.mxu0 0.0
    %622 = vmatprep.subr.mxu0 0.0
    %623 = vmatpush1.xpose.msra.mxu0 0.0
    %624 = vmatprep.subr.mxu0 0.0
    %625 = vmatpush1.xpose.msra.mxu0 0.0
    %626 = vmatprep.subr.mxu0 0.0
    %627 = vmatpush1.xpose.msra.mxu0 0.0
    %628 = vmatprep.subr.mxu0 0.0
    %629 = vmatpush1.xpose.msra.mxu0 0.0
    %630 = vmatprep.subr.mxu0 0.0
    %631 = vmatpush1.xpose.msra.mxu0 0.0
    %632 = vmatprep.subr.mxu0 0.0
    %633 = vmatpush1.xpose.msra.mxu0 0.0
    %634 = vmatprep.subr.mxu0 0.0
    %635 = vmatpush1.xpose.msra.mxu0 %v616
    %636 = vmatprep.subr.mxu0 0.0
    %637 = vmatpush1.xpose.msra.mxu0 %v613
    %638 = vmatprep.subr.mxu0 0.0
    %639 = vmatpush1.xpose.msra.mxu0 %v610
    %640 = vmatprep.subr.mxu0 0.0
    %641 = vmatpush1.xpose.msra.mxu0 %v607
    %642 = vmatprep.subr.mxu0 0.0
    %643 = vmatpush1.xpose.msra.mxu0 %v604
    %644 = vmatprep.subr.mxu0 0.0
    %645 = vmatpush1.xpose.msra.mxu0 %v601
    %646 = vmatprep.subr.mxu0 0.0
    %647 = vmatpush1.xpose.msra.mxu0 %v598
    %648 = vmatprep.subr.mxu0 0.0
    %649 = vmatpush1.xpose.msra.mxu0 %v595
    %650 = vmatprep.subr.mxu0 0.0
    %651 = vmatpush2.xpose.msra.mxu0 0.0
    %652 = vmatprep.subr.mxu0 0.0
    %653 = vmatpush2.xpose.msra.mxu0 0.0
    %654 = vmatprep.subr.mxu0 0.0
    %655 = vmatpush2.xpose.msra.mxu0 0.0
    %656 = vmatprep.subr.mxu0 0.0
    %657 = vmatpush2.xpose.msra.mxu0 0.0
    %658 = vmatprep.subr.mxu0 0.0
    %659 = vmatpush2.xpose.msra.mxu0 0.0
    %660 = vmatprep.subr.mxu0 0.0
    %661 = vmatpush2.xpose.msra.mxu0 0.0
    %662 = vmatprep.subr.mxu0 0.0
    %663 = vmatpush2.xpose.msra.mxu0 0.0
    %664 = vmatprep.subr.mxu0 0.0
    %665 = vmatpush2.xpose.msra.mxu0 0.0
    %666 = vmatprep.subr.mxu0 0.0
    %667 = vmatpush2.xpose.msra.mxu0 0.0
    %668 = vmatprep.subr.mxu0 0.0
    %669 = vmatpush2.xpose.msra.mxu0 0.0
    %670 = vmatprep.subr.mxu0 0.0
    %671 = vmatpush2.xpose.msra.mxu0 0.0
    %672 = vmatprep.subr.mxu0 0.0
    %673 = vmatpush2.xpose.msra.mxu0 0.0
    %674 = vmatprep.subr.mxu0 0.0
    %675 = vmatpush2.xpose.msra.mxu0 0.0
    %676 = vmatprep.subr.mxu0 0.0
    %677 = vmatpush2.xpose.msra.mxu0 0.0
    %678 = vmatprep.subr.mxu0 0.0
    %679 = vmatpush2.xpose.msra.mxu0 0.0
    %680 = vmatprep.subr.mxu0 0.0
    %681 = vmatpush2.xpose.msra.mxu0 0.0
    %682 = vmatprep.mubr.f32.mxu0 0.0
    %683 = vmatmul.mubr.f32.gmra.mxu0 %v571
    %v684 = vpop.f32.mrf.mxu0
    %v685 = vadd.f32 %v65, %v684
    %v686 = vpop.f32.mrf.mxu0
    %687 = vmatprep.mubr.f32.mxu0 0.0
    %688 = vmatmul.mubr.f32.gmra.mxu0 %v574
    %v689 = vpop.f32.mrf.mxu0
    %v690 = vadd.f32 %v66, %v689
    %v691 = vpop.f32.mrf.mxu0
    %692 = vmatprep.mubr.f32.mxu0 0.0
    %693 = vmatmul.mubr.f32.gmra.mxu0 %v577
    %v694 = vpop.f32.mrf.mxu0
    %v695 = vadd.f32 %v67, %v694
    %v696 = vpop.f32.mrf.mxu0
    %697 = vmatprep.mubr.f32.mxu0 0.0
    %698 = vmatmul.mubr.f32.gmra.mxu0 %v580
    %v699 = vpop.f32.mrf.mxu0
    %v700 = vadd.f32 %v68, %v699
    %v701 = vpop.f32.mrf.mxu0
    %702 = vmatprep.mubr.f32.mxu0 0.0
    %703 = vmatmul.mubr.f32.gmra.mxu0 %v583
    %v704 = vpop.f32.mrf.mxu0
    %v705 = vadd.f32 %v69, %v704
    %v706 = vpop.f32.mrf.mxu0
    %707 = vmatprep.mubr.f32.mxu0 0.0
    %708 = vmatmul.mubr.f32.gmra.mxu0 %v586
    %v709 = vpop.f32.mrf.mxu0
    %v710 = vadd.f32 %v70, %v709
    %v711 = vpop.f32.mrf.mxu0
    %712 = vmatprep.mubr.f32.mxu0 0.0
    %713 = vmatmul.mubr.f32.gmra.mxu0 %v589
    %v714 = vpop.f32.mrf.mxu0
    %v715 = vadd.f32 %v71, %v714
    %v716 = vpop.f32.mrf.mxu0
    %717 = vmatprep.mubr.f32.mxu0 0.0
    %718 = vmatmul.mubr.f32.gmra.mxu0 %v592
    %v719 = vpop.f32.mrf.mxu0
    %v720 = vadd.f32 %v72, %v719
    %v721 = vpop.f32.mrf.mxu0
    %722 = vdwg.mxu0
    %vm723 = vcmask 523264
    %v724 = vsel %vm723, %v685, -inf
    %725 = vmax.xlane.f32.xlu0 %v724
    %v726 = vpop.xlane.xlu0 %725
    %v727 = vsel %vm723, %v690, -inf
    %728 = vmax.xlane.f32.xlu0 %v727
    %v729 = vpop.xlane.xlu0 %728
    %v730 = vsel %vm723, %v695, -inf
    %731 = vmax.xlane.f32.xlu0 %v730
    %v732 = vpop.xlane.xlu0 %731
    %v733 = vsel %vm723, %v700, -inf
    %734 = vmax.xlane.f32.xlu0 %v733
    %v735 = vpop.xlane.xlu0 %734
    %v736 = vsel %vm723, %v705, -inf
    %737 = vmax.xlane.f32.xlu0 %v736
    %v738 = vpop.xlane.xlu0 %737
    %v739 = vsel %vm723, %v710, -inf
    %740 = vmax.xlane.f32.xlu0 %v739
    %v741 = vpop.xlane.xlu0 %740
    %v742 = vsel %vm723, %v715, -inf
    %743 = vmax.xlane.f32.xlu0 %v742
    %v744 = vpop.xlane.xlu0 %743
    %v745 = vsel %vm723, %v720, -inf
    %746 = vmax.xlane.f32.xlu0 %v745
    %v747 = vpop.xlane.xlu0 %746
    %v748 = vsub.f32 %v685, %v726
    %v749 = vsub.f32 %v690, %v729
    %v750 = vsub.f32 %v695, %v732
    %v751 = vsub.f32 %v700, %v735
    %v752 = vsub.f32 %v705, %v738
    %v753 = vsub.f32 %v710, %v741
    %v754 = vsub.f32 %v715, %v744
    %v755 = vsub.f32 %v720, %v747
    %v756 = vmul.f32 %v748, 1.442695
    %v757 = vpow.pop %v756
    %v758 = vmul.f32 %v749, 1.442695
    %v759 = vpow.pop %v758
    %v760 = vmul.f32 %v750, 1.442695
    %v761 = vpow.pop %v760
    %v762 = vmul.f32 %v751, 1.442695
    %v763 = vpow.pop %v762
    %v764 = vmul.f32 %v752, 1.442695
    %v765 = vpow.pop %v764
    %v766 = vmul.f32 %v753, 1.442695
    %v767 = vpow.pop %v766
    %v768 = vmul.f32 %v754, 1.442695
    %v769 = vpow.pop %v768
    %v770 = vmul.f32 %v755, 1.442695
    %v771 = vpow.pop %v770
    %v772 = vsel %vm723, %v757, 0.0
    %773 = vadd.xlane.f32.xlu0 %v772
    %v774 = vpop.xlane.xlu0 %773
    %v775 = vsel %vm723, %v759, 0.0
    %776 = vadd.xlane.f32.xlu0 %v775
    %v777 = vpop.xlane.xlu0 %776
    %v778 = vsel %vm723, %v761, 0.0
    %779 = vadd.xlane.f32.xlu0 %v778
    %v780 = vpop.xlane.xlu0 %779
    %v781 = vsel %vm723, %v763, 0.0
    %782 = vadd.xlane.f32.xlu0 %v781
    %v783 = vpop.xlane.xlu0 %782
    %v784 = vsel %vm723, %v765, 0.0
    %785 = vadd.xlane.f32.xlu0 %v784
    %v786 = vpop.xlane.xlu0 %785
    %v787 = vsel %vm723, %v767, 0.0
    %788 = vadd.xlane.f32.xlu0 %v787
    %v789 = vpop.xlane.xlu0 %788
    %v790 = vsel %vm723, %v769, 0.0
    %791 = vadd.xlane.f32.xlu0 %v790
    %v792 = vpop.xlane.xlu0 %791
    %v793 = vsel %vm723, %v771, 0.0
    %794 = vadd.xlane.f32.xlu0 %v793
    %v795 = vpop.xlane.xlu0 %794
    %v796 = vrcp.pop %v774
    %v797 = vmul.f32 %v757, %v796
    %v798 = vrcp.pop %v777
    %v799 = vmul.f32 %v759, %v798
    %v800 = vrcp.pop %v780
    %v801 = vmul.f32 %v761, %v800
    %v802 = vrcp.pop %v783
    %v803 = vmul.f32 %v763, %v802
    %v804 = vrcp.pop %v786
    %v805 = vmul.f32 %v765, %v804
    %v806 = vrcp.pop %v789
    %v807 = vmul.f32 %v767, %v806
    %v808 = vrcp.pop %v792
    %v809 = vmul.f32 %v769, %v808
    %v810 = vrcp.pop %v795
    %v811 = vmul.f32 %v771, %v810
    %812 = vst.msk [vmem:[#allocation4] sm:$0xff] %vm723, %v797
    %813 = vst.msk [vmem:[#allocation4 + $0x8] sm:$0xff] %vm723, %v799
    %814 = vst.msk [vmem:[#allocation4 + $0x10] sm:$0xff] %vm723, %v801
    %815 = vst.msk [vmem:[#allocation4 + $0x18] sm:$0xff] %vm723, %v803
    %816 = vst.msk [vmem:[#allocation4 + $0x20] sm:$0xff] %vm723, %v805
    %817 = vst.msk [vmem:[#allocation4 + $0x28] sm:$0xff] %vm723, %v807
    %818 = vst.msk [vmem:[#allocation4 + $0x30] sm:$0xff] %vm723, %v809
    %819 = vst.msk [vmem:[#allocation4 + $0x38] sm:$0xff] %vm723, %v811
    %v821 = vsel %vm723, %v797, 0
    %v824 = vsel %vm723, %v799, 0
    %v827 = vsel %vm723, %v801, 0
    %v830 = vsel %vm723, %v803, 0
    %v833 = vsel %vm723, %v805, 0
    %v836 = vsel %vm723, %v807, 0
    %v839 = vsel %vm723, %v809, 0
    %v842 = vsel %vm723, %v811, 0
    %844 = vmatprep.subr.mxu0 0.0
    %845 = vmatpush1.msra.mxu0 0.0
    %846 = vmatprep.subr.mxu0 0.0
    %847 = vmatpush1.msra.mxu0 0.0
    %848 = vmatprep.subr.mxu0 0.0
    %849 = vmatpush1.msra.mxu0 0.0
    %850 = vmatprep.subr.mxu0 0.0
    %851 = vmatpush1.msra.mxu0 0.0
    %852 = vmatprep.subr.mxu0 0.0
    %853 = vmatpush1.msra.mxu0 0.0
    %854 = vmatprep.subr.mxu0 0.0
    %855 = vmatpush1.msra.mxu0 0.0
    %856 = vmatprep.subr.mxu0 0.0
    %857 = vmatpush1.msra.mxu0 0.0
    %858 = vmatprep.subr.mxu0 0.0
    %859 = vmatpush1.msra.mxu0 0.0
    %860 = vmatprep.subr.mxu0 0.0
    %861 = vmatpush1.msra.mxu0 %v566
    %862 = vmatprep.subr.mxu0 0.0
    %863 = vmatpush1.msra.mxu0 %v561
    %864 = vmatprep.subr.mxu0 0.0
    %865 = vmatpush1.msra.mxu0 %v556
    %866 = vmatprep.subr.mxu0 0.0
    %867 = vmatpush1.msra.mxu0 %v551
    %868 = vmatprep.subr.mxu0 0.0
    %869 = vmatpush1.msra.mxu0 %v546
    %870 = vmatprep.subr.mxu0 0.0
    %871 = vmatpush1.msra.mxu0 %v541
    %872 = vmatprep.subr.mxu0 0.0
    %873 = vmatpush1.msra.mxu0 %v536
    %874 = vmatprep.subr.mxu0 0.0
    %875 = vmatpush1.msra.mxu0 %v531
    %876 = vmatprep.subr.mxu0 0.0
    %877 = vmatpush2.msra.mxu0 0.0
    %878 = vmatprep.subr.mxu0 0.0
    %879 = vmatpush2.msra.mxu0 0.0
    %880 = vmatprep.subr.mxu0 0.0
    %881 = vmatpush2.msra.mxu0 0.0
    %882 = vmatprep.subr.mxu0 0.0
    %883 = vmatpush2.msra.mxu0 0.0
    %884 = vmatprep.subr.mxu0 0.0
    %885 = vmatpush2.msra.mxu0 0.0
    %886 = vmatprep.subr.mxu0 0.0
    %887 = vmatpush2.msra.mxu0 0.0
    %888 = vmatprep.subr.mxu0 0.0
    %889 = vmatpush2.msra.mxu0 0.0
    %890 = vmatprep.subr.mxu0 0.0
    %891 = vmatpush2.msra.mxu0 0.0
    %892 = vmatprep.subr.mxu0 0.0
    %893 = vmatpush2.msra.mxu0 0.0
    %894 = vmatprep.subr.mxu0 0.0
    %895 = vmatpush2.msra.mxu0 0.0
    %896 = vmatprep.subr.mxu0 0.0
    %897 = vmatpush2.msra.mxu0 0.0
    %898 = vmatprep.subr.mxu0 0.0
    %899 = vmatpush2.msra.mxu0 0.0
    %900 = vmatprep.subr.mxu0 0.0
    %901 = vmatpush2.msra.mxu0 0.0
    %902 = vmatprep.subr.mxu0 0.0
    %903 = vmatpush2.msra.mxu0 0.0
    %904 = vmatprep.subr.mxu0 0.0
    %905 = vmatpush2.msra.mxu0 0.0
    %906 = vmatprep.subr.mxu0 0.0
    %907 = vmatpush2.msra.mxu0 0.0
    %908 = vmatprep.mubr.f32.mxu0 0.0
    %909 = vmatmul.mubr.f32.gmra.mxu0 %v821
    %v910 = vpop.f32.mrf.mxu0
    %v911 = vadd.f32 0.0, %v910
    %v912 = vpop.f32.mrf.mxu0
    %913 = vmatprep.mubr.f32.mxu0 0.0
    %914 = vmatmul.mubr.f32.gmra.mxu0 %v824
    %v915 = vpop.f32.mrf.mxu0
    %v916 = vadd.f32 0.0, %v915
    %v917 = vpop.f32.mrf.mxu0
    %918 = vmatprep.mubr.f32.mxu0 0.0
    %919 = vmatmul.mubr.f32.gmra.mxu0 %v827
    %v920 = vpop.f32.mrf.mxu0
    %v921 = vadd.f32 0.0, %v920
    %v922 = vpop.f32.mrf.mxu0
    %923 = vmatprep.mubr.f32.mxu0 0.0
    %924 = vmatmul.mubr.f32.gmra.mxu0 %v830
    %v925 = vpop.f32.mrf.mxu0
    %v926 = vadd.f32 0.0, %v925
    %v927 = vpop.f32.mrf.mxu0
    %928 = vmatprep.mubr.f32.mxu0 0.0
    %929 = vmatmul.mubr.f32.gmra.mxu0 %v833
    %v930 = vpop.f32.mrf.mxu0
    %v931 = vadd.f32 0.0, %v930
    %v932 = vpop.f32.mrf.mxu0
    %933 = vmatprep.mubr.f32.mxu0 0.0
    %934 = vmatmul.mubr.f32.gmra.mxu0 %v836
    %v935 = vpop.f32.mrf.mxu0
    %v936 = vadd.f32 0.0, %v935
    %v937 = vpop.f32.mrf.mxu0
    %938 = vmatprep.mubr.f32.mxu0 0.0
    %939 = vmatmul.mubr.f32.gmra.mxu0 %v839
    %v940 = vpop.f32.mrf.mxu0
    %v941 = vadd.f32 0.0, %v940
    %v942 = vpop.f32.mrf.mxu0
    %943 = vmatprep.mubr.f32.mxu0 0.0
    %944 = vmatmul.mubr.f32.gmra.mxu0 %v842
    %v945 = vpop.f32.mrf.mxu0
    %v946 = vadd.f32 0.0, %v945
    %v947 = vpop.f32.mrf.mxu0
    %948 = vdwg.mxu0
    %v950 = vsel %vm569, %v911, 0
    %v953 = vsel %vm569, %v916, 0
    %v956 = vsel %vm569, %v921, 0
    %v959 = vsel %vm569, %v926, 0
    %v962 = vsel %vm569, %v931, 0
    %v965 = vsel %vm569, %v936, 0
    %v968 = vsel %vm569, %v941, 0
    %v971 = vsel %vm569, %v946, 0
    %973 = vmatprep.subr.mxu0 0.0
    %974 = vmatpush1.msra.mxu0 0.0
    %975 = vmatprep.subr.mxu0 0.0
    %976 = vmatpush1.msra.mxu0 0.0
    %977 = vmatprep.subr.mxu0 0.0
    %978 = vmatpush1.msra.mxu0 0.0
    %979 = vmatprep.subr.mxu0 0.0
    %980 = vmatpush1.msra.mxu0 0.0
    %981 = vmatprep.subr.mxu0 0.0
    %982 = vmatpush1.msra.mxu0 0.0
    %983 = vmatprep.subr.mxu0 0.0
    %984 = vmatpush1.msra.mxu0 0.0
    %985 = vmatprep.subr.mxu0 0.0
    %986 = vmatpush1.msra.mxu0 0.0
    %987 = vmatprep.subr.mxu0 0.0
    %988 = vmatpush1.msra.mxu0 0.0
    %989 = vmatprep.subr.mxu0 0.0
    %990 = vmatpush1.msra.mxu0 0.0
    %991 = vmatprep.subr.mxu0 0.0
    %992 = vmatpush1.msra.mxu0 0.0
    %993 = vmatprep.subr.mxu0 0.0
    %994 = vmatpush1.msra.mxu0 0.0
    %995 = vmatprep.subr.mxu0 0.0
    %996 = vmatpush1.msra.mxu0 0.0
    %997 = vmatprep.subr.mxu0 0.0
    %998 = vmatpush1.msra.mxu0 0.0
    %999 = vmatprep.subr.mxu0 0.0
    %1000 = vmatpush1.msra.mxu0 0.0
    %1001 = vmatprep.subr.mxu0 0.0
    %1002 = vmatpush1.msra.mxu0 0.0
    %1003 = vmatprep.subr.mxu0 0.0
    %1004 = vmatpush1.msra.mxu0 %v89
    %1005 = vmatprep.subr.mxu0 0.0
    %1006 = vmatpush2.msra.mxu0 0.0
    %1007 = vmatprep.subr.mxu0 0.0
    %1008 = vmatpush2.msra.mxu0 0.0
    %1009 = vmatprep.subr.mxu0 0.0
    %1010 = vmatpush2.msra.mxu0 0.0
    %1011 = vmatprep.subr.mxu0 0.0
    %1012 = vmatpush2.msra.mxu0 0.0
    %1013 = vmatprep.subr.mxu0 0.0
    %1014 = vmatpush2.msra.mxu0 0.0
    %1015 = vmatprep.subr.mxu0 0.0
    %1016 = vmatpush2.msra.mxu0 0.0
    %1017 = vmatprep.subr.mxu0 0.0
    %1018 = vmatpush2.msra.mxu0 0.0
    %1019 = vmatprep.subr.mxu0 0.0
    %1020 = vmatpush2.msra.mxu0 0.0
    %1021 = vmatprep.subr.mxu0 0.0
    %1022 = vmatpush2.msra.mxu0 0.0
    %1023 = vmatprep.subr.mxu0 0.0
    %1024 = vmatpush2.msra.mxu0 0.0
    %1025 = vmatprep.subr.mxu0 0.0
    %1026 = vmatpush2.msra.mxu0 0.0
    %1027 = vmatprep.subr.mxu0 0.0
    %1028 = vmatpush2.msra.mxu0 0.0
    %1029 = vmatprep.subr.mxu0 0.0
    %1030 = vmatpush2.msra.mxu0 0.0
    %1031 = vmatprep.subr.mxu0 0.0
    %1032 = vmatpush2.msra.mxu0 0.0
    %1033 = vmatprep.subr.mxu0 0.0
    %1034 = vmatpush2.msra.mxu0 0.0
    %1035 = vmatprep.subr.mxu0 0.0
    %1036 = vmatpush2.msra.mxu0 0.0
    %1037 = vmatprep.mubr.f32.mxu0 0.0
    %1038 = vmatmul.mubr.f32.gmra.mxu0 %v950
    %v1039 = vpop.f32.mrf.mxu0
    %v1040 = vadd.f32 0.0, %v1039
    %v1041 = vpop.f32.mrf.mxu0
    %1042 = vmatprep.mubr.f32.mxu0 0.0
    %1043 = vmatmul.mubr.f32.gmra.mxu0 %v953
    %v1044 = vpop.f32.mrf.mxu0
    %v1045 = vadd.f32 0.0, %v1044
    %v1046 = vpop.f32.mrf.mxu0
    %1047 = vmatprep.mubr.f32.mxu0 0.0
    %1048 = vmatmul.mubr.f32.gmra.mxu0 %v956
    %v1049 = vpop.f32.mrf.mxu0
    %v1050 = vadd.f32 0.0, %v1049
    %v1051 = vpop.f32.mrf.mxu0
    %1052 = vmatprep.mubr.f32.mxu0 0.0
    %1053 = vmatmul.mubr.f32.gmra.mxu0 %v959
    %v1054 = vpop.f32.mrf.mxu0
    %v1055 = vadd.f32 0.0, %v1054
    %v1056 = vpop.f32.mrf.mxu0
    %1057 = vmatprep.mubr.f32.mxu0 0.0
    %1058 = vmatmul.mubr.f32.gmra.mxu0 %v962
    %v1059 = vpop.f32.mrf.mxu0
    %v1060 = vadd.f32 0.0, %v1059
    %v1061 = vpop.f32.mrf.mxu0
    %1062 = vmatprep.mubr.f32.mxu0 0.0
    %1063 = vmatmul.mubr.f32.gmra.mxu0 %v965
    %v1064 = vpop.f32.mrf.mxu0
    %v1065 = vadd.f32 0.0, %v1064
    %v1066 = vpop.f32.mrf.mxu0
    %1067 = vmatprep.mubr.f32.mxu0 0.0
    %1068 = vmatmul.mubr.f32.gmra.mxu0 %v968
    %v1069 = vpop.f32.mrf.mxu0
    %v1070 = vadd.f32 0.0, %v1069
    %v1071 = vpop.f32.mrf.mxu0
    %1072 = vmatprep.mubr.f32.mxu0 0.0
    %1073 = vmatmul.mubr.f32.gmra.mxu0 %v971
    %v1074 = vpop.f32.mrf.mxu0
    %v1075 = vadd.f32 0.0, %v1074
    %v1076 = vpop.f32.mrf.mxu0
    %1077 = vdwg.mxu0
    %v1078 = vmul.f32 %v1040, %v73
    %v1079 = vmul.f32 %v1045, %v74
    %v1080 = vmul.f32 %v1050, %v75
    %v1081 = vmul.f32 %v1055, %v76
    %v1082 = vmul.f32 %v1060, %v77
    %v1083 = vmul.f32 %v1065, %v78
    %v1084 = vmul.f32 %v1070, %v79
    %v1085 = vmul.f32 %v1075, %v80
    %v1086 = vadd.f32 %v1078, %v1079
    %v1087 = vadd.f32 %v1086, %v1080
    %v1088 = vadd.f32 %v1087, %v1081
    %v1089 = vadd.f32 %v1082, %v1083
    %v1090 = vadd.f32 %v1089, %v1084
    %v1091 = vadd.f32 %v1090, %v1085
    %v1092 = vld [vmem:[%s8] sm:$0xff]
    %v1093 = vld [vmem:[%s8 + $0x8] sm:$0xff]
    %v1094 = vld [vmem:[%s8 + $0x10] sm:$0xff]
    %v1095 = vld [vmem:[%s8 + $0x18] sm:$0xff]
    %v1097 = vsel %vm101, %v1088, 0
    %v1100 = vsel %vm101, %v1091, 0
    %1102 = vmatprep.subr.mxu0 0.0
    %1103 = vmatpush1.msra.mxu0 0.0
    %1104 = vmatprep.subr.mxu0 0.0
    %1105 = vmatpush1.msra.mxu0 0.0
    %1106 = vmatprep.subr.mxu0 0.0
    %1107 = vmatpush1.msra.mxu0 0.0
    %1108 = vmatprep.subr.mxu0 0.0
    %1109 = vmatpush1.msra.mxu0 0.0
    %1110 = vmatprep.subr.mxu0 0.0
    %1111 = vmatpush1.msra.mxu0 0.0
    %1112 = vmatprep.subr.mxu0 0.0
    %1113 = vmatpush1.msra.mxu0 0.0
    %1114 = vmatprep.subr.mxu0 0.0
    %1115 = vmatpush1.msra.mxu0 0.0
    %1116 = vmatprep.subr.mxu0 0.0
    %1117 = vmatpush1.msra.mxu0 0.0
    %1118 = vmatprep.subr.mxu0 0.0
    %1119 = vmatpush1.msra.mxu0 0.0
    %1120 = vmatprep.subr.mxu0 0.0
    %1121 = vmatpush1.msra.mxu0 0.0
    %1122 = vmatprep.subr.mxu0 0.0
    %1123 = vmatpush1.msra.mxu0 0.0
    %1124 = vmatprep.subr.mxu0 0.0
    %1125 = vmatpush1.msra.mxu0 0.0
    %1126 = vmatprep.subr.mxu0 0.0
    %1127 = vmatpush1.msra.mxu0 %v1095
    %1128 = vmatprep.subr.mxu0 0.0
    %1129 = vmatpush1.msra.mxu0 %v1094
    %1130 = vmatprep.subr.mxu0 0.0
    %1131 = vmatpush1.msra.mxu0 %v1093
    %1132 = vmatprep.subr.mxu0 0.0
    %1133 = vmatpush1.msra.mxu0 %v1092
    %1134 = vmatprep.subr.mxu0 0.0
    %1135 = vmatpush2.msra.mxu0 0.0
    %1136 = vmatprep.subr.mxu0 0.0
    %1137 = vmatpush2.msra.mxu0 0.0
    %1138 = vmatprep.subr.mxu0 0.0
    %1139 = vmatpush2.msra.mxu0 0.0
    %1140 = vmatprep.subr.mxu0 0.0
    %1141 = vmatpush2.msra.mxu0 0.0
    %1142 = vmatprep.subr.mxu0 0.0
    %1143 = vmatpush2.msra.mxu0 0.0
    %1144 = vmatprep.subr.mxu0 0.0
    %1145 = vmatpush2.msra.mxu0 0.0
    %1146 = vmatprep.subr.mxu0 0.0
    %1147 = vmatpush2.msra.mxu0 0.0
    %1148 = vmatprep.subr.mxu0 0.0
    %1149 = vmatpush2.msra.mxu0 0.0
    %1150 = vmatprep.subr.mxu0 0.0
    %1151 = vmatpush2.msra.mxu0 0.0
    %1152 = vmatprep.subr.mxu0 0.0
    %1153 = vmatpush2.msra.mxu0 0.0
    %1154 = vmatprep.subr.mxu0 0.0
    %1155 = vmatpush2.msra.mxu0 0.0
    %1156 = vmatprep.subr.mxu0 0.0
    %1157 = vmatpush2.msra.mxu0 0.0
    %1158 = vmatprep.subr.mxu0 0.0
    %1159 = vmatpush2.msra.mxu0 0.0
    %1160 = vmatprep.subr.mxu0 0.0
    %1161 = vmatpush2.msra.mxu0 0.0
    %1162 = vmatprep.subr.mxu0 0.0
    %1163 = vmatpush2.msra.mxu0 0.0
    %1164 = vmatprep.subr.mxu0 0.0
    %1165 = vmatpush2.msra.mxu0 0.0
    %1166 = vmatprep.mubr.f32.mxu0 0.0
    %1167 = vmatmul.mubr.f32.gmra.mxu0 %v1097
    %v1168 = vpop.f32.mrf.mxu0
    %v1169 = vadd.f32 0.0, %v1168
    %v1170 = vpop.f32.mrf.mxu0
    %1171 = vmatprep.mubr.f32.mxu0 0.0
    %1172 = vmatmul.mubr.f32.gmra.mxu0 %v1100
    %v1173 = vpop.f32.mrf.mxu0
    %v1174 = vadd.f32 0.0, %v1173
    %v1175 = vpop.f32.mrf.mxu0
    %1176 = vdwg.mxu0
    %v1177 = vadd.f32 %v63, %v1169
    %v1178 = vadd.f32 %v64, %v1174
    %v1179 = vld [vmem:[%s9] sm:$0x1]
    %v1181 = vlaneseq
    %v1182 = vshrl.u32 %v1181, 7
    %v1183 = vsub.s32 0, %v1182
    %v1184 = vrot.slane %v1179, %v1183
    %v1186 = vadd.f32 %v1177, %v1184
    %v1187 = vadd.f32 %v1178, %v1184
    %v1188 = vsel %vm101, %v1186, 0.0
    %1189 = vadd.xlane.f32.xlu0 %v1188
    %v1190 = vpop.xlane.xlu0 %1189
    %v1191 = vsel %vm101, %v1187, 0.0
    %1192 = vadd.xlane.f32.xlu0 %v1191
    %v1193 = vpop.xlane.xlu0 %1192
    %v1194 = vrcp.pop 32.0
    %v1195 = vmul.f32 %v1190, %v1194
    %v1196 = vmul.f32 %v1193, %v1194
    %v1197 = vsub.f32 %v1186, %v1195
    %v1198 = vsub.f32 %v1187, %v1196
    %v1199 = vmul.f32 %v1197, %v1197
    %v1200 = vmul.f32 %v1198, %v1198
    %v1201 = vsel %vm101, %v1199, 0.0
    %1202 = vadd.xlane.f32.xlu0 %v1201
    %v1203 = vpop.xlane.xlu0 %1202
    %v1204 = vsel %vm101, %v1200, 0.0
    %1205 = vadd.xlane.f32.xlu0 %v1204
    %v1206 = vpop.xlane.xlu0 %1205
    %v1207 = vmul.f32 %v1203, %v1194
    %v1208 = vmul.f32 %v1206, %v1194
    %v1209 = vadd.f32 %v1207, 1e-05
    %v1210 = vadd.f32 %v1208, 1e-05
    %v1211 = vrsqrt.pop %v1209
    %v1212 = vrsqrt.pop %v1210
    %v1213 = vmul.f32 %v1197, %v1211
    %v1214 = vmul.f32 %v1198, %v1212
    %v1215 = vld [vmem:[%s10] sm:$0x1]
    %v1217 = vlaneseq
    %v1218 = vshrl.u32 %v1217, 7
    %v1219 = vsub.s32 0, %v1218
    %v1220 = vrot.slane %v1215, %v1219
    %v1222 = vmul.f32 %v1213, %v1220
    %v1223 = vmul.f32 %v1214, %v1220
    %v1224 = vld [vmem:[%s11] sm:$0x1]
    %v1226 = vlaneseq
    %v1227 = vshrl.u32 %v1226, 7
    %v1228 = vsub.s32 0, %v1227
    %v1229 = vrot.slane %v1224, %v1228
    %v1231 = vadd.f32 %v1222, %v1229
    %v1232 = vadd.f32 %v1223, %v1229
    %v1233 = vld [vmem:[%s12] sm:$0xff]
    %v1234 = vld [vmem:[%s12 + $0x8] sm:$0xff]
    %v1235 = vld [vmem:[%s12 + $0x10] sm:$0xff]
    %v1236 = vld [vmem:[%s12 + $0x18] sm:$0xff]
    %v1237 = vld [vmem:[%s13] sm:$0x1]
    %v1239 = vlaneseq
    %v1240 = vshrl.u32 %v1239, 7
    %v1241 = vsub.s32 0, %v1240
    %v1242 = vrot.slane %v1237, %v1241
    %v1245 = vsel %vm101, %v1231, 0
    %v1248 = vsel %vm101, %v1232, 0
    %1250 = vmatprep.subr.mxu0 0.0
    %1251 = vmatpush1.msra.mxu0 0.0
    %1252 = vmatprep.subr.mxu0 0.0
    %1253 = vmatpush1.msra.mxu0 0.0
    %1254 = vmatprep.subr.mxu0 0.0
    %1255 = vmatpush1.msra.mxu0 0.0
    %1256 = vmatprep.subr.mxu0 0.0
    %1257 = vmatpush1.msra.mxu0 0.0
    %1258 = vmatprep.subr.mxu0 0.0
    %1259 = vmatpush1.msra.mxu0 0.0
    %1260 = vmatprep.subr.mxu0 0.0
    %1261 = vmatpush1.msra.mxu0 0.0
    %1262 = vmatprep.subr.mxu0 0.0
    %1263 = vmatpush1.msra.mxu0 0.0
    %1264 = vmatprep.subr.mxu0 0.0
    %1265 = vmatpush1.msra.mxu0 0.0
    %1266 = vmatprep.subr.mxu0 0.0
    %1267 = vmatpush1.msra.mxu0 0.0
    %1268 = vmatprep.subr.mxu0 0.0
    %1269 = vmatpush1.msra.mxu0 0.0
    %1270 = vmatprep.subr.mxu0 0.0
    %1271 = vmatpush1.msra.mxu0 0.0
    %1272 = vmatprep.subr.mxu0 0.0
    %1273 = vmatpush1.msra.mxu0 0.0
    %1274 = vmatprep.subr.mxu0 0.0
    %1275 = vmatpush1.msra.mxu0 %v1236
    %1276 = vmatprep.subr.mxu0 0.0
    %1277 = vmatpush1.msra.mxu0 %v1235
    %1278 = vmatprep.subr.mxu0 0.0
    %1279 = vmatpush1.msra.mxu0 %v1234
    %1280 = vmatprep.subr.mxu0 0.0
    %1281 = vmatpush1.msra.mxu0 %v1233
    %1282 = vmatprep.subr.mxu0 0.0
    %1283 = vmatpush2.msra.mxu0 0.0
    %1284 = vmatprep.subr.mxu0 0.0
    %1285 = vmatpush2.msra.mxu0 0.0
    %1286 = vmatprep.subr.mxu0 0.0
    %1287 = vmatpush2.msra.mxu0 0.0
    %1288 = vmatprep.subr.mxu0 0.0
    %1289 = vmatpush2.msra.mxu0 0.0
    %1290 = vmatprep.subr.mxu0 0.0
    %1291 = vmatpush2.msra.mxu0 0.0
    %1292 = vmatprep.subr.mxu0 0.0
    %1293 = vmatpush2.msra.mxu0 0.0
    %1294 = vmatprep.subr.mxu0 0.0
    %1295 = vmatpush2.msra.mxu0 0.0
    %1296 = vmatprep.subr.mxu0 0.0
    %1297 = vmatpush2.msra.mxu0 0.0
    %1298 = vmatprep.subr.mxu0 0.0
    %1299 = vmatpush2.msra.mxu0 0.0
    %1300 = vmatprep.subr.mxu0 0.0
    %1301 = vmatpush2.msra.mxu0 0.0
    %1302 = vmatprep.subr.mxu0 0.0
    %1303 = vmatpush2.msra.mxu0 0.0
    %1304 = vmatprep.subr.mxu0 0.0
    %1305 = vmatpush2.msra.mxu0 0.0
    %1306 = vmatprep.subr.mxu0 0.0
    %1307 = vmatpush2.msra.mxu0 0.0
    %1308 = vmatprep.subr.mxu0 0.0
    %1309 = vmatpush2.msra.mxu0 0.0
    %1310 = vmatprep.subr.mxu0 0.0
    %1311 = vmatpush2.msra.mxu0 0.0
    %1312 = vmatprep.subr.mxu0 0.0
    %1313 = vmatpush2.msra.mxu0 0.0
    %1314 = vmatprep.mubr.f32.mxu0 0.0
    %1315 = vmatmul.mubr.f32.gmra.mxu0 %v1245
    %v1316 = vpop.f32.mrf.mxu0
    %v1317 = vadd.f32 %v1242, %v1316
    %v1318 = vpop.f32.mrf.mxu0
    %1319 = vmatprep.mubr.f32.mxu0 0.0
    %1320 = vmatmul.mubr.f32.gmra.mxu0 %v1248
    %v1321 = vpop.f32.mrf.mxu0
    %v1322 = vadd.f32 %v1242, %v1321
    %v1323 = vpop.f32.mrf.mxu0
    %1324 = vdwg.mxu0
    %v1325 = vmax.f32 %v1317, 0.0
    %v1326 = vmax.f32 %v1322, 0.0
    %v1327 = vld [vmem:[%s14] sm:$0xff]
    %v1328 = vld [vmem:[%s14 + $0x8] sm:$0xff]
    %v1329 = vld [vmem:[%s14 + $0x10] sm:$0xff]
    %v1330 = vld [vmem:[%s14 + $0x18] sm:$0xff]
    %v1331 = vld [vmem:[%s14 + $0x20] sm:$0xff]
    %v1332 = vld [vmem:[%s14 + $0x28] sm:$0xff]
    %v1333 = vld [vmem:[%s14 + $0x30] sm:$0xff]
    %v1334 = vld [vmem:[%s14 + $0x38] sm:$0xff]
    %v1336 = vsel %vm723, %v1325, 0
    %v1339 = vsel %vm723, %v1326, 0
    %1341 = vmatprep.subr.mxu0 0.0
    %1342 = vmatpush1.msra.mxu0 0.0
    %1343 = vmatprep.subr.mxu0 0.0
    %1344 = vmatpush1.msra.mxu0 0.0
    %1345 = vmatprep.subr.mxu0 0.0
    %1346 = vmatpush1.msra.mxu0 0.0
    %1347 = vmatprep.subr.mxu0 0.0
    %1348 = vmatpush1.msra.mxu0 0.0
    %1349 = vmatprep.subr.mxu0 0.0
    %1350 = vmatpush1.msra.mxu0 0.0
    %1351 = vmatprep.subr.mxu0 0.0
    %1352 = vmatpush1.msra.mxu0 0.0
    %1353 = vmatprep.subr.mxu0 0.0
    %1354 = vmatpush1.msra.mxu0 0.0
    %1355 = vmatprep.subr.mxu0 0.0
    %1356 = vmatpush1.msra.mxu0 0.0
    %1357 = vmatprep.subr.mxu0 0.0
    %1358 = vmatpush1.msra.mxu0 %v1334
    %1359 = vmatprep.subr.mxu0 0.0
    %1360 = vmatpush1.msra.mxu0 %v1333
    %1361 = vmatprep.subr.mxu0 0.0
    %1362 = vmatpush1.msra.mxu0 %v1332
    %1363 = vmatprep.subr.mxu0 0.0
    %1364 = vmatpush1.msra.mxu0 %v1331
    %1365 = vmatprep.subr.mxu0 0.0
    %1366 = vmatpush1.msra.mxu0 %v1330
    %1367 = vmatprep.subr.mxu0 0.0
    %1368 = vmatpush1.msra.mxu0 %v1329
    %1369 = vmatprep.subr.mxu0 0.0
    %1370 = vmatpush1.msra.mxu0 %v1328
    %1371 = vmatprep.subr.mxu0 0.0
    %1372 = vmatpush1.msra.mxu0 %v1327
    %1373 = vmatprep.subr.mxu0 0.0
    %1374 = vmatpush2.msra.mxu0 0.0
    %1375 = vmatprep.subr.mxu0 0.0
    %1376 = vmatpush2.msra.mxu0 0.0
    %1377 = vmatprep.subr.mxu0 0.0
    %1378 = vmatpush2.msra.mxu0 0.0
    %1379 = vmatprep.subr.mxu0 0.0
    %1380 = vmatpush2.msra.mxu0 0.0
    %1381 = vmatprep.subr.mxu0 0.0
    %1382 = vmatpush2.msra.mxu0 0.0
    %1383 = vmatprep.subr.mxu0 0.0
    %1384 = vmatpush2.msra.mxu0 0.0
    %1385 = vmatprep.subr.mxu0 0.0
    %1386 = vmatpush2.msra.mxu0 0.0
    %1387 = vmatprep.subr.mxu0 0.0
    %1388 = vmatpush2.msra.mxu0 0.0
    %1389 = vmatprep.subr.mxu0 0.0
    %1390 = vmatpush2.msra.mxu0 0.0
    %1391 = vmatprep.subr.mxu0 0.0
    %1392 = vmatpush2.msra.mxu0 0.0
    %1393 = vmatprep.subr.mxu0 0.0
    %1394 = vmatpush2.msra.mxu0 0.0
    %1395 = vmatprep.subr.mxu0 0.0
    %1396 = vmatpush2.msra.mxu0 0.0
    %1397 = vmatprep.subr.mxu0 0.0
    %1398 = vmatpush2.msra.mxu0 0.0
    %1399 = vmatprep.subr.mxu0 0.0
    %1400 = vmatpush2.msra.mxu0 0.0
    %1401 = vmatprep.subr.mxu0 0.0
    %1402 = vmatpush2.msra.mxu0 0.0
    %1403 = vmatprep.subr.mxu0 0.0
    %1404 = vmatpush2.msra.mxu0 0.0
    %1405 = vmatprep.mubr.f32.mxu0 0.0
    %1406 = vmatmul.mubr.f32.gmra.mxu0 %v1336
    %v1407 = vpop.f32.mrf.mxu0
    %v1408 = vadd.f32 0.0, %v1407
    %v1409 = vpop.f32.mrf.mxu0
    %1410 = vmatprep.mubr.f32.mxu0 0.0
    %1411 = vmatmul.mubr.f32.gmra.mxu0 %v1339
    %v1412 = vpop.f32.mrf.mxu0
    %v1413 = vadd.f32 0.0, %v1412
    %v1414 = vpop.f32.mrf.mxu0
    %1415 = vdwg.mxu0
    %v1416 = vadd.f32 %v1231, %v1408
    %v1417 = vadd.f32 %v1232, %v1413
    %v1418 = vld [vmem:[%s15] sm:$0x1]
    %v1420 = vlaneseq
    %v1421 = vshrl.u32 %v1420, 7
    %v1422 = vsub.s32 0, %v1421
    %v1423 = vrot.slane %v1418, %v1422
    %v1425 = vadd.f32 %v1416, %v1423
    %v1426 = vadd.f32 %v1417, %v1423
    %v1427 = vsel %vm101, %v1425, 0.0
    %1428 = vadd.xlane.f32.xlu0 %v1427
    %v1429 = vpop.xlane.xlu0 %1428
    %v1430 = vsel %vm101, %v1426, 0.0
    %1431 = vadd.xlane.f32.xlu0 %v1430
    %v1432 = vpop.xlane.xlu0 %1431
    %v1433 = vmul.f32 %v1429, %v1194
    %v1434 = vmul.f32 %v1432, %v1194
    %v1435 = vsub.f32 %v1425, %v1433
    %v1436 = vsub.f32 %v1426, %v1434
    %v1437 = vmul.f32 %v1435, %v1435
    %v1438 = vmul.f32 %v1436, %v1436
    %v1439 = vsel %vm101, %v1437, 0.0
    %1440 = vadd.xlane.f32.xlu0 %v1439
    %v1441 = vpop.xlane.xlu0 %1440
    %v1442 = vsel %vm101, %v1438, 0.0
    %1443 = vadd.xlane.f32.xlu0 %v1442
    %v1444 = vpop.xlane.xlu0 %1443
    %v1445 = vmul.f32 %v1441, %v1194
    %v1446 = vmul.f32 %v1444, %v1194
    %v1447 = vadd.f32 %v1445, 1e-05
    %v1448 = vadd.f32 %v1446, 1e-05
    %v1449 = vrsqrt.pop %v1447
    %v1450 = vrsqrt.pop %v1448
    %v1451 = vmul.f32 %v1435, %v1449
    %v1452 = vmul.f32 %v1436, %v1450
    %v1453 = vld [vmem:[%s16] sm:$0x1]
    %v1455 = vlaneseq
    %v1456 = vshrl.u32 %v1455, 7
    %v1457 = vsub.s32 0, %v1456
    %v1458 = vrot.slane %v1453, %v1457
    %v1460 = vmul.f32 %v1451, %v1458
    %v1461 = vmul.f32 %v1452, %v1458
    %v1462 = vld [vmem:[%s17] sm:$0x1]
    %v1464 = vlaneseq
    %v1465 = vshrl.u32 %v1464, 7
    %v1466 = vsub.s32 0, %v1465
    %v1467 = vrot.slane %v1462, %v1466
    %v1469 = vadd.f32 %v1460, %v1467
    %v1470 = vadd.f32 %v1461, %v1467
    %s1471 = scalar_lea.vmem %s6, 32
    %v1472 = vld [vmem:[%s1471] sm:$0xff]
    %v1473 = vld [vmem:[%s1471 + $0x8] sm:$0xff]
    %v1474 = vld [vmem:[%s1471 + $0x10] sm:$0xff]
    %v1475 = vld [vmem:[%s1471 + $0x18] sm:$0xff]
    %s1476 = scalar_lea.vmem %s7, 1
    %v1477 = vld [vmem:[%s1476] sm:$0x1]
    %v1479 = vlaneseq
    %v1480 = vshrl.u32 %v1479, 7
    %v1481 = vsub.s32 0, %v1480
    %v1482 = vrot.slane %v1477, %v1481
    %v1485 = vsel %vm101, %v1469, 0
    %v1488 = vsel %vm101, %v1470, 0
    %1490 = vmatprep.subr.mxu0 0.0
    %1491 = vmatpush1.msra.mxu0 0.0
    %1492 = vmatprep.subr.mxu0 0.0
    %1493 = vmatpush1.msra.mxu0 0.0
    %1494 = vmatprep.subr.mxu0 0.0
    %1495 = vmatpush1.msra.mxu0 0.0
    %1496 = vmatprep.subr.mxu0 0.0
    %1497 = vmatpush1.msra.mxu0 0.0
    %1498 = vmatprep.subr.mxu0 0.0
    %1499 = vmatpush1.msra.mxu0 0.0
    %1500 = vmatprep.subr.mxu0 0.0
    %1501 = vmatpush1.msra.mxu0 0.0
    %1502 = vmatprep.subr.mxu0 0.0
    %1503 = vmatpush1.msra.mxu0 0.0
    %1504 = vmatprep.subr.mxu0 0.0
    %1505 = vmatpush1.msra.mxu0 0.0
    %1506 = vmatprep.subr.mxu0 0.0
    %1507 = vmatpush1.msra.mxu0 0.0
    %1508 = vmatprep.subr.mxu0 0.0
    %1509 = vmatpush1.msra.mxu0 0.0
    %1510 = vmatprep.subr.mxu0 0.0
    %1511 = vmatpush1.msra.mxu0 0.0
    %1512 = vmatprep.subr.mxu0 0.0
    %1513 = vmatpush1.msra.mxu0 0.0
    %1514 = vmatprep.subr.mxu0 0.0
    %1515 = vmatpush1.msra.mxu0 %v1475
    %1516 = vmatprep.subr.mxu0 0.0
    %1517 = vmatpush1.msra.mxu0 %v1474
    %1518 = vmatprep.subr.mxu0 0.0
    %1519 = vmatpush1.msra.mxu0 %v1473
    %1520 = vmatprep.subr.mxu0 0.0
    %1521 = vmatpush1.msra.mxu0 %v1472
    %1522 = vmatprep.subr.mxu0 0.0
    %1523 = vmatpush2.msra.mxu0 0.0
    %1524 = vmatprep.subr.mxu0 0.0
    %1525 = vmatpush2.msra.mxu0 0.0
    %1526 = vmatprep.subr.mxu0 0.0
    %1527 = vmatpush2.msra.mxu0 0.0
    %1528 = vmatprep.subr.mxu0 0.0
    %1529 = vmatpush2.msra.mxu0 0.0
    %1530 = vmatprep.subr.mxu0 0.0
    %1531 = vmatpush2.msra.mxu0 0.0
    %1532 = vmatprep.subr.mxu0 0.0
    %1533 = vmatpush2.msra.mxu0 0.0
    %1534 = vmatprep.subr.mxu0 0.0
    %1535 = vmatpush2.msra.mxu0 0.0
    %1536 = vmatprep.subr.mxu0 0.0
    %1537 = vmatpush2.msra.mxu0 0.0
    %1538 = vmatprep.subr.mxu0 0.0
    %1539 = vmatpush2.msra.mxu0 0.0
    %1540 = vmatprep.subr.mxu0 0.0
    %1541 = vmatpush2.msra.mxu0 0.0
    %1542 = vmatprep.subr.mxu0 0.0
    %1543 = vmatpush2.msra.mxu0 0.0
    %1544 = vmatprep.subr.mxu0 0.0
    %1545 = vmatpush2.msra.mxu0 0.0
    %1546 = vmatprep.subr.mxu0 0.0
    %1547 = vmatpush2.msra.mxu0 0.0
    %1548 = vmatprep.subr.mxu0 0.0
    %1549 = vmatpush2.msra.mxu0 0.0
    %1550 = vmatprep.subr.mxu0 0.0
    %1551 = vmatpush2.msra.mxu0 0.0
    %1552 = vmatprep.subr.mxu0 0.0
    %1553 = vmatpush2.msra.mxu0 0.0
    %1554 = vmatprep.mubr.f32.mxu0 0.0
    %1555 = vmatmul.mubr.f32.gmra.mxu0 %v1485
    %v1556 = vpop.f32.mrf.mxu0
    %v1557 = vadd.f32 %v1482, %v1556
    %v1558 = vpop.f32.mrf.mxu0
    %1559 = vmatprep.mubr.f32.mxu0 0.0
    %1560 = vmatmul.mubr.f32.gmra.mxu0 %v1488
    %v1561 = vpop.f32.mrf.mxu0
    %v1562 = vadd.f32 %v1482, %v1561
    %v1563 = vpop.f32.mrf.mxu0
    %1564 = vdwg.mxu0
    %v1565 = vmul.f32 %v1557, %v81
    %v1566 = vmul.f32 %v1557, %v82
    %v1567 = vmul.f32 %v1557, %v83
    %v1568 = vmul.f32 %v1557, %v84
    %v1569 = vmul.f32 %v1562, %v85
    %v1570 = vmul.f32 %v1562, %v86
    %v1571 = vmul.f32 %v1562, %v87
    %v1572 = vmul.f32 %v1562, %v88
    %v1573 = vld [vmem:[%s4] sm:$0xff]
    %v1574 = vld [vmem:[%s4 + $0x8] sm:$0xff]
    %v1575 = vld [vmem:[%s4 + $0x10] sm:$0xff]
    %v1576 = vld [vmem:[%s4 + $0x18] sm:$0xff]
    %v1577 = vld [vmem:[%s4 + $0x20] sm:$0xff]
    %v1578 = vld [vmem:[%s4 + $0x28] sm:$0xff]
    %v1579 = vld [vmem:[%s4 + $0x30] sm:$0xff]
    %v1580 = vld [vmem:[%s4 + $0x38] sm:$0xff]
    %v1581 = vld [vmem:[%s4 + $0x40] sm:$0xff]
    %v1582 = vld [vmem:[%s4 + $0x48] sm:$0xff]
    %v1583 = vld [vmem:[%s4 + $0x50] sm:$0xff]
    %v1584 = vld [vmem:[%s4 + $0x58] sm:$0xff]
    %v1586 = vsel %vm203, %v1565, 0
    %v1589 = vsel %vm203, %v1566, 0
    %v1592 = vsel %vm203, %v1567, 0
    %v1595 = vsel %vm203, %v1568, 0
    %v1598 = vsel %vm203, %v1569, 0
    %v1601 = vsel %vm203, %v1570, 0
    %v1604 = vsel %vm203, %v1571, 0
    %v1607 = vsel %vm203, %v1572, 0
    %1609 = vmatprep.subr.mxu0 0.0
    %1610 = vmatpush1.msra.mxu0 0.0
    %1611 = vmatprep.subr.mxu0 0.0
    %1612 = vmatpush1.msra.mxu0 0.0
    %1613 = vmatprep.subr.mxu0 0.0
    %1614 = vmatpush1.msra.mxu0 0.0
    %1615 = vmatprep.subr.mxu0 0.0
    %1616 = vmatpush1.msra.mxu0 0.0
    %1617 = vmatprep.subr.mxu0 0.0
    %1618 = vmatpush1.msra.mxu0 %v1584
    %1619 = vmatprep.subr.mxu0 0.0
    %1620 = vmatpush1.msra.mxu0 %v1583
    %1621 = vmatprep.subr.mxu0 0.0
    %1622 = vmatpush1.msra.mxu0 %v1582
    %1623 = vmatprep.subr.mxu0 0.0
    %1624 = vmatpush1.msra.mxu0 %v1581
    %1625 = vmatprep.subr.mxu0 0.0
    %1626 = vmatpush1.msra.mxu0 %v1580
    %1627 = vmatprep.subr.mxu0 0.0
    %1628 = vmatpush1.msra.mxu0 %v1579
    %1629 = vmatprep.subr.mxu0 0.0
    %1630 = vmatpush1.msra.mxu0 %v1578
    %1631 = vmatprep.subr.mxu0 0.0
    %1632 = vmatpush1.msra.mxu0 %v1577
    %1633 = vmatprep.subr.mxu0 0.0
    %1634 = vmatpush1.msra.mxu0 %v1576
    %1635 = vmatprep.subr.mxu0 0.0
    %1636 = vmatpush1.msra.mxu0 %v1575
    %1637 = vmatprep.subr.mxu0 0.0
    %1638 = vmatpush1.msra.mxu0 %v1574
    %1639 = vmatprep.subr.mxu0 0.0
    %1640 = vmatpush1.msra.mxu0 %v1573
    %1641 = vmatprep.subr.mxu0 0.0
    %1642 = vmatpush2.msra.mxu0 0.0
    %1643 = vmatprep.subr.mxu0 0.0
    %1644 = vmatpush2.msra.mxu0 0.0
    %1645 = vmatprep.subr.mxu0 0.0
    %1646 = vmatpush2.msra.mxu0 0.0
    %1647 = vmatprep.subr.mxu0 0.0
    %1648 = vmatpush2.msra.mxu0 0.0
    %1649 = vmatprep.subr.mxu0 0.0
    %1650 = vmatpush2.msra.mxu0 0.0
    %1651 = vmatprep.subr.mxu0 0.0
    %1652 = vmatpush2.msra.mxu0 0.0
    %1653 = vmatprep.subr.mxu0 0.0
    %1654 = vmatpush2.msra.mxu0 0.0
    %1655 = vmatprep.subr.mxu0 0.0
    %1656 = vmatpush2.msra.mxu0 0.0
    %1657 = vmatprep.subr.mxu0 0.0
    %1658 = vmatpush2.msra.mxu0 0.0
    %1659 = vmatprep.subr.mxu0 0.0
    %1660 = vmatpush2.msra.mxu0 0.0
    %1661 = vmatprep.subr.mxu0 0.0
    %1662 = vmatpush2.msra.mxu0 0.0
    %1663 = vmatprep.subr.mxu0 0.0
    %1664 = vmatpush2.msra.mxu0 0.0
    %1665 = vmatprep.subr.mxu0 0.0
    %1666 = vmatpush2.msra.mxu0 0.0
    %1667 = vmatprep.subr.mxu0 0.0
    %1668 = vmatpush2.msra.mxu0 0.0
    %1669 = vmatprep.subr.mxu0 0.0
    %1670 = vmatpush2.msra.mxu0 0.0
    %1671 = vmatprep.subr.mxu0 0.0
    %1672 = vmatpush2.msra.mxu0 0.0
    %1673 = vmatprep.mubr.f32.mxu0 0.0
    %1674 = vmatmul.mubr.f32.gmra.mxu0 %v1586
    %v1675 = vpop.f32.mrf.mxu0
    %v1676 = vadd.f32 0.0, %v1675
    %v1677 = vpop.f32.mrf.mxu0
    %1678 = vmatprep.mubr.f32.mxu0 0.0
    %1679 = vmatmul.mubr.f32.gmra.mxu0 %v1589
    %v1680 = vpop.f32.mrf.mxu0
    %v1681 = vadd.f32 0.0, %v1680
    %v1682 = vpop.f32.mrf.mxu0
    %1683 = vmatprep.mubr.f32.mxu0 0.0
    %1684 = vmatmul.mubr.f32.gmra.mxu0 %v1592
    %v1685 = vpop.f32.mrf.mxu0
    %v1686 = vadd.f32 0.0, %v1685
    %v1687 = vpop.f32.mrf.mxu0
    %1688 = vmatprep.mubr.f32.mxu0 0.0
    %1689 = vmatmul.mubr.f32.gmra.mxu0 %v1595
    %v1690 = vpop.f32.mrf.mxu0
    %v1691 = vadd.f32 0.0, %v1690
    %v1692 = vpop.f32.mrf.mxu0
    %1693 = vmatprep.mubr.f32.mxu0 0.0
    %1694 = vmatmul.mubr.f32.gmra.mxu0 %v1598
    %v1695 = vpop.f32.mrf.mxu0
    %v1696 = vadd.f32 0.0, %v1695
    %v1697 = vpop.f32.mrf.mxu0
    %1698 = vmatprep.mubr.f32.mxu0 0.0
    %1699 = vmatmul.mubr.f32.gmra.mxu0 %v1601
    %v1700 = vpop.f32.mrf.mxu0
    %v1701 = vadd.f32 0.0, %v1700
    %v1702 = vpop.f32.mrf.mxu0
    %1703 = vmatprep.mubr.f32.mxu0 0.0
    %1704 = vmatmul.mubr.f32.gmra.mxu0 %v1604
    %v1705 = vpop.f32.mrf.mxu0
    %v1706 = vadd.f32 0.0, %v1705
    %v1707 = vpop.f32.mrf.mxu0
    %1708 = vmatprep.mubr.f32.mxu0 0.0
    %1709 = vmatmul.mubr.f32.gmra.mxu0 %v1607
    %v1710 = vpop.f32.mrf.mxu0
    %v1711 = vadd.f32 0.0, %v1710
    %v1712 = vpop.f32.mrf.mxu0
    %1713 = vdwg.mxu0
    %v1714 = vld [vmem:[%s333] sm:$0xff]
    %v1715 = vld [vmem:[%s333 + $0x8] sm:$0xff]
    %v1716 = vld [vmem:[%s333 + $0x10] sm:$0xff]
    %v1717 = vld [vmem:[%s333 + $0x18] sm:$0xff]
    %v1718 = vld [vmem:[%s333 + $0x20] sm:$0xff]
    %v1719 = vld [vmem:[%s333 + $0x28] sm:$0xff]
    %v1720 = vld [vmem:[%s333 + $0x30] sm:$0xff]
    %v1721 = vld [vmem:[%s333 + $0x38] sm:$0xff]
    %v1722 = vld [vmem:[%s333 + $0x40] sm:$0xff]
    %v1723 = vld [vmem:[%s333 + $0x48] sm:$0xff]
    %v1724 = vld [vmem:[%s333 + $0x50] sm:$0xff]
    %v1725 = vld [vmem:[%s333 + $0x58] sm:$0xff]
    %1726 = vmatprep.subr.mxu0 0.0
    %1727 = vmatpush1.msra.mxu0 0.0
    %1728 = vmatprep.subr.mxu0 0.0
    %1729 = vmatpush1.msra.mxu0 0.0
    %1730 = vmatprep.subr.mxu0 0.0
    %1731 = vmatpush1.msra.mxu0 0.0
    %1732 = vmatprep.subr.mxu0 0.0
    %1733 = vmatpush1.msra.mxu0 0.0
    %1734 = vmatprep.subr.mxu0 0.0
    %1735 = vmatpush1.msra.mxu0 %v1725
    %1736 = vmatprep.subr.mxu0 0.0
    %1737 = vmatpush1.msra.mxu0 %v1724
    %1738 = vmatprep.subr.mxu0 0.0
    %1739 = vmatpush1.msra.mxu0 %v1723
    %1740 = vmatprep.subr.mxu0 0.0
    %1741 = vmatpush1.msra.mxu0 %v1722
    %1742 = vmatprep.subr.mxu0 0.0
    %1743 = vmatpush1.msra.mxu0 %v1721
    %1744 = vmatprep.subr.mxu0 0.0
    %1745 = vmatpush1.msra.mxu0 %v1720
    %1746 = vmatprep.subr.mxu0 0.0
    %1747 = vmatpush1.msra.mxu0 %v1719
    %1748 = vmatprep.subr.mxu0 0.0
    %1749 = vmatpush1.msra.mxu0 %v1718
    %1750 = vmatprep.subr.mxu0 0.0
    %1751 = vmatpush1.msra.mxu0 %v1717
    %1752 = vmatprep.subr.mxu0 0.0
    %1753 = vmatpush1.msra.mxu0 %v1716
    %1754 = vmatprep.subr.mxu0 0.0
    %1755 = vmatpush1.msra.mxu0 %v1715
    %1756 = vmatprep.subr.mxu0 0.0
    %1757 = vmatpush1.msra.mxu0 %v1714
    %1758 = vmatprep.subr.mxu0 0.0
    %1759 = vmatpush2.msra.mxu0 0.0
    %1760 = vmatprep.subr.mxu0 0.0
    %1761 = vmatpush2.msra.mxu0 0.0
    %1762 = vmatprep.subr.mxu0 0.0
    %1763 = vmatpush2.msra.mxu0 0.0
    %1764 = vmatprep.subr.mxu0 0.0
    %1765 = vmatpush2.msra.mxu0 0.0
    %1766 = vmatprep.subr.mxu0 0.0
    %1767 = vmatpush2.msra.mxu0 0.0
    %1768 = vmatprep.subr.mxu0 0.0
    %1769 = vmatpush2.msra.mxu0 0.0
    %1770 = vmatprep.subr.mxu0 0.0
    %1771 = vmatpush2.msra.mxu0 0.0
    %1772 = vmatprep.subr.mxu0 0.0
    %1773 = vmatpush2.msra.mxu0 0.0
    %1774 = vmatprep.subr.mxu0 0.0
    %1775 = vmatpush2.msra.mxu0 0.0
    %1776 = vmatprep.subr.mxu0 0.0
    %1777 = vmatpush2.msra.mxu0 0.0
    %1778 = vmatprep.subr.mxu0 0.0
    %1779 = vmatpush2.msra.mxu0 0.0
    %1780 = vmatprep.subr.mxu0 0.0
    %1781 = vmatpush2.msra.mxu0 0.0
    %1782 = vmatprep.subr.mxu0 0.0
    %1783 = vmatpush2.msra.mxu0 0.0
    %1784 = vmatprep.subr.mxu0 0.0
    %1785 = vmatpush2.msra.mxu0 0.0
    %1786 = vmatprep.subr.mxu0 0.0
    %1787 = vmatpush2.msra.mxu0 0.0
    %1788 = vmatprep.subr.mxu0 0.0
    %1789 = vmatpush2.msra.mxu0 0.0
    %1790 = vmatprep.mubr.f32.mxu0 0.0
    %1791 = vmatmul.mubr.f32.gmra.mxu0 %v1586
    %v1792 = vpop.f32.mrf.mxu0
    %v1793 = vadd.f32 0.0, %v1792
    %v1794 = vpop.f32.mrf.mxu0
    %1795 = vmatprep.mubr.f32.mxu0 0.0
    %1796 = vmatmul.mubr.f32.gmra.mxu0 %v1589
    %v1797 = vpop.f32.mrf.mxu0
    %v1798 = vadd.f32 0.0, %v1797
    %v1799 = vpop.f32.mrf.mxu0
    %1800 = vmatprep.mubr.f32.mxu0 0.0
    %1801 = vmatmul.mubr.f32.gmra.mxu0 %v1592
    %v1802 = vpop.f32.mrf.mxu0
    %v1803 = vadd.f32 0.0, %v1802
    %v1804 = vpop.f32.mrf.mxu0
    %1805 = vmatprep.mubr.f32.mxu0 0.0
    %1806 = vmatmul.mubr.f32.gmra.mxu0 %v1595
    %v1807 = vpop.f32.mrf.mxu0
    %v1808 = vadd.f32 0.0, %v1807
    %v1809 = vpop.f32.mrf.mxu0
    %1810 = vmatprep.mubr.f32.mxu0 0.0
    %1811 = vmatmul.mubr.f32.gmra.mxu0 %v1598
    %v1812 = vpop.f32.mrf.mxu0
    %v1813 = vadd.f32 0.0, %v1812
    %v1814 = vpop.f32.mrf.mxu0
    %1815 = vmatprep.mubr.f32.mxu0 0.0
    %1816 = vmatmul.mubr.f32.gmra.mxu0 %v1601
    %v1817 = vpop.f32.mrf.mxu0
    %v1818 = vadd.f32 0.0, %v1817
    %v1819 = vpop.f32.mrf.mxu0
    %1820 = vmatprep.mubr.f32.mxu0 0.0
    %1821 = vmatmul.mubr.f32.gmra.mxu0 %v1604
    %v1822 = vpop.f32.mrf.mxu0
    %v1823 = vadd.f32 0.0, %v1822
    %v1824 = vpop.f32.mrf.mxu0
    %1825 = vmatprep.mubr.f32.mxu0 0.0
    %1826 = vmatmul.mubr.f32.gmra.mxu0 %v1607
    %v1827 = vpop.f32.mrf.mxu0
    %v1828 = vadd.f32 0.0, %v1827
    %v1829 = vpop.f32.mrf.mxu0
    %1830 = vdwg.mxu0
    %v1831 = vld [vmem:[%s451] sm:$0xff]
    %v1832 = vld [vmem:[%s451 + $0x8] sm:$0xff]
    %v1833 = vld [vmem:[%s451 + $0x10] sm:$0xff]
    %v1834 = vld [vmem:[%s451 + $0x18] sm:$0xff]
    %v1835 = vld [vmem:[%s451 + $0x20] sm:$0xff]
    %v1836 = vld [vmem:[%s451 + $0x28] sm:$0xff]
    %v1837 = vld [vmem:[%s451 + $0x30] sm:$0xff]
    %v1838 = vld [vmem:[%s451 + $0x38] sm:$0xff]
    %v1839 = vld [vmem:[%s451 + $0x40] sm:$0xff]
    %v1840 = vld [vmem:[%s451 + $0x48] sm:$0xff]
    %v1841 = vld [vmem:[%s451 + $0x50] sm:$0xff]
    %v1842 = vld [vmem:[%s451 + $0x58] sm:$0xff]
    %1843 = vmatprep.subr.mxu0 0.0
    %1844 = vmatpush1.msra.mxu0 0.0
    %1845 = vmatprep.subr.mxu0 0.0
    %1846 = vmatpush1.msra.mxu0 0.0
    %1847 = vmatprep.subr.mxu0 0.0
    %1848 = vmatpush1.msra.mxu0 0.0
    %1849 = vmatprep.subr.mxu0 0.0
    %1850 = vmatpush1.msra.mxu0 0.0
    %1851 = vmatprep.subr.mxu0 0.0
    %1852 = vmatpush1.msra.mxu0 %v1842
    %1853 = vmatprep.subr.mxu0 0.0
    %1854 = vmatpush1.msra.mxu0 %v1841
    %1855 = vmatprep.subr.mxu0 0.0
    %1856 = vmatpush1.msra.mxu0 %v1840
    %1857 = vmatprep.subr.mxu0 0.0
    %1858 = vmatpush1.msra.mxu0 %v1839
    %1859 = vmatprep.subr.mxu0 0.0
    %1860 = vmatpush1.msra.mxu0 %v1838
    %1861 = vmatprep.subr.mxu0 0.0
    %1862 = vmatpush1.msra.mxu0 %v1837
    %1863 = vmatprep.subr.mxu0 0.0
    %1864 = vmatpush1.msra.mxu0 %v1836
    %1865 = vmatprep.subr.mxu0 0.0
    %1866 = vmatpush1.msra.mxu0 %v1835
    %1867 = vmatprep.subr.mxu0 0.0
    %1868 = vmatpush1.msra.mxu0 %v1834
    %1869 = vmatprep.subr.mxu0 0.0
    %1870 = vmatpush1.msra.mxu0 %v1833
    %1871 = vmatprep.subr.mxu0 0.0
    %1872 = vmatpush1.msra.mxu0 %v1832
    %1873 = vmatprep.subr.mxu0 0.0
    %1874 = vmatpush1.msra.mxu0 %v1831
    %1875 = vmatprep.subr.mxu0 0.0
    %1876 = vmatpush2.msra.mxu0 0.0
    %1877 = vmatprep.subr.mxu0 0.0
    %1878 = vmatpush2.msra.mxu0 0.0
    %1879 = vmatprep.subr.mxu0 0.0
    %1880 = vmatpush2.msra.mxu0 0.0
    %1881 = vmatprep.subr.mxu0 0.0
    %1882 = vmatpush2.msra.mxu0 0.0
    %1883 = vmatprep.subr.mxu0 0.0
    %1884 = vmatpush2.msra.mxu0 0.0
    %1885 = vmatprep.subr.mxu0 0.0
    %1886 = vmatpush2.msra.mxu0 0.0
    %1887 = vmatprep.subr.mxu0 0.0
    %1888 = vmatpush2.msra.mxu0 0.0
    %1889 = vmatprep.subr.mxu0 0.0
    %1890 = vmatpush2.msra.mxu0 0.0
    %1891 = vmatprep.subr.mxu0 0.0
    %1892 = vmatpush2.msra.mxu0 0.0
    %1893 = vmatprep.subr.mxu0 0.0
    %1894 = vmatpush2.msra.mxu0 0.0
    %1895 = vmatprep.subr.mxu0 0.0
    %1896 = vmatpush2.msra.mxu0 0.0
    %1897 = vmatprep.subr.mxu0 0.0
    %1898 = vmatpush2.msra.mxu0 0.0
    %1899 = vmatprep.subr.mxu0 0.0
    %1900 = vmatpush2.msra.mxu0 0.0
    %1901 = vmatprep.subr.mxu0 0.0
    %1902 = vmatpush2.msra.mxu0 0.0
    %1903 = vmatprep.subr.mxu0 0.0
    %1904 = vmatpush2.msra.mxu0 0.0
    %1905 = vmatprep.subr.mxu0 0.0
    %1906 = vmatpush2.msra.mxu0 0.0
    %1907 = vmatprep.mubr.f32.mxu0 0.0
    %1908 = vmatmul.mubr.f32.gmra.mxu0 %v1586
    %v1909 = vpop.f32.mrf.mxu0
    %v1910 = vadd.f32 0.0, %v1909
    %v1911 = vpop.f32.mrf.mxu0
    %1912 = vmatprep.mubr.f32.mxu0 0.0
    %1913 = vmatmul.mubr.f32.gmra.mxu0 %v1589
    %v1914 = vpop.f32.mrf.mxu0
    %v1915 = vadd.f32 0.0, %v1914
    %v1916 = vpop.f32.mrf.mxu0
    %1917 = vmatprep.mubr.f32.mxu0 0.0
    %1918 = vmatmul.mubr.f32.gmra.mxu0 %v1592
    %v1919 = vpop.f32.mrf.mxu0
    %v1920 = vadd.f32 0.0, %v1919
    %v1921 = vpop.f32.mrf.mxu0
    %1922 = vmatprep.mubr.f32.mxu0 0.0
    %1923 = vmatmul.mubr.f32.gmra.mxu0 %v1595
    %v1924 = vpop.f32.mrf.mxu0
    %v1925 = vadd.f32 0.0, %v1924
    %v1926 = vpop.f32.mrf.mxu0
    %1927 = vmatprep.mubr.f32.mxu0 0.0
    %1928 = vmatmul.mubr.f32.gmra.mxu0 %v1598
    %v1929 = vpop.f32.mrf.mxu0
    %v1930 = vadd.f32 0.0, %v1929
    %v1931 = vpop.f32.mrf.mxu0
    %1932 = vmatprep.mubr.f32.mxu0 0.0
    %1933 = vmatmul.mubr.f32.gmra.mxu0 %v1601
    %v1934 = vpop.f32.mrf.mxu0
    %v1935 = vadd.f32 0.0, %v1934
    %v1936 = vpop.f32.mrf.mxu0
    %1937 = vmatprep.mubr.f32.mxu0 0.0
    %1938 = vmatmul.mubr.f32.gmra.mxu0 %v1604
    %v1939 = vpop.f32.mrf.mxu0
    %v1940 = vadd.f32 0.0, %v1939
    %v1941 = vpop.f32.mrf.mxu0
    %1942 = vmatprep.mubr.f32.mxu0 0.0
    %1943 = vmatmul.mubr.f32.gmra.mxu0 %v1607
    %v1944 = vpop.f32.mrf.mxu0
    %v1945 = vadd.f32 0.0, %v1944
    %v1946 = vpop.f32.mrf.mxu0
    %1947 = vdwg.mxu0
    %v1949 = vsel %vm569, %v1676, 0
    %v1952 = vsel %vm569, %v1681, 0
    %v1955 = vsel %vm569, %v1686, 0
    %v1958 = vsel %vm569, %v1691, 0
    %v1961 = vsel %vm569, %v1696, 0
    %v1964 = vsel %vm569, %v1701, 0
    %v1967 = vsel %vm569, %v1706, 0
    %v1970 = vsel %vm569, %v1711, 0
    %v1973 = vsel %vm569, %v1793, 0
    %v1976 = vsel %vm569, %v1798, 0
    %v1979 = vsel %vm569, %v1803, 0
    %v1982 = vsel %vm569, %v1808, 0
    %v1985 = vsel %vm569, %v1813, 0
    %v1988 = vsel %vm569, %v1818, 0
    %v1991 = vsel %vm569, %v1823, 0
    %v1994 = vsel %vm569, %v1828, 0
    %1996 = vmatprep.subr.mxu0 0.0
    %1997 = vmatpush1.xpose.msra.mxu0 0.0
    %1998 = vmatprep.subr.mxu0 0.0
    %1999 = vmatpush1.xpose.msra.mxu0 0.0
    %2000 = vmatprep.subr.mxu0 0.0
    %2001 = vmatpush1.xpose.msra.mxu0 0.0
    %2002 = vmatprep.subr.mxu0 0.0
    %2003 = vmatpush1.xpose.msra.mxu0 0.0
    %2004 = vmatprep.subr.mxu0 0.0
    %2005 = vmatpush1.xpose.msra.mxu0 0.0
    %2006 = vmatprep.subr.mxu0 0.0
    %2007 = vmatpush1.xpose.msra.mxu0 0.0
    %2008 = vmatprep.subr.mxu0 0.0
    %2009 = vmatpush1.xpose.msra.mxu0 0.0
    %2010 = vmatprep.subr.mxu0 0.0
    %2011 = vmatpush1.xpose.msra.mxu0 0.0
    %2012 = vmatprep.subr.mxu0 0.0
    %2013 = vmatpush1.xpose.msra.mxu0 %v1994
    %2014 = vmatprep.subr.mxu0 0.0
    %2015 = vmatpush1.xpose.msra.mxu0 %v1991
    %2016 = vmatprep.subr.mxu0 0.0
    %2017 = vmatpush1.xpose.msra.mxu0 %v1988
    %2018 = vmatprep.subr.mxu0 0.0
    %2019 = vmatpush1.xpose.msra.mxu0 %v1985
    %2020 = vmatprep.subr.mxu0 0.0
    %2021 = vmatpush1.xpose.msra.mxu0 %v1982
    %2022 = vmatprep.subr.mxu0 0.0
    %2023 = vmatpush1.xpose.msra.mxu0 %v1979
    %2024 = vmatprep.subr.mxu0 0.0
    %2025 = vmatpush1.xpose.msra.mxu0 %v1976
    %2026 = vmatprep.subr.mxu0 0.0
    %2027 = vmatpush1.xpose.msra.mxu0 %v1973
    %2028 = vmatprep.subr.mxu0 0.0
    %2029 = vmatpush2.xpose.msra.mxu0 0.0
    %2030 = vmatprep.subr.mxu0 0.0
    %2031 = vmatpush2.xpose.msra.mxu0 0.0
    %2032 = vmatprep.subr.mxu0 0.0
    %2033 = vmatpush2.xpose.msra.mxu0 0.0
    %2034 = vmatprep.subr.mxu0 0.0
    %2035 = vmatpush2.xpose.msra.mxu0 0.0
    %2036 = vmatprep.subr.mxu0 0.0
    %2037 = vmatpush2.xpose.msra.mxu0 0.0
    %2038 = vmatprep.subr.mxu0 0.0
    %2039 = vmatpush2.xpose.msra.mxu0 0.0
    %2040 = vmatprep.subr.mxu0 0.0
    %2041 = vmatpush2.xpose.msra.mxu0 0.0
    %2042 = vmatprep.subr.mxu0 0.0
    %2043 = vmatpush2.xpose.msra.mxu0 0.0
    %2044 = vmatprep.subr.mxu0 0.0
    %2045 = vmatpush2.xpose.msra.mxu0 0.0
    %2046 = vmatprep.subr.mxu0 0.0
    %2047 = vmatpush2.xpose.msra.mxu0 0.0
    %2048 = vmatprep.subr.mxu0 0.0
    %2049 = vmatpush2.xpose.msra.mxu0 0.0
    %2050 = vmatprep.subr.mxu0 0.0
    %2051 = vmatpush2.xpose.msra.mxu0 0.0
    %2052 = vmatprep.subr.mxu0 0.0
    %2053 = vmatpush2.xpose.msra.mxu0 0.0
    %2054 = vmatprep.subr.mxu0 0.0
    %2055 = vmatpush2.xpose.msra.mxu0 0.0
    %2056 = vmatprep.subr.mxu0 0.0
    %2057 = vmatpush2.xpose.msra.mxu0 0.0
    %2058 = vmatprep.subr.mxu0 0.0
    %2059 = vmatpush2.xpose.msra.mxu0 0.0
    %2060 = vmatprep.mubr.f32.mxu0 0.0
    %2061 = vmatmul.mubr.f32.gmra.mxu0 %v1949
    %v2062 = vpop.f32.mrf.mxu0
    %v2063 = vadd.f32 %v65, %v2062
    %v2064 = vpop.f32.mrf.mxu0
    %2065 = vmatprep.mubr.f32.mxu0 0.0
    %2066 = vmatmul.mubr.f32.gmra.mxu0 %v1952
    %v2067 = vpop.f32.mrf.mxu0
    %v2068 = vadd.f32 %v66, %v2067
    %v2069 = vpop.f32.mrf.mxu0
    %2070 = vmatprep.mubr.f32.mxu0 0.0
    %2071 = vmatmul.mubr.f32.gmra.mxu0 %v1955
    %v2072 = vpop.f32.mrf.mxu0
    %v2073 = vadd.f32 %v67, %v2072
    %v2074 = vpop.f32.mrf.mxu0
    %2075 = vmatprep.mubr.f32.mxu0 0.0
    %2076 = vmatmul.mubr.f32.gmra.mxu0 %v1958
    %v2077 = vpop.f32.mrf.mxu0
    %v2078 = vadd.f32 %v68, %v2077
    %v2079 = vpop.f32.mrf.mxu0
    %2080 = vmatprep.mubr.f32.mxu0 0.0
    %2081 = vmatmul.mubr.f32.gmra.mxu0 %v1961
    %v2082 = vpop.f32.mrf.mxu0
    %v2083 = vadd.f32 %v69, %v2082
    %v2084 = vpop.f32.mrf.mxu0
    %2085 = vmatprep.mubr.f32.mxu0 0.0
    %2086 = vmatmul.mubr.f32.gmra.mxu0 %v1964
    %v2087 = vpop.f32.mrf.mxu0
    %v2088 = vadd.f32 %v70, %v2087
    %v2089 = vpop.f32.mrf.mxu0
    %2090 = vmatprep.mubr.f32.mxu0 0.0
    %2091 = vmatmul.mubr.f32.gmra.mxu0 %v1967
    %v2092 = vpop.f32.mrf.mxu0
    %v2093 = vadd.f32 %v71, %v2092
    %v2094 = vpop.f32.mrf.mxu0
    %2095 = vmatprep.mubr.f32.mxu0 0.0
    %2096 = vmatmul.mubr.f32.gmra.mxu0 %v1970
    %v2097 = vpop.f32.mrf.mxu0
    %v2098 = vadd.f32 %v72, %v2097
    %v2099 = vpop.f32.mrf.mxu0
    %2100 = vdwg.mxu0
    %v2101 = vsel %vm723, %v2063, -inf
    %2102 = vmax.xlane.f32.xlu0 %v2101
    %v2103 = vpop.xlane.xlu0 %2102
    %v2104 = vsel %vm723, %v2068, -inf
    %2105 = vmax.xlane.f32.xlu0 %v2104
    %v2106 = vpop.xlane.xlu0 %2105
    %v2107 = vsel %vm723, %v2073, -inf
    %2108 = vmax.xlane.f32.xlu0 %v2107
    %v2109 = vpop.xlane.xlu0 %2108
    %v2110 = vsel %vm723, %v2078, -inf
    %2111 = vmax.xlane.f32.xlu0 %v2110
    %v2112 = vpop.xlane.xlu0 %2111
    %v2113 = vsel %vm723, %v2083, -inf
    %2114 = vmax.xlane.f32.xlu0 %v2113
    %v2115 = vpop.xlane.xlu0 %2114
    %v2116 = vsel %vm723, %v2088, -inf
    %2117 = vmax.xlane.f32.xlu0 %v2116
    %v2118 = vpop.xlane.xlu0 %2117
    %v2119 = vsel %vm723, %v2093, -inf
    %2120 = vmax.xlane.f32.xlu0 %v2119
    %v2121 = vpop.xlane.xlu0 %2120
    %v2122 = vsel %vm723, %v2098, -inf
    %2123 = vmax.xlane.f32.xlu0 %v2122
    %v2124 = vpop.xlane.xlu0 %2123
    %v2125 = vsub.f32 %v2063, %v2103
    %v2126 = vsub.f32 %v2068, %v2106
    %v2127 = vsub.f32 %v2073, %v2109
    %v2128 = vsub.f32 %v2078, %v2112
    %v2129 = vsub.f32 %v2083, %v2115
    %v2130 = vsub.f32 %v2088, %v2118
    %v2131 = vsub.f32 %v2093, %v2121
    %v2132 = vsub.f32 %v2098, %v2124
    %v2133 = vmul.f32 %v2125, 1.442695
    %v2134 = vpow.pop %v2133
    %v2135 = vmul.f32 %v2126, 1.442695
    %v2136 = vpow.pop %v2135
    %v2137 = vmul.f32 %v2127, 1.442695
    %v2138 = vpow.pop %v2137
    %v2139 = vmul.f32 %v2128, 1.442695
    %v2140 = vpow.pop %v2139
    %v2141 = vmul.f32 %v2129, 1.442695
    %v2142 = vpow.pop %v2141
    %v2143 = vmul.f32 %v2130, 1.442695
    %v2144 = vpow.pop %v2143
    %v2145 = vmul.f32 %v2131, 1.442695
    %v2146 = vpow.pop %v2145
    %v2147 = vmul.f32 %v2132, 1.442695
    %v2148 = vpow.pop %v2147
    %v2149 = vsel %vm723, %v2134, 0.0
    %2150 = vadd.xlane.f32.xlu0 %v2149
    %v2151 = vpop.xlane.xlu0 %2150
    %v2152 = vsel %vm723, %v2136, 0.0
    %2153 = vadd.xlane.f32.xlu0 %v2152
    %v2154 = vpop.xlane.xlu0 %2153
    %v2155 = vsel %vm723, %v2138, 0.0
    %2156 = vadd.xlane.f32.xlu0 %v2155
    %v2157 = vpop.xlane.xlu0 %2156
    %v2158 = vsel %vm723, %v2140, 0.0
    %2159 = vadd.xlane.f32.xlu0 %v2158
    %v2160 = vpop.xlane.xlu0 %2159
    %v2161 = vsel %vm723, %v2142, 0.0
    %2162 = vadd.xlane.f32.xlu0 %v2161
    %v2163 = vpop.xlane.xlu0 %2162
    %v2164 = vsel %vm723, %v2144, 0.0
    %2165 = vadd.xlane.f32.xlu0 %v2164
    %v2166 = vpop.xlane.xlu0 %2165
    %v2167 = vsel %vm723, %v2146, 0.0
    %2168 = vadd.xlane.f32.xlu0 %v2167
    %v2169 = vpop.xlane.xlu0 %2168
    %v2170 = vsel %vm723, %v2148, 0.0
    %2171 = vadd.xlane.f32.xlu0 %v2170
    %v2172 = vpop.xlane.xlu0 %2171
    %v2173 = vrcp.pop %v2151
    %v2174 = vmul.f32 %v2134, %v2173
    %v2175 = vrcp.pop %v2154
    %v2176 = vmul.f32 %v2136, %v2175
    %v2177 = vrcp.pop %v2157
    %v2178 = vmul.f32 %v2138, %v2177
    %v2179 = vrcp.pop %v2160
    %v2180 = vmul.f32 %v2140, %v2179
    %v2181 = vrcp.pop %v2163
    %v2182 = vmul.f32 %v2142, %v2181
    %v2183 = vrcp.pop %v2166
    %v2184 = vmul.f32 %v2144, %v2183
    %v2185 = vrcp.pop %v2169
    %v2186 = vmul.f32 %v2146, %v2185
    %v2187 = vrcp.pop %v2172
    %v2188 = vmul.f32 %v2148, %v2187
    %s2189 = scalar_lea.vmem [#allocation4], 64
    %2190 = vst.msk [vmem:[%s2189] sm:$0xff] %vm723, %v2174
    %2191 = vst.msk [vmem:[%s2189 + $0x8] sm:$0xff] %vm723, %v2176
    %2192 = vst.msk [vmem:[%s2189 + $0x10] sm:$0xff] %vm723, %v2178
    %2193 = vst.msk [vmem:[%s2189 + $0x18] sm:$0xff] %vm723, %v2180
    %2194 = vst.msk [vmem:[%s2189 + $0x20] sm:$0xff] %vm723, %v2182
    %2195 = vst.msk [vmem:[%s2189 + $0x28] sm:$0xff] %vm723, %v2184
    %2196 = vst.msk [vmem:[%s2189 + $0x30] sm:$0xff] %vm723, %v2186
    %2197 = vst.msk [vmem:[%s2189 + $0x38] sm:$0xff] %vm723, %v2188
    %v2199 = vsel %vm723, %v2174, 0
    %v2202 = vsel %vm723, %v2176, 0
    %v2205 = vsel %vm723, %v2178, 0
    %v2208 = vsel %vm723, %v2180, 0
    %v2211 = vsel %vm723, %v2182, 0
    %v2214 = vsel %vm723, %v2184, 0
    %v2217 = vsel %vm723, %v2186, 0
    %v2220 = vsel %vm723, %v2188, 0
    %2222 = vmatprep.subr.mxu0 0.0
    %2223 = vmatpush1.msra.mxu0 0.0
    %2224 = vmatprep.subr.mxu0 0.0
    %2225 = vmatpush1.msra.mxu0 0.0
    %2226 = vmatprep.subr.mxu0 0.0
    %2227 = vmatpush1.msra.mxu0 0.0
    %2228 = vmatprep.subr.mxu0 0.0
    %2229 = vmatpush1.msra.mxu0 0.0
    %2230 = vmatprep.subr.mxu0 0.0
    %2231 = vmatpush1.msra.mxu0 0.0
    %2232 = vmatprep.subr.mxu0 0.0
    %2233 = vmatpush1.msra.mxu0 0.0
    %2234 = vmatprep.subr.mxu0 0.0
    %2235 = vmatpush1.msra.mxu0 0.0
    %2236 = vmatprep.subr.mxu0 0.0
    %2237 = vmatpush1.msra.mxu0 0.0
    %2238 = vmatprep.subr.mxu0 0.0
    %2239 = vmatpush1.msra.mxu0 %v1945
    %2240 = vmatprep.subr.mxu0 0.0
    %2241 = vmatpush1.msra.mxu0 %v1940
    %2242 = vmatprep.subr.mxu0 0.0
    %2243 = vmatpush1.msra.mxu0 %v1935
    %2244 = vmatprep.subr.mxu0 0.0
    %2245 = vmatpush1.msra.mxu0 %v1930
    %2246 = vmatprep.subr.mxu0 0.0
    %2247 = vmatpush1.msra.mxu0 %v1925
    %2248 = vmatprep.subr.mxu0 0.0
    %2249 = vmatpush1.msra.mxu0 %v1920
    %2250 = vmatprep.subr.mxu0 0.0
    %2251 = vmatpush1.msra.mxu0 %v1915
    %2252 = vmatprep.subr.mxu0 0.0
    %2253 = vmatpush1.msra.mxu0 %v1910
    %2254 = vmatprep.subr.mxu0 0.0
    %2255 = vmatpush2.msra.mxu0 0.0
    %2256 = vmatprep.subr.mxu0 0.0
    %2257 = vmatpush2.msra.mxu0 0.0
    %2258 = vmatprep.subr.mxu0 0.0
    %2259 = vmatpush2.msra.mxu0 0.0
    %2260 = vmatprep.subr.mxu0 0.0
    %2261 = vmatpush2.msra.mxu0 0.0
    %2262 = vmatprep.subr.mxu0 0.0
    %2263 = vmatpush2.msra.mxu0 0.0
    %2264 = vmatprep.subr.mxu0 0.0
    %2265 = vmatpush2.msra.mxu0 0.0
    %2266 = vmatprep.subr.mxu0 0.0
    %2267 = vmatpush2.msra.mxu0 0.0
    %2268 = vmatprep.subr.mxu0 0.0
    %2269 = vmatpush2.msra.mxu0 0.0
    %2270 = vmatprep.subr.mxu0 0.0
    %2271 = vmatpush2.msra.mxu0 0.0
    %2272 = vmatprep.subr.mxu0 0.0
    %2273 = vmatpush2.msra.mxu0 0.0
    %2274 = vmatprep.subr.mxu0 0.0
    %2275 = vmatpush2.msra.mxu0 0.0
    %2276 = vmatprep.subr.mxu0 0.0
    %2277 = vmatpush2.msra.mxu0 0.0
    %2278 = vmatprep.subr.mxu0 0.0
    %2279 = vmatpush2.msra.mxu0 0.0
    %2280 = vmatprep.subr.mxu0 0.0
    %2281 = vmatpush2.msra.mxu0 0.0
    %2282 = vmatprep.subr.mxu0 0.0
    %2283 = vmatpush2.msra.mxu0 0.0
    %2284 = vmatprep.subr.mxu0 0.0
    %2285 = vmatpush2.msra.mxu0 0.0
    %2286 = vmatprep.mubr.f32.mxu0 0.0
    %2287 = vmatmul.mubr.f32.gmra.mxu0 %v2199
    %v2288 = vpop.f32.mrf.mxu0
    %v2289 = vadd.f32 0.0, %v2288
    %v2290 = vpop.f32.mrf.mxu0
    %2291 = vmatprep.mubr.f32.mxu0 0.0
    %2292 = vmatmul.mubr.f32.gmra.mxu0 %v2202
    %v2293 = vpop.f32.mrf.mxu0
    %v2294 = vadd.f32 0.0, %v2293
    %v2295 = vpop.f32.mrf.mxu0
    %2296 = vmatprep.mubr.f32.mxu0 0.0
    %2297 = vmatmul.mubr.f32.gmra.mxu0 %v2205
    %v2298 = vpop.f32.mrf.mxu0
    %v2299 = vadd.f32 0.0, %v2298
    %v2300 = vpop.f32.mrf.mxu0
    %2301 = vmatprep.mubr.f32.mxu0 0.0
    %2302 = vmatmul.mubr.f32.gmra.mxu0 %v2208
    %v2303 = vpop.f32.mrf.mxu0
    %v2304 = vadd.f32 0.0, %v2303
    %v2305 = vpop.f32.mrf.mxu0
    %2306 = vmatprep.mubr.f32.mxu0 0.0
    %2307 = vmatmul.mubr.f32.gmra.mxu0 %v2211
    %v2308 = vpop.f32.mrf.mxu0
    %v2309 = vadd.f32 0.0, %v2308
    %v2310 = vpop.f32.mrf.mxu0
    %2311 = vmatprep.mubr.f32.mxu0 0.0
    %2312 = vmatmul.mubr.f32.gmra.mxu0 %v2214
    %v2313 = vpop.f32.mrf.mxu0
    %v2314 = vadd.f32 0.0, %v2313
    %v2315 = vpop.f32.mrf.mxu0
    %2316 = vmatprep.mubr.f32.mxu0 0.0
    %2317 = vmatmul.mubr.f32.gmra.mxu0 %v2217
    %v2318 = vpop.f32.mrf.mxu0
    %v2319 = vadd.f32 0.0, %v2318
    %v2320 = vpop.f32.mrf.mxu0
    %2321 = vmatprep.mubr.f32.mxu0 0.0
    %2322 = vmatmul.mubr.f32.gmra.mxu0 %v2220
    %v2323 = vpop.f32.mrf.mxu0
    %v2324 = vadd.f32 0.0, %v2323
    %v2325 = vpop.f32.mrf.mxu0
    %2326 = vdwg.mxu0
    %v2328 = vsel %vm569, %v2289, 0
    %v2331 = vsel %vm569, %v2294, 0
    %v2334 = vsel %vm569, %v2299, 0
    %v2337 = vsel %vm569, %v2304, 0
    %v2340 = vsel %vm569, %v2309, 0
    %v2343 = vsel %vm569, %v2314, 0
    %v2346 = vsel %vm569, %v2319, 0
    %v2349 = vsel %vm569, %v2324, 0
    %2351 = vmatprep.subr.mxu0 0.0
    %2352 = vmatpush1.msra.mxu0 0.0
    %2353 = vmatprep.subr.mxu0 0.0
    %2354 = vmatpush1.msra.mxu0 0.0
    %2355 = vmatprep.subr.mxu0 0.0
    %2356 = vmatpush1.msra.mxu0 0.0
    %2357 = vmatprep.subr.mxu0 0.0
    %2358 = vmatpush1.msra.mxu0 0.0
    %2359 = vmatprep.subr.mxu0 0.0
    %2360 = vmatpush1.msra.mxu0 0.0
    %2361 = vmatprep.subr.mxu0 0.0
    %2362 = vmatpush1.msra.mxu0 0.0
    %2363 = vmatprep.subr.mxu0 0.0
    %2364 = vmatpush1.msra.mxu0 0.0
    %2365 = vmatprep.subr.mxu0 0.0
    %2366 = vmatpush1.msra.mxu0 0.0
    %2367 = vmatprep.subr.mxu0 0.0
    %2368 = vmatpush1.msra.mxu0 0.0
    %2369 = vmatprep.subr.mxu0 0.0
    %2370 = vmatpush1.msra.mxu0 0.0
    %2371 = vmatprep.subr.mxu0 0.0
    %2372 = vmatpush1.msra.mxu0 0.0
    %2373 = vmatprep.subr.mxu0 0.0
    %2374 = vmatpush1.msra.mxu0 0.0
    %2375 = vmatprep.subr.mxu0 0.0
    %2376 = vmatpush1.msra.mxu0 0.0
    %2377 = vmatprep.subr.mxu0 0.0
    %2378 = vmatpush1.msra.mxu0 0.0
    %2379 = vmatprep.subr.mxu0 0.0
    %2380 = vmatpush1.msra.mxu0 0.0
    %2381 = vmatprep.subr.mxu0 0.0
    %2382 = vmatpush1.msra.mxu0 %v89
    %2383 = vmatprep.subr.mxu0 0.0
    %2384 = vmatpush2.msra.mxu0 0.0
    %2385 = vmatprep.subr.mxu0 0.0
    %2386 = vmatpush2.msra.mxu0 0.0
    %2387 = vmatprep.subr.mxu0 0.0
    %2388 = vmatpush2.msra.mxu0 0.0
    %2389 = vmatprep.subr.mxu0 0.0
    %2390 = vmatpush2.msra.mxu0 0.0
    %2391 = vmatprep.subr.mxu0 0.0
    %2392 = vmatpush2.msra.mxu0 0.0
    %2393 = vmatprep.subr.mxu0 0.0
    %2394 = vmatpush2.msra.mxu0 0.0
    %2395 = vmatprep.subr.mxu0 0.0
    %2396 = vmatpush2.msra.mxu0 0.0
    %2397 = vmatprep.subr.mxu0 0.0
    %2398 = vmatpush2.msra.mxu0 0.0
    %2399 = vmatprep.subr.mxu0 0.0
    %2400 = vmatpush2.msra.mxu0 0.0
    %2401 = vmatprep.subr.mxu0 0.0
    %2402 = vmatpush2.msra.mxu0 0.0
    %2403 = vmatprep.subr.mxu0 0.0
    %2404 = vmatpush2.msra.mxu0 0.0
    %2405 = vmatprep.subr.mxu0 0.0
    %2406 = vmatpush2.msra.mxu0 0.0
    %2407 = vmatprep.subr.mxu0 0.0
    %2408 = vmatpush2.msra.mxu0 0.0
    %2409 = vmatprep.subr.mxu0 0.0
    %2410 = vmatpush2.msra.mxu0 0.0
    %2411 = vmatprep.subr.mxu0 0.0
    %2412 = vmatpush2.msra.mxu0 0.0
    %2413 = vmatprep.subr.mxu0 0.0
    %2414 = vmatpush2.msra.mxu0 0.0
    %2415 = vmatprep.mubr.f32.mxu0 0.0
    %2416 = vmatmul.mubr.f32.gmra.mxu0 %v2328
    %v2417 = vpop.f32.mrf.mxu0
    %v2418 = vadd.f32 0.0, %v2417
    %v2419 = vpop.f32.mrf.mxu0
    %2420 = vmatprep.mubr.f32.mxu0 0.0
    %2421 = vmatmul.mubr.f32.gmra.mxu0 %v2331
    %v2422 = vpop.f32.mrf.mxu0
    %v2423 = vadd.f32 0.0, %v2422
    %v2424 = vpop.f32.mrf.mxu0
    %2425 = vmatprep.mubr.f32.mxu0 0.0
    %2426 = vmatmul.mubr.f32.gmra.mxu0 %v2334
    %v2427 = vpop.f32.mrf.mxu0
    %v2428 = vadd.f32 0.0, %v2427
    %v2429 = vpop.f32.mrf.mxu0
    %2430 = vmatprep.mubr.f32.mxu0 0.0
    %2431 = vmatmul.mubr.f32.gmra.mxu0 %v2337
    %v2432 = vpop.f32.mrf.mxu0
    %v2433 = vadd.f32 0.0, %v2432
    %v2434 = vpop.f32.mrf.mxu0
    %2435 = vmatprep.mubr.f32.mxu0 0.0
    %2436 = vmatmul.mubr.f32.gmra.mxu0 %v2340
    %v2437 = vpop.f32.mrf.mxu0
    %v2438 = vadd.f32 0.0, %v2437
    %v2439 = vpop.f32.mrf.mxu0
    %2440 = vmatprep.mubr.f32.mxu0 0.0
    %2441 = vmatmul.mubr.f32.gmra.mxu0 %v2343
    %v2442 = vpop.f32.mrf.mxu0
    %v2443 = vadd.f32 0.0, %v2442
    %v2444 = vpop.f32.mrf.mxu0
    %2445 = vmatprep.mubr.f32.mxu0 0.0
    %2446 = vmatmul.mubr.f32.gmra.mxu0 %v2346
    %v2447 = vpop.f32.mrf.mxu0
    %v2448 = vadd.f32 0.0, %v2447
    %v2449 = vpop.f32.mrf.mxu0
    %2450 = vmatprep.mubr.f32.mxu0 0.0
    %2451 = vmatmul.mubr.f32.gmra.mxu0 %v2349
    %v2452 = vpop.f32.mrf.mxu0
    %v2453 = vadd.f32 0.0, %v2452
    %v2454 = vpop.f32.mrf.mxu0
    %2455 = vdwg.mxu0
    %v2456 = vmul.f32 %v2418, %v73
    %v2457 = vmul.f32 %v2423, %v74
    %v2458 = vmul.f32 %v2428, %v75
    %v2459 = vmul.f32 %v2433, %v76
    %v2460 = vmul.f32 %v2438, %v77
    %v2461 = vmul.f32 %v2443, %v78
    %v2462 = vmul.f32 %v2448, %v79
    %v2463 = vmul.f32 %v2453, %v80
    %v2464 = vadd.f32 %v2456, %v2457
    %v2465 = vadd.f32 %v2464, %v2458
    %v2466 = vadd.f32 %v2465, %v2459
    %v2467 = vadd.f32 %v2460, %v2461
    %v2468 = vadd.f32 %v2467, %v2462
    %v2469 = vadd.f32 %v2468, %v2463
    %s2470 = scalar_lea.vmem %s8, 32
    %v2471 = vld [vmem:[%s2470] sm:$0xff]
    %v2472 = vld [vmem:[%s2470 + $0x8] sm:$0xff]
    %v2473 = vld [vmem:[%s2470 + $0x10] sm:$0xff]
    %v2474 = vld [vmem:[%s2470 + $0x18] sm:$0xff]
    %v2476 = vsel %vm101, %v2466, 0
    %v2479 = vsel %vm101, %v2469, 0
    %2481 = vmatprep.subr.mxu0 0.0
    %2482 = vmatpush1.msra.mxu0 0.0
    %2483 = vmatprep.subr.mxu0 0.0
    %2484 = vmatpush1.msra.mxu0 0.0
    %2485 = vmatprep.subr.mxu0 0.0
    %2486 = vmatpush1.msra.mxu0 0.0
    %2487 = vmatprep.subr.mxu0 0.0
    %2488 = vmatpush1.msra.mxu0 0.0
    %2489 = vmatprep.subr.mxu0 0.0
    %2490 = vmatpush1.msra.mxu0 0.0
    %2491 = vmatprep.subr.mxu0 0.0
    %2492 = vmatpush1.msra.mxu0 0.0
    %2493 = vmatprep.subr.mxu0 0.0
    %2494 = vmatpush1.msra.mxu0 0.0
    %2495 = vmatprep.subr.mxu0 0.0
    %2496 = vmatpush1.msra.mxu0 0.0
    %2497 = vmatprep.subr.mxu0 0.0
    %2498 = vmatpush1.msra.mxu0 0.0
    %2499 = vmatprep.subr.mxu0 0.0
    %2500 = vmatpush1.msra.mxu0 0.0
    %2501 = vmatprep.subr.mxu0 0.0
    %2502 = vmatpush1.msra.mxu0 0.0
    %2503 = vmatprep.subr.mxu0 0.0
    %2504 = vmatpush1.msra.mxu0 0.0
    %2505 = vmatprep.subr.mxu0 0.0
    %2506 = vmatpush1.msra.mxu0 %v2474
    %2507 = vmatprep.subr.mxu0 0.0
    %2508 = vmatpush1.msra.mxu0 %v2473
    %2509 = vmatprep.subr.mxu0 0.0
    %2510 = vmatpush1.msra.mxu0 %v2472
    %2511 = vmatprep.subr.mxu0 0.0
    %2512 = vmatpush1.msra.mxu0 %v2471
    %2513 = vmatprep.subr.mxu0 0.0
    %2514 = vmatpush2.msra.mxu0 0.0
    %2515 = vmatprep.subr.mxu0 0.0
    %2516 = vmatpush2.msra.mxu0 0.0
    %2517 = vmatprep.subr.mxu0 0.0
    %2518 = vmatpush2.msra.mxu0 0.0
    %2519 = vmatprep.subr.mxu0 0.0
    %2520 = vmatpush2.msra.mxu0 0.0
    %2521 = vmatprep.subr.mxu0 0.0
    %2522 = vmatpush2.msra.mxu0 0.0
    %2523 = vmatprep.subr.mxu0 0.0
    %2524 = vmatpush2.msra.mxu0 0.0
    %2525 = vmatprep.subr.mxu0 0.0
    %2526 = vmatpush2.msra.mxu0 0.0
    %2527 = vmatprep.subr.mxu0 0.0
    %2528 = vmatpush2.msra.mxu0 0.0
    %2529 = vmatprep.subr.mxu0 0.0
    %2530 = vmatpush2.msra.mxu0 0.0
    %2531 = vmatprep.subr.mxu0 0.0
    %2532 = vmatpush2.msra.mxu0 0.0
    %2533 = vmatprep.subr.mxu0 0.0
    %2534 = vmatpush2.msra.mxu0 0.0
    %2535 = vmatprep.subr.mxu0 0.0
    %2536 = vmatpush2.msra.mxu0 0.0
    %2537 = vmatprep.subr.mxu0 0.0
    %2538 = vmatpush2.msra.mxu0 0.0
    %2539 = vmatprep.subr.mxu0 0.0
    %2540 = vmatpush2.msra.mxu0 0.0
    %2541 = vmatprep.subr.mxu0 0.0
    %2542 = vmatpush2.msra.mxu0 0.0
    %2543 = vmatprep.subr.mxu0 0.0
    %2544 = vmatpush2.msra.mxu0 0.0
    %2545 = vmatprep.mubr.f32.mxu0 0.0
    %2546 = vmatmul.mubr.f32.gmra.mxu0 %v2476
    %v2547 = vpop.f32.mrf.mxu0
    %v2548 = vadd.f32 0.0, %v2547
    %v2549 = vpop.f32.mrf.mxu0
    %2550 = vmatprep.mubr.f32.mxu0 0.0
    %2551 = vmatmul.mubr.f32.gmra.mxu0 %v2479
    %v2552 = vpop.f32.mrf.mxu0
    %v2553 = vadd.f32 0.0, %v2552
    %v2554 = vpop.f32.mrf.mxu0
    %2555 = vdwg.mxu0
    %v2556 = vadd.f32 %v1469, %v2548
    %v2557 = vadd.f32 %v1470, %v2553
    %s2558 = scalar_lea.vmem %s9, 1
    %v2559 = vld [vmem:[%s2558] sm:$0x1]
    %v2561 = vlaneseq
    %v2562 = vshrl.u32 %v2561, 7
    %v2563 = vsub.s32 0, %v2562
    %v2564 = vrot.slane %v2559, %v2563
    %v2566 = vadd.f32 %v2556, %v2564
    %v2567 = vadd.f32 %v2557, %v2564
    %v2568 = vsel %vm101, %v2566, 0.0
    %2569 = vadd.xlane.f32.xlu0 %v2568
    %v2570 = vpop.xlane.xlu0 %2569
    %v2571 = vsel %vm101, %v2567, 0.0
    %2572 = vadd.xlane.f32.xlu0 %v2571
    %v2573 = vpop.xlane.xlu0 %2572
    %v2574 = vmul.f32 %v2570, %v1194
    %v2575 = vmul.f32 %v2573, %v1194
    %v2576 = vsub.f32 %v2566, %v2574
    %v2577 = vsub.f32 %v2567, %v2575
    %v2578 = vmul.f32 %v2576, %v2576
    %v2579 = vmul.f32 %v2577, %v2577
    %v2580 = vsel %vm101, %v2578, 0.0
    %2581 = vadd.xlane.f32.xlu0 %v2580
    %v2582 = vpop.xlane.xlu0 %2581
    %v2583 = vsel %vm101, %v2579, 0.0
    %2584 = vadd.xlane.f32.xlu0 %v2583
    %v2585 = vpop.xlane.xlu0 %2584
    %v2586 = vmul.f32 %v2582, %v1194
    %v2587 = vmul.f32 %v2585, %v1194
    %v2588 = vadd.f32 %v2586, 1e-05
    %v2589 = vadd.f32 %v2587, 1e-05
    %v2590 = vrsqrt.pop %v2588
    %v2591 = vrsqrt.pop %v2589
    %v2592 = vmul.f32 %v2576, %v2590
    %v2593 = vmul.f32 %v2577, %v2591
    %s2594 = scalar_lea.vmem %s10, 1
    %v2595 = vld [vmem:[%s2594] sm:$0x1]
    %v2597 = vlaneseq
    %v2598 = vshrl.u32 %v2597, 7
    %v2599 = vsub.s32 0, %v2598
    %v2600 = vrot.slane %v2595, %v2599
    %v2602 = vmul.f32 %v2592, %v2600
    %v2603 = vmul.f32 %v2593, %v2600
    %s2604 = scalar_lea.vmem %s11, 1
    %v2605 = vld [vmem:[%s2604] sm:$0x1]
    %v2607 = vlaneseq
    %v2608 = vshrl.u32 %v2607, 7
    %v2609 = vsub.s32 0, %v2608
    %v2610 = vrot.slane %v2605, %v2609
    %v2612 = vadd.f32 %v2602, %v2610
    %v2613 = vadd.f32 %v2603, %v2610
    %s2614 = scalar_lea.vmem %s12, 32
    %v2615 = vld [vmem:[%s2614] sm:$0xff]
    %v2616 = vld [vmem:[%s2614 + $0x8] sm:$0xff]
    %v2617 = vld [vmem:[%s2614 + $0x10] sm:$0xff]
    %v2618 = vld [vmem:[%s2614 + $0x18] sm:$0xff]
    %s2619 = scalar_lea.vmem %s13, 1
    %v2620 = vld [vmem:[%s2619] sm:$0x1]
    %v2622 = vlaneseq
    %v2623 = vshrl.u32 %v2622, 7
    %v2624 = vsub.s32 0, %v2623
    %v2625 = vrot.slane %v2620, %v2624
    %v2628 = vsel %vm101, %v2612, 0
    %v2631 = vsel %vm101, %v2613, 0
    %2633 = vmatprep.subr.mxu0 0.0
    %2634 = vmatpush1.msra.mxu0 0.0
    %2635 = vmatprep.subr.mxu0 0.0
    %2636 = vmatpush1.msra.mxu0 0.0
    %2637 = vmatprep.subr.mxu0 0.0
    %2638 = vmatpush1.msra.mxu0 0.0
    %2639 = vmatprep.subr.mxu0 0.0
    %2640 = vmatpush1.msra.mxu0 0.0
    %2641 = vmatprep.subr.mxu0 0.0
    %2642 = vmatpush1.msra.mxu0 0.0
    %2643 = vmatprep.subr.mxu0 0.0
    %2644 = vmatpush1.msra.mxu0 0.0
    %2645 = vmatprep.subr.mxu0 0.0
    %2646 = vmatpush1.msra.mxu0 0.0
    %2647 = vmatprep.subr.mxu0 0.0
    %2648 = vmatpush1.msra.mxu0 0.0
    %2649 = vmatprep.subr.mxu0 0.0
    %2650 = vmatpush1.msra.mxu0 0.0
    %2651 = vmatprep.subr.mxu0 0.0
    %2652 = vmatpush1.msra.mxu0 0.0
    %2653 = vmatprep.subr.mxu0 0.0
    %2654 = vmatpush1.msra.mxu0 0.0
    %2655 = vmatprep.subr.mxu0 0.0
    %2656 = vmatpush1.msra.mxu0 0.0
    %2657 = vmatprep.subr.mxu0 0.0
    %2658 = vmatpush1.msra.mxu0 %v2618
    %2659 = vmatprep.subr.mxu0 0.0
    %2660 = vmatpush1.msra.mxu0 %v2617
    %2661 = vmatprep.subr.mxu0 0.0
    %2662 = vmatpush1.msra.mxu0 %v2616
    %2663 = vmatprep.subr.mxu0 0.0
    %2664 = vmatpush1.msra.mxu0 %v2615
    %2665 = vmatprep.subr.mxu0 0.0
    %2666 = vmatpush2.msra.mxu0 0.0
    %2667 = vmatprep.subr.mxu0 0.0
    %2668 = vmatpush2.msra.mxu0 0.0
    %2669 = vmatprep.subr.mxu0 0.0
    %2670 = vmatpush2.msra.mxu0 0.0
    %2671 = vmatprep.subr.mxu0 0.0
    %2672 = vmatpush2.msra.mxu0 0.0
    %2673 = vmatprep.subr.mxu0 0.0
    %2674 = vmatpush2.msra.mxu0 0.0
    %2675 = vmatprep.subr.mxu0 0.0
    %2676 = vmatpush2.msra.mxu0 0.0
    %2677 = vmatprep.subr.mxu0 0.0
    %2678 = vmatpush2.msra.mxu0 0.0
    %2679 = vmatprep.subr.mxu0 0.0
    %2680 = vmatpush2.msra.mxu0 0.0
    %2681 = vmatprep.subr.mxu0 0.0
    %2682 = vmatpush2.msra.mxu0 0.0
    %2683 = vmatprep.subr.mxu0 0.0
    %2684 = vmatpush2.msra.mxu0 0.0
    %2685 = vmatprep.subr.mxu0 0.0
    %2686 = vmatpush2.msra.mxu0 0.0
    %2687 = vmatprep.subr.mxu0 0.0
    %2688 = vmatpush2.msra.mxu0 0.0
    %2689 = vmatprep.subr.mxu0 0.0
    %2690 = vmatpush2.msra.mxu0 0.0
    %2691 = vmatprep.subr.mxu0 0.0
    %2692 = vmatpush2.msra.mxu0 0.0
    %2693 = vmatprep.subr.mxu0 0.0
    %2694 = vmatpush2.msra.mxu0 0.0
    %2695 = vmatprep.subr.mxu0 0.0
    %2696 = vmatpush2.msra.mxu0 0.0
    %2697 = vmatprep.mubr.f32.mxu0 0.0
    %2698 = vmatmul.mubr.f32.gmra.mxu0 %v2628
    %v2699 = vpop.f32.mrf.mxu0
    %v2700 = vadd.f32 %v2625, %v2699
    %v2701 = vpop.f32.mrf.mxu0
    %2702 = vmatprep.mubr.f32.mxu0 0.0
    %2703 = vmatmul.mubr.f32.gmra.mxu0 %v2631
    %v2704 = vpop.f32.mrf.mxu0
    %v2705 = vadd.f32 %v2625, %v2704
    %v2706 = vpop.f32.mrf.mxu0
    %2707 = vdwg.mxu0
    %v2708 = vmax.f32 %v2700, 0.0
    %v2709 = vmax.f32 %v2705, 0.0
    %s2710 = scalar_lea.vmem %s14, 64
    %v2711 = vld [vmem:[%s2710] sm:$0xff]
    %v2712 = vld [vmem:[%s2710 + $0x8] sm:$0xff]
    %v2713 = vld [vmem:[%s2710 + $0x10] sm:$0xff]
    %v2714 = vld [vmem:[%s2710 + $0x18] sm:$0xff]
    %v2715 = vld [vmem:[%s2710 + $0x20] sm:$0xff]
    %v2716 = vld [vmem:[%s2710 + $0x28] sm:$0xff]
    %v2717 = vld [vmem:[%s2710 + $0x30] sm:$0xff]
    %v2718 = vld [vmem:[%s2710 + $0x38] sm:$0xff]
    %v2720 = vsel %vm723, %v2708, 0
    %v2723 = vsel %vm723, %v2709, 0
    %2725 = vmatprep.subr.mxu0 0.0
    %2726 = vmatpush1.msra.mxu0 0.0
    %2727 = vmatprep.subr.mxu0 0.0
    %2728 = vmatpush1.msra.mxu0 0.0
    %2729 = vmatprep.subr.mxu0 0.0
    %2730 = vmatpush1.msra.mxu0 0.0
    %2731 = vmatprep.subr.mxu0 0.0
    %2732 = vmatpush1.msra.mxu0 0.0
    %2733 = vmatprep.subr.mxu0 0.0
    %2734 = vmatpush1.msra.mxu0 0.0
    %2735 = vmatprep.subr.mxu0 0.0
    %2736 = vmatpush1.msra.mxu0 0.0
    %2737 = vmatprep.subr.mxu0 0.0
    %2738 = vmatpush1.msra.mxu0 0.0
    %2739 = vmatprep.subr.mxu0 0.0
    %2740 = vmatpush1.msra.mxu0 0.0
    %2741 = vmatprep.subr.mxu0 0.0
    %2742 = vmatpush1.msra.mxu0 %v2718
    %2743 = vmatprep.subr.mxu0 0.0
    %2744 = vmatpush1.msra.mxu0 %v2717
    %2745 = vmatprep.subr.mxu0 0.0
    %2746 = vmatpush1.msra.mxu0 %v2716
    %2747 = vmatprep.subr.mxu0 0.0
    %2748 = vmatpush1.msra.mxu0 %v2715
    %2749 = vmatprep.subr.mxu0 0.0
    %2750 = vmatpush1.msra.mxu0 %v2714
    %2751 = vmatprep.subr.mxu0 0.0
    %2752 = vmatpush1.msra.mxu0 %v2713
    %2753 = vmatprep.subr.mxu0 0.0
    %2754 = vmatpush1.msra.mxu0 %v2712
    %2755 = vmatprep.subr.mxu0 0.0
    %2756 = vmatpush1.msra.mxu0 %v2711
    %2757 = vmatprep.subr.mxu0 0.0
    %2758 = vmatpush2.msra.mxu0 0.0
    %2759 = vmatprep.subr.mxu0 0.0
    %2760 = vmatpush2.msra.mxu0 0.0
    %2761 = vmatprep.subr.mxu0 0.0
    %2762 = vmatpush2.msra.mxu0 0.0
    %2763 = vmatprep.subr.mxu0 0.0
    %2764 = vmatpush2.msra.mxu0 0.0
    %2765 = vmatprep.subr.mxu0 0.0
    %2766 = vmatpush2.msra.mxu0 0.0
    %2767 = vmatprep.subr.mxu0 0.0
    %2768 = vmatpush2.msra.mxu0 0.0
    %2769 = vmatprep.subr.mxu0 0.0
    %2770 = vmatpush2.msra.mxu0 0.0
    %2771 = vmatprep.subr.mxu0 0.0
    %2772 = vmatpush2.msra.mxu0 0.0
    %2773 = vmatprep.subr.mxu0 0.0
    %2774 = vmatpush2.msra.mxu0 0.0
    %2775 = vmatprep.subr.mxu0 0.0
    %2776 = vmatpush2.msra.mxu0 0.0
    %2777 = vmatprep.subr.mxu0 0.0
    %2778 = vmatpush2.msra.mxu0 0.0
    %2779 = vmatprep.subr.mxu0 0.0
    %2780 = vmatpush2.msra.mxu0 0.0
    %2781 = vmatprep.subr.mxu0 0.0
    %2782 = vmatpush2.msra.mxu0 0.0
    %2783 = vmatprep.subr.mxu0 0.0
    %2784 = vmatpush2.msra.mxu0 0.0
    %2785 = vmatprep.subr.mxu0 0.0
    %2786 = vmatpush2.msra.mxu0 0.0
    %2787 = vmatprep.subr.mxu0 0.0
    %2788 = vmatpush2.msra.mxu0 0.0
    %2789 = vmatprep.mubr.f32.mxu0 0.0
    %2790 = vmatmul.mubr.f32.gmra.mxu0 %v2720
    %v2791 = vpop.f32.mrf.mxu0
    %v2792 = vadd.f32 0.0, %v2791
    %v2793 = vpop.f32.mrf.mxu0
    %2794 = vmatprep.mubr.f32.mxu0 0.0
    %2795 = vmatmul.mubr.f32.gmra.mxu0 %v2723
    %v2796 = vpop.f32.mrf.mxu0
    %v2797 = vadd.f32 0.0, %v2796
    %v2798 = vpop.f32.mrf.mxu0
    %2799 = vdwg.mxu0
    %v2800 = vadd.f32 %v2612, %v2792
    %v2801 = vadd.f32 %v2613, %v2797
    %s2802 = scalar_lea.vmem %s15, 1
    %v2803 = vld [vmem:[%s2802] sm:$0x1]
    %v2805 = vlaneseq
    %v2806 = vshrl.u32 %v2805, 7
    %v2807 = vsub.s32 0, %v2806
    %v2808 = vrot.slane %v2803, %v2807
    %v2810 = vadd.f32 %v2800, %v2808
    %v2811 = vadd.f32 %v2801, %v2808
    %v2812 = vsel %vm101, %v2810, 0.0
    %2813 = vadd.xlane.f32.xlu0 %v2812
    %v2814 = vpop.xlane.xlu0 %2813
    %v2815 = vsel %vm101, %v2811, 0.0
    %2816 = vadd.xlane.f32.xlu0 %v2815
    %v2817 = vpop.xlane.xlu0 %2816
    %v2818 = vmul.f32 %v2814, %v1194
    %v2819 = vmul.f32 %v2817, %v1194
    %v2820 = vsub.f32 %v2810, %v2818
    %v2821 = vsub.f32 %v2811, %v2819
    %v2822 = vmul.f32 %v2820, %v2820
    %v2823 = vmul.f32 %v2821, %v2821
    %v2824 = vsel %vm101, %v2822, 0.0
    %2825 = vadd.xlane.f32.xlu0 %v2824
    %v2826 = vpop.xlane.xlu0 %2825
    %v2827 = vsel %vm101, %v2823, 0.0
    %2828 = vadd.xlane.f32.xlu0 %v2827
    %v2829 = vpop.xlane.xlu0 %2828
    %v2830 = vmul.f32 %v2826, %v1194
    %v2831 = vmul.f32 %v2829, %v1194
    %v2832 = vadd.f32 %v2830, 1e-05
    %v2833 = vadd.f32 %v2831, 1e-05
    %v2834 = vrsqrt.pop %v2832
    %v2835 = vrsqrt.pop %v2833
    %v2836 = vmul.f32 %v2820, %v2834
    %v2837 = vmul.f32 %v2821, %v2835
    %s2838 = scalar_lea.vmem %s16, 1
    %v2839 = vld [vmem:[%s2838] sm:$0x1]
    %v2841 = vlaneseq
    %v2842 = vshrl.u32 %v2841, 7
    %v2843 = vsub.s32 0, %v2842
    %v2844 = vrot.slane %v2839, %v2843
    %v2846 = vmul.f32 %v2836, %v2844
    %v2847 = vmul.f32 %v2837, %v2844
    %s2848 = scalar_lea.vmem %s17, 1
    %v2849 = vld [vmem:[%s2848] sm:$0x1]
    %v2851 = vlaneseq
    %v2852 = vshrl.u32 %v2851, 7
    %v2853 = vsub.s32 0, %v2852
    %v2854 = vrot.slane %v2849, %v2853
    %v2856 = vadd.f32 %v2846, %v2854
    %v2857 = vadd.f32 %v2847, %v2854
    %2858 = vst.msk [vmem:[#allocation2] sm:$0xff] %vm101, %v2856
    %2859 = vst.msk [vmem:[#allocation2 + $0x8] sm:$0xff] %vm101, %v2857
    // Predicated region
    $region74: #{tpu_custom_call.1} parent=1 // pred_check
      _
    $region75: #{tpu_custom_call.1} parent=1 // pred_check_branch
      %2861 = sbr.rel (0) target = $region77
    $region76: #{tpu_custom_call.1} parent=1 // pred_region
      %s2863 = ssub.s32 256, 256
      %2864 = vsyncadd [#allocation3], %s2863
      %s2865 = sshll.u32 [#allocation2], 4
      %s2866 = int_to_ptr.vmem [resolvable:$true] %s2865
      %2871 = dma.vmem_to_hbm [thread:$0]  %s2866, 256, %s18, [#allocation3], 128, 128, 8
    $region77: #{tpu_custom_call.1} parent=1 // pred_fallthru
      _
    // Predicated region
    $region78: #{tpu_custom_call.1} parent=1 // pred_check
      _
    $region79: #{tpu_custom_call.1} parent=1 // pred_check_branch
      %2873 = sbr.rel (0) target = $region81
    $region80: #{tpu_custom_call.1} parent=1 // pred_region
      %s2875 = ssub.s32 2048, 2048
      %2876 = vsyncadd [#allocation5], %s2875
      %s2877 = sshll.u32 [#allocation4], 4
      %s2878 = int_to_ptr.vmem [resolvable:$true] %s2877
      %2883 = dma.vmem_to_hbm [thread:$0]  %s2878, 2048, %s19, [#allocation5], 128, 128, 8
    $region81: #{tpu_custom_call.1} parent=1 // pred_fallthru
      _
    // Predicated region
    $region82: #{tpu_custom_call.1} parent=1 // pred_check
      _
    $region83: #{tpu_custom_call.1} parent=1 // pred_check_branch
      %2885 = sbr.rel (0) target = $region85
    $region84: #{tpu_custom_call.1} parent=1 // pred_region
      %2886 = dma.done [#allocation3], 256
    $region85: #{tpu_custom_call.1} parent=1 // pred_fallthru
      _
    // Predicated region
    $region86: #{tpu_custom_call.1} parent=1 // pred_check
      _
    $region87: #{tpu_custom_call.1} parent=1 // pred_check_branch
      %2888 = sbr.rel (0) target = $region89
    $region88: #{tpu_custom_call.1} parent=1 // pred_region
      %2889 = dma.done [#allocation5], 2048
    $region89: #{tpu_custom_call.1} parent=1 // pred_fallthru
      _
    %2890 = vsyncpa [#allocation3], 1
    %2891 = vsyncpa [#allocation5], 1

</llo_original>
